<compile_context>
chip_gen: v5e
topology: v5e:2x2
jax: 0.10.0
libtpu: 0.0.40
codegen_flags: <defaults>
</compile_context>

<pallas_src>
import functools

import jax
import jax.numpy as jnp
from jax.experimental import pallas as pl
from jax.experimental.pallas import tpu as pltpu

LN_EPS = 1e-5  # nn.LayerNorm default


# ---------------------------------------------------------------------------
# shared math
# ---------------------------------------------------------------------------
def _layernorm(x, g, b):
    mu = jnp.mean(x, axis=-1, keepdims=True)
    var = jnp.mean((x - mu) ** 2, axis=-1, keepdims=True)
    return (x - mu) * jax.lax.rsqrt(var + LN_EPS) * g + b


def _gelu(x):
    # TODO(synk): torch F.gelu defaults to the exact erf form; erf lowering in
    # Mosaic is not guaranteed, so the tanh approximation (|diff|~1e-3) is used
    # (the pure-JAX reference below uses the same approximation).
    c = 0.7978845608028654  # sqrt(2/pi)
    return 0.5 * x * (1.0 + jnp.tanh(c * (x + 0.044715 * x * x * x)))


# ---------------------------------------------------------------------------
# fused encoder kernel: grid = (token_tiles, num_layers)
# ---------------------------------------------------------------------------
def encoder_kernel(num_heads, compute_dtype,
                   x_ref, pos_ref,
                   ln1_g_ref, ln1_b_ref, wqkv_ref, bqkv_ref, wo_ref, bo_ref,
                   ln2_g_ref, ln2_b_ref, w1_ref, b1_ref, w2_ref, b2_ref,
                   lnf_g_ref, lnf_b_ref,
                   o_ref):
    layer = pl.program_id(1)
    num_layers = pl.num_programs(1)
    cdt = compute_dtype
    nh = num_heads

    # AddPositionEmbs folded into the first layer step of this token tile.
    # o_ref (same block index for every layer) is the resident accumulator.
    @pl.when(layer == 0)
    def _init():
        o_ref[...] = x_ref[...] + pos_ref[...]           # (T,B,H) + (T,1,H)

    x = o_ref[...]                                       # f32 residual stream
    T, B, H = x.shape
    D = H // nh
    rows = T * B

    # ---- LayerNorm 1 + multi-head self-attention (torch MHA, eval) --------
    xn = _layernorm(x, ln1_g_ref[0], ln1_b_ref[0])
    qkv = jnp.dot(xn.reshape(rows, H).astype(cdt), wqkv_ref[0],
                  preferred_element_type=jnp.float32) + bqkv_ref[0]  # (rows,3H)
    qkv_c = qkv.astype(cdt)

    # Head-stacked (batch axis = heads*T) q/k/v: one batched score einsum and
    # one batched context einsum.  NOTE: 1/sqrt(D) is folded into w_qkv/b_qkv.
    q = jnp.concatenate(
        [qkv_c[:, h * D:(h + 1) * D].reshape(T, B, D) for h in range(nh)], axis=0)
    k = jnp.concatenate(
        [qkv_c[:, H + h * D:H + (h + 1) * D].reshape(T, B, D) for h in range(nh)],
        axis=0)
    v = jnp.concatenate(
        [qkv_c[:, 2 * H + h * D:2 * H + (h + 1) * D].reshape(T, B, D)
         for h in range(nh)], axis=0)                     # (nh*T, B, D)

    s = jnp.einsum('bqd,bkd->bqk', q, k,
                   preferred_element_type=jnp.float32)    # (nh*T, B, B)
    s = s - jnp.max(s, axis=-1, keepdims=True)
    p = jnp.exp(s)
    p = p * pl.reciprocal(jnp.sum(p, axis=-1, keepdims=True), approx=True)
    ctx = jnp.einsum('bqk,bkd->bqd', p.astype(cdt), v,
                     preferred_element_type=jnp.float32)  # (nh*T, B, D)
    ctx = ctx.astype(cdt)

    # Re-assemble (rows, H) so the output projection is one full-K matmul.
    ctx = jnp.concatenate(
        [ctx[h * T:(h + 1) * T].reshape(rows, D) for h in range(nh)], axis=-1)
    attn = jnp.dot(ctx, wo_ref[0],
                   preferred_element_type=jnp.float32) + bo_ref[0]
    x = x + attn.reshape(T, B, H)                         # residual (f32)

    # ---- LayerNorm 2 + MLP (hidden -> hidden: MlpBlock(embedding_dim)) ----
    y = _layernorm(x, ln2_g_ref[0], ln2_b_ref[0])
    h1 = jnp.dot(y.reshape(rows, H).astype(cdt), w1_ref[0],
                 preferred_element_type=jnp.float32) + b1_ref[0]
    h1 = _gelu(h1)
    y2 = jnp.dot(h1.astype(cdt), w2_ref[0],
                 preferred_element_type=jnp.float32) + b2_ref[0]
    x = x + y2.reshape(T, B, H)                           # residual (f32)

    o_ref[...] = x

    # Final encoder LayerNorm folded into the last layer step (in place).
    @pl.when(layer == num_layers - 1)
    def _finalize():
        o_ref[...] = _layernorm(x, lnf_g_ref[...], lnf_b_ref[...])


# ---------------------------------------------------------------------------
# VMEM budgeting / tile selection
# ---------------------------------------------------------------------------
def _vmem_capacity_bytes():
    # Per-chip physical VMEM (128 MiB v5e/v6e, 64 MiB/TC v7x).  Conservative
    # fallback if the trace-time query is unavailable.
    try:
        return int(pltpu.get_tpu_info().vmem_capacity_bytes)
    except Exception:
        return 64 * 1024 * 1024


def _pick_token_tile(S, B, H, nh, wdt_bytes, budget):
    """Largest token tile whose estimated VMEM footprint (double-buffered
    activations + live intermediates + double-buffered weights) fits `budget`.
    Bigger tiles => fewer re-streams of the per-layer weights."""
    weights = 2 * (6 * H * H) * wdt_bytes + 2 * 12 * H * 4  # dbl-buffered W + small params

    def usage(t):
        act = 2 * 2 * t * B * H * 4                       # in + out blocks, dbl-buffered, f32
        inter = t * B * H * (36 + 4 * wdt_bytes)          # qkv / stacks / ctx / h1 / attn (approx)
        scores = 2 * nh * t * B * B * 4                   # scores + probs, f32
        return act + inter + scores + weights

    # TODO(synk): on v7x megacore, prefer an even tile count so both
    # TensorCores are loaded when S/tn is small.
    for t in sorted([t for t in range(1, S + 1) if S % t == 0], reverse=True):
        if usage(t) <= budget:
            return t
    return 1


# ---------------------------------------------------------------------------
# Encoder forward (single fused pallas_call)
# ---------------------------------------------------------------------------
def encoder_forward(x, params, num_heads, *, compute_dtype=jnp.bfloat16):
    """x: (B, S, H) float32.  Eval-mode forward of `Encoder` (dropout = id)."""
    # TODO(synk): training-mode dropout (Encoder.dropout, dropout1, MLP & attn
    # dropout) not implemented; this is the deterministic / eval path.
    B, S, H = x.shape
    nl = params['w_qkv'].shape[0]
    D = H // num_heads
    wdt = compute_dtype
    wdt_bytes = jnp.finfo(wdt).bits // 8

    # (B,S,H) -> (S,B,H): torch MHA batch_first=False semantics (attend over the
    # batch axis; seq is the MHA batch).  TODO(synk): absorb these two HBM
    # transpose passes into an in-kernel relayout at the first/last layer step;
    # cost is ~4*S*B*H*4 bytes of HBM traffic, small next to num_layers of compute.
    xt = jnp.transpose(x, (1, 0, 2)).astype(jnp.float32)
    pos = jnp.reshape(params['pos_embed'], (S, 1, H)).astype(jnp.float32)

    # Fold the 1/sqrt(D) attention scale into the Q columns of w_qkv / b_qkv
    # (one-time host-side op).  MXU operands cast to compute_dtype; biases, LN
    # params and the residual stream stay f32.
    qscale = jnp.concatenate([jnp.full((H,), 1.0 / (D ** 0.5), jnp.float32),
                              jnp.ones((2 * H,), jnp.float32)])
    w_qkv = (params['w_qkv'] * qscale).astype(wdt)
    b_qkv = params['b_qkv'] * qscale
    w_o = params['w_o'].astype(wdt)
    w1 = params['w1'].astype(wdt)
    w2 = params['w2'].astype(wdt)

    vmem_cap = _vmem_capacity_bytes()
    tn = _pick_token_tile(S, B, H, num_heads, wdt_bytes, int(vmem_cap * 0.7))
    vmem_limit = min(int(vmem_cap * 0.85), 100 * 1024 * 1024)
    grid = (S // tn, nl)
    # TODO(synk): for very large S*B, add an inner M-chunk loop over the rows of
    # the dense matmuls so tn can grow (fewer weight re-streams) while keeping
    # the (rows, 3H) qkv intermediate small.

    act_in_spec = pl.BlockSpec((tn, B, H), lambda s, l: (s, 0, 0))
    act_out_spec = pl.BlockSpec((tn, B, H), lambda s, l: (s, 0, 0))
    pos_spec = pl.BlockSpec((tn, 1, H), lambda s, l: (s, 0, 0))

    def layer_spec(a):
        return pl.BlockSpec((1,) + a.shape[1:], lambda s, l: (l, 0, 0))

    def full_spec(a):
        return pl.BlockSpec(a.shape, lambda s, l: (0, 0, 0))

    inputs = (xt, pos,
              params['ln1_g'], params['ln1_b'], w_qkv, b_qkv, w_o, params['b_o'],
              params['ln2_g'], params['ln2_b'], w1, params['b1'], w2, params['b2'],
              params['ln_g'], params['ln_b'])

    in_specs = [act_in_spec, pos_spec]
    in_specs += [layer_spec(a) for a in inputs[2:14]]
    in_specs += [full_spec(inputs[14]), full_spec(inputs[15])]

    kernel = functools.partial(encoder_kernel, num_heads, compute_dtype)
    out = pl.pallas_call(
        kernel,
        grid=grid,
        in_specs=in_specs,
        out_specs=act_out_spec,
        out_shape=jax.ShapeDtypeStruct((S, B, H), jnp.float32),
        compiler_params=pltpu.CompilerParams(
            dimension_semantics=("parallel", "arbitrary"),
            vmem_limit_bytes=vmem_limit),
    )(*inputs)
    return jnp.transpose(out, (1, 0, 2))                  # back to (B, S, H)


# ---------------------------------------------------------------------------
# pure-JAX reference (f32, exact division, same gelu approximation)
# ---------------------------------------------------------------------------
def encoder_reference(x, params, num_heads):
    B, S, H = x.shape
    D = H // num_heads
    scale = 1.0 / (D ** 0.5)
    nl = params['w_qkv'].shape[0]
    xt = jnp.transpose(x, (1, 0, 2)) + jnp.reshape(params['pos_embed'], (S, 1, H))
    for l in range(nl):
        xn = _layernorm(xt, params['ln1_g'][l], params['ln1_b'][l])
        qkv = xn.reshape(S * B, H) @ params['w_qkv'][l] + params['b_qkv'][l]
        q = (qkv[:, :H] * scale).reshape(S, B, num_heads, D)
        k = qkv[:, H:2 * H].reshape(S, B, num_heads, D)
        v = qkv[:, 2 * H:].reshape(S, B, num_heads, D)
        s = jnp.einsum('tihd,tjhd->thij', q, k)
        p = jax.nn.softmax(s, axis=-1)
        ctx = jnp.einsum('thij,tjhd->tihd', p, v).reshape(S * B, H)
        attn = ctx @ params['w_o'][l] + params['b_o'][l]
        xt = xt + attn.reshape(S, B, H)
        y = _layernorm(xt, params['ln2_g'][l], params['ln2_b'][l])
        h1 = _gelu(y.reshape(S * B, H) @ params['w1'][l] + params['b1'][l])
        y2 = h1 @ params['w2'][l] + params['b2'][l]
        xt = xt + y2.reshape(S, B, H)
    xt = _layernorm(xt, params['ln_g'][0], params['ln_b'][0])
    return jnp.transpose(xt, (1, 0, 2))


# ---------------------------------------------------------------------------
# deterministic synthetic parameters (stacked along the layer axis)
# ---------------------------------------------------------------------------
def init_encoder_params(key, num_layers, seq_len, hidden):
    def nrm(k, shape, scale=0.02):
        return (scale * jax.random.normal(k, shape)).astype(jnp.float32)

    ks = jax.random.split(key, 16)
    nl, H = num_layers, hidden
    return {
        # torch zero-inits pos_embedding; small randoms so the add is exercised
        'pos_embed': nrm(ks[0], (1, seq_len, H)),
        'ln_g': 1.0 + nrm(ks[1], (1, 1, H), 0.05),
        'ln_b': nrm(ks[2], (1, 1, H)),
        'ln1_g': 1.0 + nrm(ks[3], (nl, 1, H), 0.05),
        'ln1_b': nrm(ks[4], (nl, 1, H)),
        # weights stored (in, out): y = x @ W + b
        'w_qkv': nrm(ks[5], (nl, H, 3 * H)),
        'b_qkv': nrm(ks[6], (nl, 1, 3 * H)),
        'w_o': nrm(ks[7], (nl, H, H)),
        'b_o': nrm(ks[8], (nl, 1, H)),
        'ln2_g': 1.0 + nrm(ks[9], (nl, 1, H), 0.05),
        'ln2_b': nrm(ks[10], (nl, 1, H)),
        # MlpBlock(embedding_dim): fc1/fc2 are hidden->hidden per the torch code
        'w1': nrm(ks[11], (nl, H, H)),
        'b1': nrm(ks[12], (nl, 1, H)),
        'w2': nrm(ks[13], (nl, H, H)),
        'b2': nrm(ks[14], (nl, 1, H)),
    }


if __name__ == "__main__":
    # small shapes consistent with the module: (batch, num_patches+cls, hidden)
    B, S, H = 2, 8, 32
    NUM_LAYERS, NUM_HEADS = 2, 4

    key = jax.random.PRNGKey(0)
    k_x, k_p = jax.random.split(key)
    x = jax.random.normal(k_x, (B, S, H), dtype=jnp.float32)
    params = init_encoder_params(k_p, NUM_LAYERS, S, H)

    ref = jax.block_until_ready(encoder_reference(x, params, NUM_HEADS))

    # f32 MXU operands: tight check (only diff is approx softmax reciprocal).
    out_f32 = jax.block_until_ready(
        encoder_forward(x, params, NUM_HEADS, compute_dtype=jnp.float32))
    assert out_f32.shape == (B, S, H) and out_f32.dtype == jnp.float32
    assert jnp.allclose(out_f32, ref, atol=2e-3, rtol=2e-3), "f32 kernel mismatch"

    # Default path: bf16 MXU operands, f32 accumulation / LN / residuals.
    out = jax.block_until_ready(encoder_forward(x, params, NUM_HEADS))
    assert out.shape == (B, S, H) and out.dtype == jnp.float32
    assert jnp.allclose(out, ref, atol=2e-2, rtol=2e-2), "bf16 kernel mismatch"

    print("KERNEL_OK")
</pallas_src>

<mosaic_0001>
module attributes {stable_mosaic.version = 11 : i64} {
  func.func @encoder_kernel(%arg0: i32, %arg1: i32, %arg2: memref<8x2x32xf32, #tpu.memory_space<vmem>>, %arg3: memref<8x1x32xf32, #tpu.memory_space<vmem>>, %arg4: memref<1x1x32xf32, #tpu.memory_space<vmem>>, %arg5: memref<1x1x32xf32, #tpu.memory_space<vmem>>, %arg6: memref<1x32x96xf32, #tpu.memory_space<vmem>>, %arg7: memref<1x1x96xf32, #tpu.memory_space<vmem>>, %arg8: memref<1x32x32xf32, #tpu.memory_space<vmem>>, %arg9: memref<1x1x32xf32, #tpu.memory_space<vmem>>, %arg10: memref<1x1x32xf32, #tpu.memory_space<vmem>>, %arg11: memref<1x1x32xf32, #tpu.memory_space<vmem>>, %arg12: memref<1x32x32xf32, #tpu.memory_space<vmem>>, %arg13: memref<1x1x32xf32, #tpu.memory_space<vmem>>, %arg14: memref<1x32x32xf32, #tpu.memory_space<vmem>>, %arg15: memref<1x1x32xf32, #tpu.memory_space<vmem>>, %arg16: memref<1x1x32xf32, #tpu.memory_space<vmem>>, %arg17: memref<1x1x32xf32, #tpu.memory_space<vmem>>, %arg18: memref<8x2x32xf32, #tpu.memory_space<vmem>>) attributes {dimension_semantics = [#tpu.dimension_semantics<parallel>, #tpu.dimension_semantics<arbitrary>], iteration_bounds = array<i64: 1, 2>, scalar_prefetch = 0 : i64, scratch_operands = 0 : i64, tpu.core_type = #tpu.core_type<tc>, window_params = [{transform_indices = @transform_0, window_bounds = array<i64: 8, 2, 32>}, {transform_indices = @transform_1, window_bounds = array<i64: 8, 1, 32>}, {transform_indices = @transform_2, window_bounds = array<i64: 1, 1, 32>}, {transform_indices = @transform_3, window_bounds = array<i64: 1, 1, 32>}, {transform_indices = @transform_4, window_bounds = array<i64: 1, 32, 96>}, {transform_indices = @transform_5, window_bounds = array<i64: 1, 1, 96>}, {transform_indices = @transform_6, window_bounds = array<i64: 1, 32, 32>}, {transform_indices = @transform_7, window_bounds = array<i64: 1, 1, 32>}, {transform_indices = @transform_8, window_bounds = array<i64: 1, 1, 32>}, {transform_indices = @transform_9, window_bounds = array<i64: 1, 1, 32>}, {transform_indices = @transform_10, window_bounds = array<i64: 1, 32, 32>}, {transform_indices = @transform_11, window_bounds = array<i64: 1, 1, 32>}, {transform_indices = @transform_12, window_bounds = array<i64: 1, 32, 32>}, {transform_indices = @transform_13, window_bounds = array<i64: 1, 1, 32>}, {pipeline_mode = #tpu.pipeline_mode<synchronous>, transform_indices = @transform_14, window_bounds = array<i64: 1, 1, 32>}, {pipeline_mode = #tpu.pipeline_mode<synchronous>, transform_indices = @transform_15, window_bounds = array<i64: 1, 1, 32>}, {transform_indices = @transform_16, window_bounds = array<i64: 8, 2, 32>}]} {
    %c0_i32 = arith.constant 0 : i32
    %0 = arith.cmpi eq, %arg1, %c0_i32 : i32
    %1 = arith.extui %0 : i1 to i32
    %c0_i32_0 = arith.constant 0 : i32
    %2 = arith.cmpi ne, %1, %c0_i32_0 : i32
    scf.if %2 {
      %c0_64 = arith.constant 0 : index
      %c0_65 = arith.constant 0 : index
      %c0_66 = arith.constant 0 : index
      %159 = vector.load %arg2[%c0_64, %c0_65, %c0_66] : memref<8x2x32xf32, #tpu.memory_space<vmem>>, vector<8x2x32xf32>
      %c0_67 = arith.constant 0 : index
      %c0_68 = arith.constant 0 : index
      %c0_69 = arith.constant 0 : index
      %160 = vector.load %arg3[%c0_67, %c0_68, %c0_69] : memref<8x1x32xf32, #tpu.memory_space<vmem>>, vector<8x1x32xf32>
      %161 = vector.broadcast %160 : vector<8x1x32xf32> to vector<8x2x32xf32>
      %162 = arith.addf %159, %161 : vector<8x2x32xf32>
      %c0_70 = arith.constant 0 : index
      %c0_71 = arith.constant 0 : index
      %c0_72 = arith.constant 0 : index
      %163 = vector.load %arg18[%c0_70, %c0_71, %c0_72] : memref<8x2x32xf32, #tpu.memory_space<vmem>>, vector<8x2x32xf32>
      tpu.vector_store %arg18[%c0_70, %c0_71, %c0_72], %162 {strides = array<i32>} : memref<8x2x32xf32, #tpu.memory_space<vmem>>, vector<8x2x32xf32>,
    } else {
    }
    %c0 = arith.constant 0 : index
    %c0_1 = arith.constant 0 : index
    %c0_2 = arith.constant 0 : index
    %3 = vector.load %arg18[%c0, %c0_1, %c0_2] : memref<8x2x32xf32, #tpu.memory_space<vmem>>, vector<8x2x32xf32>
    %c0_3 = arith.constant 0 : index
    %c0_4 = arith.constant 0 : index
    %c0_5 = arith.constant 0 : index
    %4 = vector.load %arg4[%c0_3, %c0_4, %c0_5] : memref<1x1x32xf32, #tpu.memory_space<vmem>>, vector<1x1x32xf32>
    %5 = vector.shape_cast %4 : vector<1x1x32xf32> to vector<1x32xf32>
    %c0_6 = arith.constant 0 : index
    %c0_7 = arith.constant 0 : index
    %c0_8 = arith.constant 0 : index
    %6 = vector.load %arg5[%c0_6, %c0_7, %c0_8] : memref<1x1x32xf32, #tpu.memory_space<vmem>>, vector<1x1x32xf32>
    %7 = vector.shape_cast %6 : vector<1x1x32xf32> to vector<1x32xf32>
    %cst = arith.constant dense<0.000000e+00> : vector<8x2xf32>
    %8 = vector.multi_reduction <add>, %3, %cst [2] : vector<8x2x32xf32> to vector<8x2xf32>
    %9 = vector.shape_cast %8 : vector<8x2xf32> to vector<8x2x1xf32>
    %cst_9 = arith.constant 3.200000e+01 : f32
    %10 = vector.broadcast %cst_9 : f32 to vector<8x2x1xf32>
    %11 = arith.divf %9, %10 : vector<8x2x1xf32>
    %12 = vector.broadcast %11 : vector<8x2x1xf32> to vector<8x2x32xf32>
    %13 = arith.subf %3, %12 : vector<8x2x32xf32>
    %14 = arith.mulf %13, %13 : vector<8x2x32xf32>
    %cst_10 = arith.constant dense<0.000000e+00> : vector<8x2xf32>
    %15 = vector.multi_reduction <add>, %14, %cst_10 [2] : vector<8x2x32xf32> to vector<8x2xf32>
    %16 = vector.shape_cast %15 : vector<8x2xf32> to vector<8x2x1xf32>
    %cst_11 = arith.constant 3.200000e+01 : f32
    %17 = vector.broadcast %cst_11 : f32 to vector<8x2x1xf32>
    %18 = arith.divf %16, %17 : vector<8x2x1xf32>
    %19 = vector.broadcast %11 : vector<8x2x1xf32> to vector<8x2x32xf32>
    %20 = arith.subf %3, %19 : vector<8x2x32xf32>
    %cst_12 = arith.constant 9.99999974E-6 : f32
    %21 = vector.broadcast %cst_12 : f32 to vector<8x2x1xf32>
    %22 = arith.addf %18, %21 : vector<8x2x1xf32>
    %23 = math.rsqrt %22 : vector<8x2x1xf32>
    %24 = vector.broadcast %23 : vector<8x2x1xf32> to vector<8x2x32xf32>
    %25 = arith.mulf %20, %24 : vector<8x2x32xf32>
    %26 = vector.shape_cast %5 : vector<1x32xf32> to vector<1x1x32xf32>
    %27 = vector.broadcast %26 : vector<1x1x32xf32> to vector<8x2x32xf32>
    %28 = arith.mulf %25, %27 : vector<8x2x32xf32>
    %29 = vector.shape_cast %7 : vector<1x32xf32> to vector<1x1x32xf32>
    %30 = vector.broadcast %29 : vector<1x1x32xf32> to vector<8x2x32xf32>
    %31 = arith.addf %28, %30 : vector<8x2x32xf32>
    %32 = vector.shape_cast %31 : vector<8x2x32xf32> to vector<16x32xf32>
    %c0_13 = arith.constant 0 : index
    %c0_14 = arith.constant 0 : index
    %c0_15 = arith.constant 0 : index
    %33 = vector.load %arg6[%c0_13, %c0_14, %c0_15] : memref<1x32x96xf32, #tpu.memory_space<vmem>>, vector<1x32x96xf32>
    %34 = vector.shape_cast %33 : vector<1x32x96xf32> to vector<32x96xf32>
    %cst_16 = arith.constant dense<0.000000e+00> : vector<16x96xf32>
    %35 = tpu.matmul %32, %34, %cst_16 {dimension_numbers = #tpu.dot_dimension_numbers<[1], [0], [0], [1], [0, 0, 1, 1], [], []>} : vector<16x32xf32>, vector<32x96xf32>, vector<16x96xf32> -> vector<16x96xf32>
    %c0_17 = arith.constant 0 : index
    %c0_18 = arith.constant 0 : index
    %c0_19 = arith.constant 0 : index
    %36 = vector.load %arg7[%c0_17, %c0_18, %c0_19] : memref<1x1x96xf32, #tpu.memory_space<vmem>>, vector<1x1x96xf32>
    %37 = vector.shape_cast %36 : vector<1x1x96xf32> to vector<1x96xf32>
    %38 = vector.broadcast %37 : vector<1x96xf32> to vector<16x96xf32>
    %39 = arith.addf %35, %38 : vector<16x96xf32>
    %40 = vector.extract_strided_slice %39 {offsets = [0, 0], sizes = [16, 8], strides = [1, 1]} : vector<16x96xf32> to vector<16x8xf32>
    %41 = vector.shape_cast %40 : vector<16x8xf32> to vector<8x2x8xf32>
    %42 = vector.extract_strided_slice %39 {offsets = [0, 8], sizes = [16, 8], strides = [1, 1]} : vector<16x96xf32> to vector<16x8xf32>
    %43 = vector.shape_cast %42 : vector<16x8xf32> to vector<8x2x8xf32>
    %44 = vector.extract_strided_slice %39 {offsets = [0, 16], sizes = [16, 8], strides = [1, 1]} : vector<16x96xf32> to vector<16x8xf32>
    %45 = vector.shape_cast %44 : vector<16x8xf32> to vector<8x2x8xf32>
    %46 = vector.extract_strided_slice %39 {offsets = [0, 24], sizes = [16, 8], strides = [1, 1]} : vector<16x96xf32> to vector<16x8xf32>
    %47 = vector.shape_cast %46 : vector<16x8xf32> to vector<8x2x8xf32>
    %48 = tpu.concatenate %41, %43, %45, %47 in 0 : vector<8x2x8xf32>, vector<8x2x8xf32>, vector<8x2x8xf32>, vector<8x2x8xf32> -> vector<32x2x8xf32>
    %49 = vector.extract_strided_slice %39 {offsets = [0, 32], sizes = [16, 8], strides = [1, 1]} : vector<16x96xf32> to vector<16x8xf32>
    %50 = vector.shape_cast %49 : vector<16x8xf32> to vector<8x2x8xf32>
    %51 = vector.extract_strided_slice %39 {offsets = [0, 40], sizes = [16, 8], strides = [1, 1]} : vector<16x96xf32> to vector<16x8xf32>
    %52 = vector.shape_cast %51 : vector<16x8xf32> to vector<8x2x8xf32>
    %53 = vector.extract_strided_slice %39 {offsets = [0, 48], sizes = [16, 8], strides = [1, 1]} : vector<16x96xf32> to vector<16x8xf32>
    %54 = vector.shape_cast %53 : vector<16x8xf32> to vector<8x2x8xf32>
    %55 = vector.extract_strided_slice %39 {offsets = [0, 56], sizes = [16, 8], strides = [1, 1]} : vector<16x96xf32> to vector<16x8xf32>
    %56 = vector.shape_cast %55 : vector<16x8xf32> to vector<8x2x8xf32>
    %57 = tpu.concatenate %50, %52, %54, %56 in 0 : vector<8x2x8xf32>, vector<8x2x8xf32>, vector<8x2x8xf32>, vector<8x2x8xf32> -> vector<32x2x8xf32>
    %58 = vector.extract_strided_slice %39 {offsets = [0, 64], sizes = [16, 8], strides = [1, 1]} : vector<16x96xf32> to vector<16x8xf32>
    %59 = vector.shape_cast %58 : vector<16x8xf32> to vector<8x2x8xf32>
    %60 = vector.extract_strided_slice %39 {offsets = [0, 72], sizes = [16, 8], strides = [1, 1]} : vector<16x96xf32> to vector<16x8xf32>
    %61 = vector.shape_cast %60 : vector<16x8xf32> to vector<8x2x8xf32>
    %62 = vector.extract_strided_slice %39 {offsets = [0, 80], sizes = [16, 8], strides = [1, 1]} : vector<16x96xf32> to vector<16x8xf32>
    %63 = vector.shape_cast %62 : vector<16x8xf32> to vector<8x2x8xf32>
    %64 = vector.extract_strided_slice %39 {offsets = [0, 88], sizes = [16, 8], strides = [1, 1]} : vector<16x96xf32> to vector<16x8xf32>
    %65 = vector.shape_cast %64 : vector<16x8xf32> to vector<8x2x8xf32>
    %66 = tpu.concatenate %59, %61, %63, %65 in 0 : vector<8x2x8xf32>, vector<8x2x8xf32>, vector<8x2x8xf32>, vector<8x2x8xf32> -> vector<32x2x8xf32>
    "tpu.trace_start"() <{level = 10 : i32, message = "bqd,bkd->bqk"}> : () -> ()
    %cst_20 = arith.constant dense<0.000000e+00> : vector<32x2x2xf32>
    %67 = tpu.matmul %48, %57, %cst_20 {dimension_numbers = #tpu.dot_dimension_numbers<[2], [2], [1], [1], [0, 0, 0, 1, 1, 1], [0], [0]>} : vector<32x2x8xf32>, vector<32x2x8xf32>, vector<32x2x2xf32> -> vector<32x2x2xf32>
    "tpu.trace_stop"() : () -> ()
    %cst_21 = arith.constant dense<0xFF800000> : vector<32x2xf32>
    %68 = vector.multi_reduction <maximumf>, %67, %cst_21 [2] : vector<32x2x2xf32> to vector<32x2xf32>
    %69 = vector.shape_cast %68 : vector<32x2xf32> to vector<32x2x1xf32>
    %70 = vector.broadcast %69 : vector<32x2x1xf32> to vector<32x2x2xf32>
    %71 = arith.subf %67, %70 : vector<32x2x2xf32>
    %72 = math.exp %71 : vector<32x2x2xf32>
    %cst_22 = arith.constant dense<0.000000e+00> : vector<32x2xf32>
    %73 = vector.multi_reduction <add>, %72, %cst_22 [2] : vector<32x2x2xf32> to vector<32x2xf32>
    %74 = vector.shape_cast %73 : vector<32x2xf32> to vector<32x2x1xf32>
    %75 = tpu.reciprocal %74 {approx = true} : vector<32x2x1xf32> -> vector<32x2x1xf32>
    %76 = vector.broadcast %75 : vector<32x2x1xf32> to vector<32x2x2xf32>
    %77 = arith.mulf %72, %76 : vector<32x2x2xf32>
    "tpu.trace_start"() <{level = 10 : i32, message = "bqk,bkd->bqd"}> : () -> ()
    %cst_23 = arith.constant dense<0.000000e+00> : vector<32x2x8xf32>
    %78 = tpu.matmul %77, %66, %cst_23 {dimension_numbers = #tpu.dot_dimension_numbers<[2], [1], [1], [2], [0, 0, 0, 1, 1, 2], [0], [0]>} : vector<32x2x2xf32>, vector<32x2x8xf32>, vector<32x2x8xf32> -> vector<32x2x8xf32>
    "tpu.trace_stop"() : () -> ()
    %79 = vector.extract_strided_slice %78 {offsets = [0, 0, 0], sizes = [8, 2, 8], strides = [1, 1, 1]} : vector<32x2x8xf32> to vector<8x2x8xf32>
    %80 = vector.shape_cast %79 : vector<8x2x8xf32> to vector<16x8xf32>
    %81 = vector.extract_strided_slice %78 {offsets = [8, 0, 0], sizes = [8, 2, 8], strides = [1, 1, 1]} : vector<32x2x8xf32> to vector<8x2x8xf32>
    %82 = vector.shape_cast %81 : vector<8x2x8xf32> to vector<16x8xf32>
    %83 = vector.extract_strided_slice %78 {offsets = [16, 0, 0], sizes = [8, 2, 8], strides = [1, 1, 1]} : vector<32x2x8xf32> to vector<8x2x8xf32>
    %84 = vector.shape_cast %83 : vector<8x2x8xf32> to vector<16x8xf32>
    %85 = vector.extract_strided_slice %78 {offsets = [24, 0, 0], sizes = [8, 2, 8], strides = [1, 1, 1]} : vector<32x2x8xf32> to vector<8x2x8xf32>
    %86 = vector.shape_cast %85 : vector<8x2x8xf32> to vector<16x8xf32>
    %87 = tpu.concatenate %80, %82, %84, %86 in 1 : vector<16x8xf32>, vector<16x8xf32>, vector<16x8xf32>, vector<16x8xf32> -> vector<16x32xf32>
    %c0_24 = arith.constant 0 : index
    %c0_25 = arith.constant 0 : index
    %c0_26 = arith.constant 0 : index
    %88 = vector.load %arg8[%c0_24, %c0_25, %c0_26] : memref<1x32x32xf32, #tpu.memory_space<vmem>>, vector<1x32x32xf32>
    %89 = vector.shape_cast %88 : vector<1x32x32xf32> to vector<32x32xf32>
    %cst_27 = arith.constant dense<0.000000e+00> : vector<16x32xf32>
    %90 = tpu.matmul %87, %89, %cst_27 {dimension_numbers = #tpu.dot_dimension_numbers<[1], [0], [0], [1], [0, 0, 1, 1], [], []>} : vector<16x32xf32>, vector<32x32xf32>, vector<16x32xf32> -> vector<16x32xf32>
    %c0_28 = arith.constant 0 : index
    %c0_29 = arith.constant 0 : index
    %c0_30 = arith.constant 0 : index
    %91 = vector.load %arg9[%c0_28, %c0_29, %c0_30] : memref<1x1x32xf32, #tpu.memory_space<vmem>>, vector<1x1x32xf32>
    %92 = vector.shape_cast %91 : vector<1x1x32xf32> to vector<1x32xf32>
    %93 = vector.broadcast %92 : vector<1x32xf32> to vector<16x32xf32>
    %94 = arith.addf %90, %93 : vector<16x32xf32>
    %95 = vector.shape_cast %94 : vector<16x32xf32> to vector<8x2x32xf32>
    %96 = arith.addf %3, %95 : vector<8x2x32xf32>
    %c0_31 = arith.constant 0 : index
    %c0_32 = arith.constant 0 : index
    %c0_33 = arith.constant 0 : index
    %97 = vector.load %arg10[%c0_31, %c0_32, %c0_33] : memref<1x1x32xf32, #tpu.memory_space<vmem>>, vector<1x1x32xf32>
    %98 = vector.shape_cast %97 : vector<1x1x32xf32> to vector<1x32xf32>
    %c0_34 = arith.constant 0 : index
    %c0_35 = arith.constant 0 : index
    %c0_36 = arith.constant 0 : index
    %99 = vector.load %arg11[%c0_34, %c0_35, %c0_36] : memref<1x1x32xf32, #tpu.memory_space<vmem>>, vector<1x1x32xf32>
    %100 = vector.shape_cast %99 : vector<1x1x32xf32> to vector<1x32xf32>
    %cst_37 = arith.constant dense<0.000000e+00> : vector<8x2xf32>
    %101 = vector.multi_reduction <add>, %96, %cst_37 [2] : vector<8x2x32xf32> to vector<8x2xf32>
    %102 = vector.shape_cast %101 : vector<8x2xf32> to vector<8x2x1xf32>
    %cst_38 = arith.constant 3.200000e+01 : f32
    %103 = vector.broadcast %cst_38 : f32 to vector<8x2x1xf32>
    %104 = arith.divf %102, %103 : vector<8x2x1xf32>
    %105 = vector.broadcast %104 : vector<8x2x1xf32> to vector<8x2x32xf32>
    %106 = arith.subf %96, %105 : vector<8x2x32xf32>
    %107 = arith.mulf %106, %106 : vector<8x2x32xf32>
    %cst_39 = arith.constant dense<0.000000e+00> : vector<8x2xf32>
    %108 = vector.multi_reduction <add>, %107, %cst_39 [2] : vector<8x2x32xf32> to vector<8x2xf32>
    %109 = vector.shape_cast %108 : vector<8x2xf32> to vector<8x2x1xf32>
    %cst_40 = arith.constant 3.200000e+01 : f32
    %110 = vector.broadcast %cst_40 : f32 to vector<8x2x1xf32>
    %111 = arith.divf %109, %110 : vector<8x2x1xf32>
    %112 = vector.broadcast %104 : vector<8x2x1xf32> to vector<8x2x32xf32>
    %113 = arith.subf %96, %112 : vector<8x2x32xf32>
    %cst_41 = arith.constant 9.99999974E-6 : f32
    %114 = vector.broadcast %cst_41 : f32 to vector<8x2x1xf32>
    %115 = arith.addf %111, %114 : vector<8x2x1xf32>
    %116 = math.rsqrt %115 : vector<8x2x1xf32>
    %117 = vector.broadcast %116 : vector<8x2x1xf32> to vector<8x2x32xf32>
    %118 = arith.mulf %113, %117 : vector<8x2x32xf32>
    %119 = vector.shape_cast %98 : vector<1x32xf32> to vector<1x1x32xf32>
    %120 = vector.broadcast %119 : vector<1x1x32xf32> to vector<8x2x32xf32>
    %121 = arith.mulf %118, %120 : vector<8x2x32xf32>
    %122 = vector.shape_cast %100 : vector<1x32xf32> to vector<1x1x32xf32>
    %123 = vector.broadcast %122 : vector<1x1x32xf32> to vector<8x2x32xf32>
    %124 = arith.addf %121, %123 : vector<8x2x32xf32>
    %125 = vector.shape_cast %124 : vector<8x2x32xf32> to vector<16x32xf32>
    %c0_42 = arith.constant 0 : index
    %c0_43 = arith.constant 0 : index
    %c0_44 = arith.constant 0 : index
    %126 = vector.load %arg12[%c0_42, %c0_43, %c0_44] : memref<1x32x32xf32, #tpu.memory_space<vmem>>, vector<1x32x32xf32>
    %127 = vector.shape_cast %126 : vector<1x32x32xf32> to vector<32x32xf32>
    %cst_45 = arith.constant dense<0.000000e+00> : vector<16x32xf32>
    %128 = tpu.matmul %125, %127, %cst_45 {dimension_numbers = #tpu.dot_dimension_numbers<[1], [0], [0], [1], [0, 0, 1, 1], [], []>} : vector<16x32xf32>, vector<32x32xf32>, vector<16x32xf32> -> vector<16x32xf32>
    %c0_46 = arith.constant 0 : index
    %c0_47 = arith.constant 0 : index
    %c0_48 = arith.constant 0 : index
    %129 = vector.load %arg13[%c0_46, %c0_47, %c0_48] : memref<1x1x32xf32, #tpu.memory_space<vmem>>, vector<1x1x32xf32>
    %130 = vector.shape_cast %129 : vector<1x1x32xf32> to vector<1x32xf32>
    %131 = vector.broadcast %130 : vector<1x32xf32> to vector<16x32xf32>
    %132 = arith.addf %128, %131 : vector<16x32xf32>
    %cst_49 = arith.constant 5.000000e-01 : f32
    %133 = vector.broadcast %cst_49 : f32 to vector<16x32xf32>
    %134 = arith.mulf %133, %132 : vector<16x32xf32>
    %cst_50 = arith.constant 4.471500e-02 : f32
    %135 = vector.broadcast %cst_50 : f32 to vector<16x32xf32>
    %136 = arith.mulf %135, %132 : vector<16x32xf32>
    %137 = arith.mulf %136, %132 : vector<16x32xf32>
    %138 = arith.mulf %137, %132 : vector<16x32xf32>
    %139 = arith.addf %132, %138 : vector<16x32xf32>
    %cst_51 = arith.constant 0.797884583 : f32
    %140 = vector.broadcast %cst_51 : f32 to vector<16x32xf32>
    %141 = arith.mulf %140, %139 : vector<16x32xf32>
    %142 = math.tanh %141 : vector<16x32xf32>
    %cst_52 = arith.constant 1.000000e+00 : f32
    %143 = vector.broadcast %cst_52 : f32 to vector<16x32xf32>
    %144 = arith.addf %143, %142 : vector<16x32xf32>
    %145 = arith.mulf %134, %144 : vector<16x32xf32>
    %c0_53 = arith.constant 0 : index
    %c0_54 = arith.constant 0 : index
    %c0_55 = arith.constant 0 : index
    %146 = vector.load %arg14[%c0_53, %c0_54, %c0_55] : memref<1x32x32xf32, #tpu.memory_space<vmem>>, vector<1x32x32xf32>
    %147 = vector.shape_cast %146 : vector<1x32x32xf32> to vector<32x32xf32>
    %cst_56 = arith.constant dense<0.000000e+00> : vector<16x32xf32>
    %148 = tpu.matmul %145, %147, %cst_56 {dimension_numbers = #tpu.dot_dimension_numbers<[1], [0], [0], [1], [0, 0, 1, 1], [], []>} : vector<16x32xf32>, vector<32x32xf32>, vector<16x32xf32> -> vector<16x32xf32>
    %c0_57 = arith.constant 0 : index
    %c0_58 = arith.constant 0 : index
    %c0_59 = arith.constant 0 : index
    %149 = vector.load %arg15[%c0_57, %c0_58, %c0_59] : memref<1x1x32xf32, #tpu.memory_space<vmem>>, vector<1x1x32xf32>
    %150 = vector.shape_cast %149 : vector<1x1x32xf32> to vector<1x32xf32>
    %151 = vector.broadcast %150 : vector<1x32xf32> to vector<16x32xf32>
    %152 = arith.addf %148, %151 : vector<16x32xf32>
    %153 = vector.shape_cast %152 : vector<16x32xf32> to vector<8x2x32xf32>
    %154 = arith.addf %96, %153 : vector<8x2x32xf32>
    %c0_60 = arith.constant 0 : index
    %c0_61 = arith.constant 0 : index
    %c0_62 = arith.constant 0 : index
    %155 = vector.load %arg18[%c0_60, %c0_61, %c0_62] : memref<8x2x32xf32, #tpu.memory_space<vmem>>, vector<8x2x32xf32>
    tpu.vector_store %arg18[%c0_60, %c0_61, %c0_62], %154 {strides = array<i32>} : memref<8x2x32xf32, #tpu.memory_space<vmem>>, vector<8x2x32xf32>,
    %c1_i32 = arith.constant 1 : i32
    %156 = arith.cmpi eq, %arg1, %c1_i32 : i32
    %157 = arith.extui %156 : i1 to i32
    %c0_i32_63 = arith.constant 0 : i32
    %158 = arith.cmpi ne, %157, %c0_i32_63 : i32
    scf.if %158 {
      %c0_64 = arith.constant 0 : index
      %c0_65 = arith.constant 0 : index
      %c0_66 = arith.constant 0 : index
      %159 = vector.load %arg16[%c0_64, %c0_65, %c0_66] : memref<1x1x32xf32, #tpu.memory_space<vmem>>, vector<1x1x32xf32>
      %c0_67 = arith.constant 0 : index
      %c0_68 = arith.constant 0 : index
      %c0_69 = arith.constant 0 : index
      %160 = vector.load %arg17[%c0_67, %c0_68, %c0_69] : memref<1x1x32xf32, #tpu.memory_space<vmem>>, vector<1x1x32xf32>
      %cst_70 = arith.constant dense<0.000000e+00> : vector<8x2xf32>
      %161 = vector.multi_reduction <add>, %154, %cst_70 [2] : vector<8x2x32xf32> to vector<8x2xf32>
      %162 = vector.shape_cast %161 : vector<8x2xf32> to vector<8x2x1xf32>
      %cst_71 = arith.constant 3.200000e+01 : f32
      %163 = vector.broadcast %cst_71 : f32 to vector<8x2x1xf32>
      %164 = arith.divf %162, %163 : vector<8x2x1xf32>
      %165 = vector.broadcast %164 : vector<8x2x1xf32> to vector<8x2x32xf32>
      %166 = arith.subf %154, %165 : vector<8x2x32xf32>
      %167 = arith.mulf %166, %166 : vector<8x2x32xf32>
      %cst_72 = arith.constant dense<0.000000e+00> : vector<8x2xf32>
      %168 = vector.multi_reduction <add>, %167, %cst_72 [2] : vector<8x2x32xf32> to vector<8x2xf32>
      %169 = vector.shape_cast %168 : vector<8x2xf32> to vector<8x2x1xf32>
      %cst_73 = arith.constant 3.200000e+01 : f32
      %170 = vector.broadcast %cst_73 : f32 to vector<8x2x1xf32>
      %171 = arith.divf %169, %170 : vector<8x2x1xf32>
      %172 = vector.broadcast %164 : vector<8x2x1xf32> to vector<8x2x32xf32>
      %173 = arith.subf %154, %172 : vector<8x2x32xf32>
      %cst_74 = arith.constant 9.99999974E-6 : f32
      %174 = vector.broadcast %cst_74 : f32 to vector<8x2x1xf32>
      %175 = arith.addf %171, %174 : vector<8x2x1xf32>
      %176 = math.rsqrt %175 : vector<8x2x1xf32>
      %177 = vector.broadcast %176 : vector<8x2x1xf32> to vector<8x2x32xf32>
      %178 = arith.mulf %173, %177 : vector<8x2x32xf32>
      %179 = vector.broadcast %159 : vector<1x1x32xf32> to vector<8x2x32xf32>
      %180 = arith.mulf %178, %179 : vector<8x2x32xf32>
      %181 = vector.broadcast %160 : vector<1x1x32xf32> to vector<8x2x32xf32>
      %182 = arith.addf %180, %181 : vector<8x2x32xf32>
      %c0_75 = arith.constant 0 : index
      %c0_76 = arith.constant 0 : index
      %c0_77 = arith.constant 0 : index
      %183 = vector.load %arg18[%c0_75, %c0_76, %c0_77] : memref<8x2x32xf32, #tpu.memory_space<vmem>>, vector<8x2x32xf32>
      tpu.vector_store %arg18[%c0_75, %c0_76, %c0_77], %182 {strides = array<i32>} : memref<8x2x32xf32, #tpu.memory_space<vmem>>, vector<8x2x32xf32>,
    } else {
    }
    return
  }
  func.func @transform_0(%arg0: i32, %arg1: i32) -> (i32, i32, i32) {
    %c0_i32 = arith.constant 0 : i32
    %c0_i32_0 = arith.constant 0 : i32
    %c0_i32_1 = arith.constant 0 : i32
    return %arg0, %c0_i32, %c0_i32_0 : i32, i32, i32
  }
  func.func @transform_1(%arg0: i32, %arg1: i32) -> (i32, i32, i32) {
    %c0_i32 = arith.constant 0 : i32
    %c0_i32_0 = arith.constant 0 : i32
    %c0_i32_1 = arith.constant 0 : i32
    return %arg0, %c0_i32, %c0_i32_0 : i32, i32, i32
  }
  func.func @transform_2(%arg0: i32, %arg1: i32) -> (i32, i32, i32) {
    %c0_i32 = arith.constant 0 : i32
    %c0_i32_0 = arith.constant 0 : i32
    %c0_i32_1 = arith.constant 0 : i32
    return %arg1, %c0_i32, %c0_i32_0 : i32, i32, i32
  }
  func.func @transform_3(%arg0: i32, %arg1: i32) -> (i32, i32, i32) {
    %c0_i32 = arith.constant 0 : i32
    %c0_i32_0 = arith.constant 0 : i32
    %c0_i32_1 = arith.constant 0 : i32
    return %arg1, %c0_i32, %c0_i32_0 : i32, i32, i32
  }
  func.func @transform_4(%arg0: i32, %arg1: i32) -> (i32, i32, i32) {
    %c0_i32 = arith.constant 0 : i32
    %c0_i32_0 = arith.constant 0 : i32
    %c0_i32_1 = arith.constant 0 : i32
    return %arg1, %c0_i32, %c0_i32_0 : i32, i32, i32
  }
  func.func @transform_5(%arg0: i32, %arg1: i32) -> (i32, i32, i32) {
    %c0_i32 = arith.constant 0 : i32
    %c0_i32_0 = arith.constant 0 : i32
    %c0_i32_1 = arith.constant 0 : i32
    return %arg1, %c0_i32, %c0_i32_0 : i32, i32, i32
  }
  func.func @transform_6(%arg0: i32, %arg1: i32) -> (i32, i32, i32) {
    %c0_i32 = arith.constant 0 : i32
    %c0_i32_0 = arith.constant 0 : i32
    %c0_i32_1 = arith.constant 0 : i32
    return %arg1, %c0_i32, %c0_i32_0 : i32, i32, i32
  }
  func.func @transform_7(%arg0: i32, %arg1: i32) -> (i32, i32, i32) {
    %c0_i32 = arith.constant 0 : i32
    %c0_i32_0 = arith.constant 0 : i32
    %c0_i32_1 = arith.constant 0 : i32
    return %arg1, %c0_i32, %c0_i32_0 : i32, i32, i32
  }
  func.func @transform_8(%arg0: i32, %arg1: i32) -> (i32, i32, i32) {
    %c0_i32 = arith.constant 0 : i32
    %c0_i32_0 = arith.constant 0 : i32
    %c0_i32_1 = arith.constant 0 : i32
    return %arg1, %c0_i32, %c0_i32_0 : i32, i32, i32
  }
  func.func @transform_9(%arg0: i32, %arg1: i32) -> (i32, i32, i32) {
    %c0_i32 = arith.constant 0 : i32
    %c0_i32_0 = arith.constant 0 : i32
    %c0_i32_1 = arith.constant 0 : i32
    return %arg1, %c0_i32, %c0_i32_0 : i32, i32, i32
  }
  func.func @transform_10(%arg0: i32, %arg1: i32) -> (i32, i32, i32) {
    %c0_i32 = arith.constant 0 : i32
    %c0_i32_0 = arith.constant 0 : i32
    %c0_i32_1 = arith.constant 0 : i32
    return %arg1, %c0_i32, %c0_i32_0 : i32, i32, i32
  }
  func.func @transform_11(%arg0: i32, %arg1: i32) -> (i32, i32, i32) {
    %c0_i32 = arith.constant 0 : i32
    %c0_i32_0 = arith.constant 0 : i32
    %c0_i32_1 = arith.constant 0 : i32
    return %arg1, %c0_i32, %c0_i32_0 : i32, i32, i32
  }
  func.func @transform_12(%arg0: i32, %arg1: i32) -> (i32, i32, i32) {
    %c0_i32 = arith.constant 0 : i32
    %c0_i32_0 = arith.constant 0 : i32
    %c0_i32_1 = arith.constant 0 : i32
    return %arg1, %c0_i32, %c0_i32_0 : i32, i32, i32
  }
  func.func @transform_13(%arg0: i32, %arg1: i32) -> (i32, i32, i32) {
    %c0_i32 = arith.constant 0 : i32
    %c0_i32_0 = arith.constant 0 : i32
    %c0_i32_1 = arith.constant 0 : i32
    return %arg1, %c0_i32, %c0_i32_0 : i32, i32, i32
  }
  func.func @transform_14(%arg0: i32, %arg1: i32) -> (i32, i32, i32) {
    %c0_i32 = arith.constant 0 : i32
    %c0_i32_0 = arith.constant 0 : i32
    %c0_i32_1 = arith.constant 0 : i32
    %c0_i32_2 = arith.constant 0 : i32
    return %c0_i32, %c0_i32_0, %c0_i32_1 : i32, i32, i32
  }
  func.func @transform_15(%arg0: i32, %arg1: i32) -> (i32, i32, i32) {
    %c0_i32 = arith.constant 0 : i32
    %c0_i32_0 = arith.constant 0 : i32
    %c0_i32_1 = arith.constant 0 : i32
    %c0_i32_2 = arith.constant 0 : i32
    return %c0_i32, %c0_i32_0, %c0_i32_1 : i32, i32, i32
  }
  func.func @transform_16(%arg0: i32, %arg1: i32) -> (i32, i32, i32) {
    %c0_i32 = arith.constant 0 : i32
    %c0_i32_0 = arith.constant 0 : i32
    %c0_i32_1 = arith.constant 0 : i32
    return %arg0, %c0_i32, %c0_i32_0 : i32, i32, i32
  }
}

</mosaic_0001>

<llo_original>
// kernel: tpu_custom_call.1
$region0: #{tpu_custom_call.1}
  #allocation0 [shape = 'u32[]', space=smem, size = 0x4, offset = 0x4, fixed_abs, tag = 'smem constant byte address 0x4 - core index']
  #allocation1 [shape = 'u32[72,128]{1,0:T(1,128)}', space=vmem, size = 0x9000, scoped, tag = 'internal scratch']
  %s0 = inlined_call_operand.hbm [shape: f32[8,2,32], index: 0, kind: input, shape index: {}]
  %s1 = inlined_call_operand.hbm [shape: f32[8,1,32], index: 1, kind: input, shape index: {}]
  %s2 = inlined_call_operand.hbm [shape: f32[2,1,32], index: 2, kind: input, shape index: {}]
  %s3 = inlined_call_operand.vmem [shape: f32[2,1,32], index: 3, kind: input, shape index: {}]
  %s4 = inlined_call_operand.hbm [shape: f32[2,32,96], index: 4, kind: input, shape index: {}]
  %s5 = inlined_call_operand.vmem [shape: f32[2,1,96], index: 5, kind: input, shape index: {}]
  %s6 = inlined_call_operand.hbm [shape: f32[2,32,32], index: 6, kind: input, shape index: {}]
  %s7 = inlined_call_operand.vmem [shape: f32[2,1,32], index: 7, kind: input, shape index: {}]
  %s8 = inlined_call_operand.hbm [shape: f32[2,1,32], index: 8, kind: input, shape index: {}]
  %s9 = inlined_call_operand.vmem [shape: f32[2,1,32], index: 9, kind: input, shape index: {}]
  %s10 = inlined_call_operand.hbm [shape: f32[2,32,32], index: 10, kind: input, shape index: {}]
  %s11 = inlined_call_operand.vmem [shape: f32[2,1,32], index: 11, kind: input, shape index: {}]
  %s12 = inlined_call_operand.hbm [shape: f32[2,32,32], index: 12, kind: input, shape index: {}]
  %s13 = inlined_call_operand.vmem [shape: f32[2,1,32], index: 13, kind: input, shape index: {}]
  %s14 = inlined_call_operand.vmem [shape: f32[1,1,32], index: 14, kind: input, shape index: {}]
  %s15 = inlined_call_operand.vmem [shape: f32[1,1,32], index: 15, kind: input, shape index: {}]
  %s16 = inlined_call_operand.hbm [shape: f32[8,2,32], index: 16, kind: output, shape index: {}]
  %s17 = sld [smem:[#allocation0]]
  $region137: #{tpu_custom_call.1} parent=0
    _
  %s19 = ssub.s32 1, %s17
  %s20 = scalar_select 0, %s19, %s17
  $region1: #{tpu_custom_call.1} parent=0
    #allocation2 [shape = 'u8[8192]{0}', space=vmem, size = 0x2000, scoped, tag = 'input window, operand 0, single buffered']
    #allocation3 [shape = 's32[2]{0}', space=sflag, size = 0x8, scoped, tag = 'scoped memory for tpu_custom_call.1']
    #allocation4 [shape = 's32[2]{0}', space=sflag, size = 0x8, scoped, tag = 'scoped memory for tpu_custom_call.1']
    #allocation5 [shape = 'u8[4096]{0}', space=vmem, size = 0x1000, scoped, tag = 'input window, operand 1, single buffered']
    #allocation6 [shape = 's32[1]{0}', space=sflag, size = 0x4, scoped, tag = 'scoped memory for tpu_custom_call.1']
    #allocation7 [shape = 'u8[1024]{0}', space=vmem, size = 0x400, scoped, tag = 'input window, operand 2']
    #allocation8 [shape = 'u8[32768]{0}', space=vmem, size = 0x8000, scoped, tag = 'input window, operand 4']
    #allocation9 [shape = 'u8[32768]{0}', space=vmem, size = 0x8000, scoped, tag = 'input window, operand 6']
    #allocation10 [shape = 'u8[1024]{0}', space=vmem, size = 0x400, scoped, tag = 'input window, operand 8']
    #allocation11 [shape = 'u8[32768]{0}', space=vmem, size = 0x8000, scoped, tag = 'input window, operand 10']
    #allocation12 [shape = 'u8[32768]{0}', space=vmem, size = 0x8000, scoped, tag = 'input window, operand 12']
    #allocation13 [shape = 'u8[8192]{0}', space=vmem, size = 0x2000, scoped, tag = 'output window, operand 0, single buffered']
    %21 = vsyncpa [#allocation3], 0
    %22 = vsyncpa [#allocation6], 0
    %23 = vsyncpa [#allocation4], 0
    loop: start=0, step=1, limit=4
    $region2: #{tpu_custom_call.1} parent=1 // loop_pre_header
      _
    $region3: #{tpu_custom_call.1} parent=1 // loop_header
      %s25 = sphi 0, %s29
      %p26 = scmp.ge.s32.totalorder %s25, 4
      %s32 = sphi 0, %s44
      %s33 = sphi 0, %s40
      %s34 = sphi 0, %s32
      %s35 = sphi 0, %s33
      %s36 = sphi 0, %s34
      %s37 = sphi 0, %s35
      %s47 = sphi 0, %s49
      %s50 = sphi 0, %s47
      %s51 = sphi 0, %s50
      %s67 = sphi 0, %s51
      %s73 = sphi 0, %s75
      %s76 = sphi 0, %s73
      %s77 = sphi 0, %s76
      %s93 = sphi 0, %s77
      %s99 = sphi 0, %s101
      %s102 = sphi 0, %s99
      %s103 = sphi 0, %s102
      %s119 = sphi 0, %s103
      %s125 = sphi 0, %s127
      %s128 = sphi 0, %s125
      %s129 = sphi 0, %s128
      %s145 = sphi 0, %s129
      %s151 = sphi 0, %s153
      %s154 = sphi 0, %s151
      %s155 = sphi 0, %s154
      %s171 = sphi 0, %s155
      %s177 = sphi 0, %s179
      %s180 = sphi 0, %s177
      %s181 = sphi 0, %s180
      %s197 = sphi 0, %s181
      %s203 = sphi 0, %s205
      %s206 = sphi 0, %s203
      %s207 = sphi 0, %s206
      %s223 = sphi 0, %s207
      %s229 = sphi 0, %s231
      %s232 = sphi 0, %s229
      %s233 = sphi 0, %s232
      %s249 = sphi 0, %s233
      %s255 = sphi 0, %s257
      %s258 = sphi 0, %s255
      %s259 = sphi 0, %s258
      %s275 = sphi 0, %s259
      %s281 = sphi 0, %s283
      %s284 = sphi 0, %s281
      %s285 = sphi 0, %s284
      %s301 = sphi 0, %s285
      %s307 = sphi 0, %s309
      %s310 = sphi 0, %s307
      %s311 = sphi 0, %s310
      %s327 = sphi 0, %s311
      %s333 = sphi 0, %s335
      %s336 = sphi 0, %s333
      %s337 = sphi 0, %s336
      %s353 = sphi 0, %s337
      %s359 = sphi 0, %s361
      %s362 = sphi 0, %s359
      %s363 = sphi 0, %s362
      %s379 = sphi 0, %s363
      %s385 = sphi 0, %s387
      %s388 = sphi 0, %s385
      %s389 = sphi 0, %s388
      %s405 = sphi 0, %s389
      %s409 = sphi 0, %s409
      %s411 = sphi 0, %s409
      %s412 = sphi 0, %s411
      %s426 = sphi 0, %s412
      %s430 = sphi 0, %s430
      %s432 = sphi 0, %s430
      %s433 = sphi 0, %s432
      %s447 = sphi 0, %s433
      %s453 = sphi 0, %s455
      %s456 = sphi 0, %s453
      %s457 = sphi 0, %s456
      %s473 = sphi 0, %s457
    $region4: #{tpu_custom_call.1} parent=1 // loop_header_branch
      %28 = sbr.rel (%p26) target = $region8
    $region5: #{tpu_custom_call.1} parent=1 // loop_body
      %s30 = ssub.s32 %s25, 1
      %s31 = ssub.s32 %s25, 2
      %s38 = sadd.s32 1, %s33
      %p39 = scmp.ge.s32.totalorder %s38, 2
      %s40 = scalar_select %p39, 0, %s38
      %s41 = sadd.s32 1, %s32
      %s42 = scalar_select %p39, %s41, %s32
      %p43 = scmp.ge.s32.totalorder %s42, 1
      %s44 = scalar_select %p43, 0, %s42
      %s45 = ssub.s32 %s32, %s44
      %p46 = scmp.eq.s32.totalorder %s45, 0
      %s48 = sadd.s32 %s47, 1
      %s49 = scalar_select %p46, %s47, %s48
      %p52 = pneg %p46
      %p53 = scmp.eq.s32.totalorder %s25, 1
      %p54 = por %p52, %p53
      %p55 = scmp.ne.s32.totalorder %s47, %s50
      %p56 = scmp.eq.s32.totalorder %s25, 0
      %p57 = por %p55, %p56
      %p58 = scmp.ne.s32.totalorder %s47, %s50
      %p59 = scmp.eq.s32.totalorder %s30, 1
      %p60 = por %p58, %p59
      %p61 = scmp.ne.s32.totalorder %s50, %s51
      %p62 = scmp.eq.s32.totalorder %s30, 0
      %p63 = por %p61, %p62
      %p64 = scmp.ne.s32.totalorder %s50, %s51
      %p65 = scmp.eq.s32.totalorder %s31, 1
      %p66 = por %p64, %p65
      %p68 = scmp.ne.s32.totalorder %s51, %s67
      %p69 = scmp.eq.s32.totalorder %s31, 0
      %p70 = por %p68, %p69
      %s71 = ssub.s32 %s32, %s44
      %p72 = scmp.eq.s32.totalorder %s71, 0
      %s74 = sadd.s32 %s73, 1
      %s75 = scalar_select %p72, %s73, %s74
      %p78 = pneg %p72
      %p79 = scmp.eq.s32.totalorder %s25, 1
      %p80 = por %p78, %p79
      %p81 = scmp.ne.s32.totalorder %s73, %s76
      %p82 = scmp.eq.s32.totalorder %s25, 0
      %p83 = por %p81, %p82
      %p84 = scmp.ne.s32.totalorder %s73, %s76
      %p85 = scmp.eq.s32.totalorder %s30, 1
      %p86 = por %p84, %p85
      %p87 = scmp.ne.s32.totalorder %s76, %s77
      %p88 = scmp.eq.s32.totalorder %s30, 0
      %p89 = por %p87, %p88
      %p90 = scmp.ne.s32.totalorder %s76, %s77
      %p91 = scmp.eq.s32.totalorder %s31, 1
      %p92 = por %p90, %p91
      %p94 = scmp.ne.s32.totalorder %s77, %s93
      %p95 = scmp.eq.s32.totalorder %s31, 0
      %p96 = por %p94, %p95
      %s97 = ssub.s32 %s33, %s40
      %p98 = scmp.eq.s32.totalorder %s97, 0
      %s100 = sadd.s32 %s99, 1
      %s101 = scalar_select %p98, %s99, %s100
      %p104 = pneg %p98
      %p105 = scmp.eq.s32.totalorder %s25, 1
      %p106 = por %p104, %p105
      %p107 = scmp.ne.s32.totalorder %s99, %s102
      %p108 = scmp.eq.s32.totalorder %s25, 0
      %p109 = por %p107, %p108
      %p110 = scmp.ne.s32.totalorder %s99, %s102
      %p111 = scmp.eq.s32.totalorder %s30, 1
      %p112 = por %p110, %p111
      %p113 = scmp.ne.s32.totalorder %s102, %s103
      %p114 = scmp.eq.s32.totalorder %s30, 0
      %p115 = por %p113, %p114
      %p116 = scmp.ne.s32.totalorder %s102, %s103
      %p117 = scmp.eq.s32.totalorder %s31, 1
      %p118 = por %p116, %p117
      %p120 = scmp.ne.s32.totalorder %s103, %s119
      %p121 = scmp.eq.s32.totalorder %s31, 0
      %p122 = por %p120, %p121
      %s123 = ssub.s32 %s33, %s40
      %p124 = scmp.eq.s32.totalorder %s123, 0
      %s126 = sadd.s32 %s125, 1
      %s127 = scalar_select %p124, %s125, %s126
      %p130 = pneg %p124
      %p131 = scmp.eq.s32.totalorder %s25, 1
      %p132 = por %p130, %p131
      %p133 = scmp.ne.s32.totalorder %s125, %s128
      %p134 = scmp.eq.s32.totalorder %s25, 0
      %p135 = por %p133, %p134
      %p136 = scmp.ne.s32.totalorder %s125, %s128
      %p137 = scmp.eq.s32.totalorder %s30, 1
      %p138 = por %p136, %p137
      %p139 = scmp.ne.s32.totalorder %s128, %s129
      %p140 = scmp.eq.s32.totalorder %s30, 0
      %p141 = por %p139, %p140
      %p142 = scmp.ne.s32.totalorder %s128, %s129
      %p143 = scmp.eq.s32.totalorder %s31, 1
      %p144 = por %p142, %p143
      %p146 = scmp.ne.s32.totalorder %s129, %s145
      %p147 = scmp.eq.s32.totalorder %s31, 0
      %p148 = por %p146, %p147
      %s149 = ssub.s32 %s33, %s40
      %p150 = scmp.eq.s32.totalorder %s149, 0
      %s152 = sadd.s32 %s151, 1
      %s153 = scalar_select %p150, %s151, %s152
      %p156 = pneg %p150
      %p157 = scmp.eq.s32.totalorder %s25, 1
      %p158 = por %p156, %p157
      %p159 = scmp.ne.s32.totalorder %s151, %s154
      %p160 = scmp.eq.s32.totalorder %s25, 0
      %p161 = por %p159, %p160
      %p162 = scmp.ne.s32.totalorder %s151, %s154
      %p163 = scmp.eq.s32.totalorder %s30, 1
      %p164 = por %p162, %p163
      %p165 = scmp.ne.s32.totalorder %s154, %s155
      %p166 = scmp.eq.s32.totalorder %s30, 0
      %p167 = por %p165, %p166
      %p168 = scmp.ne.s32.totalorder %s154, %s155
      %p169 = scmp.eq.s32.totalorder %s31, 1
      %p170 = por %p168, %p169
      %p172 = scmp.ne.s32.totalorder %s155, %s171
      %p173 = scmp.eq.s32.totalorder %s31, 0
      %p174 = por %p172, %p173
      %s175 = ssub.s32 %s33, %s40
      %p176 = scmp.eq.s32.totalorder %s175, 0
      %s178 = sadd.s32 %s177, 1
      %s179 = scalar_select %p176, %s177, %s178
      %p182 = pneg %p176
      %p183 = scmp.eq.s32.totalorder %s25, 1
      %p184 = por %p182, %p183
      %p185 = scmp.ne.s32.totalorder %s177, %s180
      %p186 = scmp.eq.s32.totalorder %s25, 0
      %p187 = por %p185, %p186
      %p188 = scmp.ne.s32.totalorder %s177, %s180
      %p189 = scmp.eq.s32.totalorder %s30, 1
      %p190 = por %p188, %p189
      %p191 = scmp.ne.s32.totalorder %s180, %s181
      %p192 = scmp.eq.s32.totalorder %s30, 0
      %p193 = por %p191, %p192
      %p194 = scmp.ne.s32.totalorder %s180, %s181
      %p195 = scmp.eq.s32.totalorder %s31, 1
      %p196 = por %p194, %p195
      %p198 = scmp.ne.s32.totalorder %s181, %s197
      %p199 = scmp.eq.s32.totalorder %s31, 0
      %p200 = por %p198, %p199
      %s201 = ssub.s32 %s33, %s40
      %p202 = scmp.eq.s32.totalorder %s201, 0
      %s204 = sadd.s32 %s203, 1
      %s205 = scalar_select %p202, %s203, %s204
      %p208 = pneg %p202
      %p209 = scmp.eq.s32.totalorder %s25, 1
      %p210 = por %p208, %p209
      %p211 = scmp.ne.s32.totalorder %s203, %s206
      %p212 = scmp.eq.s32.totalorder %s25, 0
      %p213 = por %p211, %p212
      %p214 = scmp.ne.s32.totalorder %s203, %s206
      %p215 = scmp.eq.s32.totalorder %s30, 1
      %p216 = por %p214, %p215
      %p217 = scmp.ne.s32.totalorder %s206, %s207
      %p218 = scmp.eq.s32.totalorder %s30, 0
      %p219 = por %p217, %p218
      %p220 = scmp.ne.s32.totalorder %s206, %s207
      %p221 = scmp.eq.s32.totalorder %s31, 1
      %p222 = por %p220, %p221
      %p224 = scmp.ne.s32.totalorder %s207, %s223
      %p225 = scmp.eq.s32.totalorder %s31, 0
      %p226 = por %p224, %p225
      %s227 = ssub.s32 %s33, %s40
      %p228 = scmp.eq.s32.totalorder %s227, 0
      %s230 = sadd.s32 %s229, 1
      %s231 = scalar_select %p228, %s229, %s230
      %p234 = pneg %p228
      %p235 = scmp.eq.s32.totalorder %s25, 1
      %p236 = por %p234, %p235
      %p237 = scmp.ne.s32.totalorder %s229, %s232
      %p238 = scmp.eq.s32.totalorder %s25, 0
      %p239 = por %p237, %p238
      %p240 = scmp.ne.s32.totalorder %s229, %s232
      %p241 = scmp.eq.s32.totalorder %s30, 1
      %p242 = por %p240, %p241
      %p243 = scmp.ne.s32.totalorder %s232, %s233
      %p244 = scmp.eq.s32.totalorder %s30, 0
      %p245 = por %p243, %p244
      %p246 = scmp.ne.s32.totalorder %s232, %s233
      %p247 = scmp.eq.s32.totalorder %s31, 1
      %p248 = por %p246, %p247
      %p250 = scmp.ne.s32.totalorder %s233, %s249
      %p251 = scmp.eq.s32.totalorder %s31, 0
      %p252 = por %p250, %p251
      %s253 = ssub.s32 %s33, %s40
      %p254 = scmp.eq.s32.totalorder %s253, 0
      %s256 = sadd.s32 %s255, 1
      %s257 = scalar_select %p254, %s255, %s256
      %p260 = pneg %p254
      %p261 = scmp.eq.s32.totalorder %s25, 1
      %p262 = por %p260, %p261
      %p263 = scmp.ne.s32.totalorder %s255, %s258
      %p264 = scmp.eq.s32.totalorder %s25, 0
      %p265 = por %p263, %p264
      %p266 = scmp.ne.s32.totalorder %s255, %s258
      %p267 = scmp.eq.s32.totalorder %s30, 1
      %p268 = por %p266, %p267
      %p269 = scmp.ne.s32.totalorder %s258, %s259
      %p270 = scmp.eq.s32.totalorder %s30, 0
      %p271 = por %p269, %p270
      %p272 = scmp.ne.s32.totalorder %s258, %s259
      %p273 = scmp.eq.s32.totalorder %s31, 1
      %p274 = por %p272, %p273
      %p276 = scmp.ne.s32.totalorder %s259, %s275
      %p277 = scmp.eq.s32.totalorder %s31, 0
      %p278 = por %p276, %p277
      %s279 = ssub.s32 %s33, %s40
      %p280 = scmp.eq.s32.totalorder %s279, 0
      %s282 = sadd.s32 %s281, 1
      %s283 = scalar_select %p280, %s281, %s282
      %p286 = pneg %p280
      %p287 = scmp.eq.s32.totalorder %s25, 1
      %p288 = por %p286, %p287
      %p289 = scmp.ne.s32.totalorder %s281, %s284
      %p290 = scmp.eq.s32.totalorder %s25, 0
      %p291 = por %p289, %p290
      %p292 = scmp.ne.s32.totalorder %s281, %s284
      %p293 = scmp.eq.s32.totalorder %s30, 1
      %p294 = por %p292, %p293
      %p295 = scmp.ne.s32.totalorder %s284, %s285
      %p296 = scmp.eq.s32.totalorder %s30, 0
      %p297 = por %p295, %p296
      %p298 = scmp.ne.s32.totalorder %s284, %s285
      %p299 = scmp.eq.s32.totalorder %s31, 1
      %p300 = por %p298, %p299
      %p302 = scmp.ne.s32.totalorder %s285, %s301
      %p303 = scmp.eq.s32.totalorder %s31, 0
      %p304 = por %p302, %p303
      %s305 = ssub.s32 %s33, %s40
      %p306 = scmp.eq.s32.totalorder %s305, 0
      %s308 = sadd.s32 %s307, 1
      %s309 = scalar_select %p306, %s307, %s308
      %p312 = pneg %p306
      %p313 = scmp.eq.s32.totalorder %s25, 1
      %p314 = por %p312, %p313
      %p315 = scmp.ne.s32.totalorder %s307, %s310
      %p316 = scmp.eq.s32.totalorder %s25, 0
      %p317 = por %p315, %p316
      %p318 = scmp.ne.s32.totalorder %s307, %s310
      %p319 = scmp.eq.s32.totalorder %s30, 1
      %p320 = por %p318, %p319
      %p321 = scmp.ne.s32.totalorder %s310, %s311
      %p322 = scmp.eq.s32.totalorder %s30, 0
      %p323 = por %p321, %p322
      %p324 = scmp.ne.s32.totalorder %s310, %s311
      %p325 = scmp.eq.s32.totalorder %s31, 1
      %p326 = por %p324, %p325
      %p328 = scmp.ne.s32.totalorder %s311, %s327
      %p329 = scmp.eq.s32.totalorder %s31, 0
      %p330 = por %p328, %p329
      %s331 = ssub.s32 %s33, %s40
      %p332 = scmp.eq.s32.totalorder %s331, 0
      %s334 = sadd.s32 %s333, 1
      %s335 = scalar_select %p332, %s333, %s334
      %p338 = pneg %p332
      %p339 = scmp.eq.s32.totalorder %s25, 1
      %p340 = por %p338, %p339
      %p341 = scmp.ne.s32.totalorder %s333, %s336
      %p342 = scmp.eq.s32.totalorder %s25, 0
      %p343 = por %p341, %p342
      %p344 = scmp.ne.s32.totalorder %s333, %s336
      %p345 = scmp.eq.s32.totalorder %s30, 1
      %p346 = por %p344, %p345
      %p347 = scmp.ne.s32.totalorder %s336, %s337
      %p348 = scmp.eq.s32.totalorder %s30, 0
      %p349 = por %p347, %p348
      %p350 = scmp.ne.s32.totalorder %s336, %s337
      %p351 = scmp.eq.s32.totalorder %s31, 1
      %p352 = por %p350, %p351
      %p354 = scmp.ne.s32.totalorder %s337, %s353
      %p355 = scmp.eq.s32.totalorder %s31, 0
      %p356 = por %p354, %p355
      %s357 = ssub.s32 %s33, %s40
      %p358 = scmp.eq.s32.totalorder %s357, 0
      %s360 = sadd.s32 %s359, 1
      %s361 = scalar_select %p358, %s359, %s360
      %p364 = pneg %p358
      %p365 = scmp.eq.s32.totalorder %s25, 1
      %p366 = por %p364, %p365
      %p367 = scmp.ne.s32.totalorder %s359, %s362
      %p368 = scmp.eq.s32.totalorder %s25, 0
      %p369 = por %p367, %p368
      %p370 = scmp.ne.s32.totalorder %s359, %s362
      %p371 = scmp.eq.s32.totalorder %s30, 1
      %p372 = por %p370, %p371
      %p373 = scmp.ne.s32.totalorder %s362, %s363
      %p374 = scmp.eq.s32.totalorder %s30, 0
      %p375 = por %p373, %p374
      %p376 = scmp.ne.s32.totalorder %s362, %s363
      %p377 = scmp.eq.s32.totalorder %s31, 1
      %p378 = por %p376, %p377
      %p380 = scmp.ne.s32.totalorder %s363, %s379
      %p381 = scmp.eq.s32.totalorder %s31, 0
      %p382 = por %p380, %p381
      %s383 = ssub.s32 %s33, %s40
      %p384 = scmp.eq.s32.totalorder %s383, 0
      %s386 = sadd.s32 %s385, 1
      %s387 = scalar_select %p384, %s385, %s386
      %p390 = pneg %p384
      %p391 = scmp.eq.s32.totalorder %s25, 1
      %p392 = por %p390, %p391
      %p393 = scmp.ne.s32.totalorder %s385, %s388
      %p394 = scmp.eq.s32.totalorder %s25, 0
      %p395 = por %p393, %p394
      %p396 = scmp.ne.s32.totalorder %s385, %s388
      %p397 = scmp.eq.s32.totalorder %s30, 1
      %p398 = por %p396, %p397
      %p399 = scmp.ne.s32.totalorder %s388, %s389
      %p400 = scmp.eq.s32.totalorder %s30, 0
      %p401 = por %p399, %p400
      %p402 = scmp.ne.s32.totalorder %s388, %s389
      %p403 = scmp.eq.s32.totalorder %s31, 1
      %p404 = por %p402, %p403
      %p406 = scmp.ne.s32.totalorder %s389, %s405
      %p407 = scmp.eq.s32.totalorder %s31, 0
      %p408 = por %p406, %p407
      %s410 = sadd.s32 %s409, 1
      %p413 = scmp.eq.s32.totalorder %s25, 1
      %p414 = scmp.ne.s32.totalorder %s409, %s411
      %p415 = scmp.eq.s32.totalorder %s25, 0
      %p416 = por %p414, %p415
      %p417 = scmp.ne.s32.totalorder %s409, %s411
      %p418 = scmp.eq.s32.totalorder %s30, 1
      %p419 = por %p417, %p418
      %p420 = scmp.ne.s32.totalorder %s411, %s412
      %p421 = scmp.eq.s32.totalorder %s30, 0
      %p422 = por %p420, %p421
      %p423 = scmp.ne.s32.totalorder %s411, %s412
      %p424 = scmp.eq.s32.totalorder %s31, 1
      %p425 = por %p423, %p424
      %p427 = scmp.ne.s32.totalorder %s412, %s426
      %p428 = scmp.eq.s32.totalorder %s31, 0
      %p429 = por %p427, %p428
      %s431 = sadd.s32 %s430, 1
      %p434 = scmp.eq.s32.totalorder %s25, 1
      %p435 = scmp.ne.s32.totalorder %s430, %s432
      %p436 = scmp.eq.s32.totalorder %s25, 0
      %p437 = por %p435, %p436
      %p438 = scmp.ne.s32.totalorder %s430, %s432
      %p439 = scmp.eq.s32.totalorder %s30, 1
      %p440 = por %p438, %p439
      %p441 = scmp.ne.s32.totalorder %s432, %s433
      %p442 = scmp.eq.s32.totalorder %s30, 0
      %p443 = por %p441, %p442
      %p444 = scmp.ne.s32.totalorder %s432, %s433
      %p445 = scmp.eq.s32.totalorder %s31, 1
      %p446 = por %p444, %p445
      %p448 = scmp.ne.s32.totalorder %s433, %s447
      %p449 = scmp.eq.s32.totalorder %s31, 0
      %p450 = por %p448, %p449
      %s451 = ssub.s32 %s32, %s44
      %p452 = scmp.eq.s32.totalorder %s451, 0
      %s454 = sadd.s32 %s453, 1
      %s455 = scalar_select %p452, %s453, %s454
      %p458 = pneg %p452
      %p459 = scmp.eq.s32.totalorder %s25, 1
      %p460 = por %p458, %p459
      %p461 = scmp.ne.s32.totalorder %s453, %s456
      %p462 = scmp.eq.s32.totalorder %s25, 0
      %p463 = por %p461, %p462
      %p464 = scmp.ne.s32.totalorder %s453, %s456
      %p465 = scmp.eq.s32.totalorder %s30, 1
      %p466 = por %p464, %p465
      %p467 = scmp.ne.s32.totalorder %s456, %s457
      %p468 = scmp.eq.s32.totalorder %s30, 0
      %p469 = por %p467, %p468
      %p470 = scmp.ne.s32.totalorder %s456, %s457
      %p471 = scmp.eq.s32.totalorder %s31, 1
      %p472 = por %p470, %p471
      %p474 = scmp.ne.s32.totalorder %s457, %s473
      %p475 = scmp.eq.s32.totalorder %s31, 0
      %p476 = por %p474, %p475
      %p477 = scmp.le.s32.totalorder 1, %s25
      %p478 = scmp.lt.s32.totalorder %s25, 3
      %p479 = pnand %p477, %p478
      %p480 = pneg %p479
      // Predicated region
      $region9: #{tpu_custom_call.1} parent=5 // pred_check
        _
      $region10: #{tpu_custom_call.1} parent=5 // pred_check_branch
        %482 = sbr.rel (%p479) target = $region12
      $region11: #{tpu_custom_call.1} parent=5 // pred_region
        %s483 = ssub.s32 %s25, 1
        // Predicated region
        $region13: #{tpu_custom_call.1} parent=11 // pred_check
          %p484 = pneg %p63
        $region14: #{tpu_custom_call.1} parent=11 // pred_check_branch
          %486 = sbr.rel (%p484) target = $region16
        $region15: #{tpu_custom_call.1} parent=11 // pred_region
          %s487 = smul.u32 8, %s34
          %489 = vsyncadd [#allocation3], 0
          %s490 = smul.addr %s487, 2
          %s491 = scalar_lea.hbm %s0, %s490
          %s492 = sshll.u32 %s491, 4
          %s493 = int_to_ptr.hbm [resolvable:$true] %s492
          %s494 = sshll.u32 [#allocation2], 4
          %s495 = int_to_ptr.vmem [resolvable:$true] %s494
          %500 = dma.hbm_to_vmem [thread:$0]  %s493, 256, %s495, [#allocation3], 32, 32, 2
        $region16: #{tpu_custom_call.1} parent=11 // pred_fallthru
          _
        // Predicated region
        $region17: #{tpu_custom_call.1} parent=11 // pred_check
          %p501 = pneg %p89
        $region18: #{tpu_custom_call.1} parent=11 // pred_check_branch
          %503 = sbr.rel (%p501) target = $region20
        $region19: #{tpu_custom_call.1} parent=11 // pred_region
          %s504 = smul.u32 8, %s34
          %506 = vsyncadd [#allocation6], 0
          %s507 = scalar_lea.hbm %s1, %s504
          %s508 = sshll.u32 %s507, 4
          %s509 = int_to_ptr.hbm [resolvable:$true] %s508
          %s510 = sshll.u32 [#allocation5], 4
          %s511 = int_to_ptr.vmem [resolvable:$true] %s510
          %516 = dma.hbm_to_vmem [thread:$0]  %s509, 128, %s511, [#allocation6], 16, 16, 1
        $region20: #{tpu_custom_call.1} parent=11 // pred_fallthru
          _
        // Predicated region
        $region21: #{tpu_custom_call.1} parent=11 // pred_check
          %p517 = pneg %p422
        $region22: #{tpu_custom_call.1} parent=11 // pred_check_branch
          %519 = sbr.rel (%p517) target = $region24
        $region23: #{tpu_custom_call.1} parent=11 // pred_region
          _
        $region24: #{tpu_custom_call.1} parent=11 // pred_fallthru
          _
        // Predicated region
        $region25: #{tpu_custom_call.1} parent=11 // pred_check
          %p520 = pneg %p443
        $region26: #{tpu_custom_call.1} parent=11 // pred_check_branch
          %522 = sbr.rel (%p520) target = $region28
        $region27: #{tpu_custom_call.1} parent=11 // pred_region
          _
        $region28: #{tpu_custom_call.1} parent=11 // pred_fallthru
          _
      $region12: #{tpu_custom_call.1} parent=5 // pred_fallthru
        _
      %p523 = scmp.lt.s32.totalorder %s25, 2
      // Predicated region
      $region29: #{tpu_custom_call.1} parent=5 // pred_check
        %p524 = pneg %p523
      $region30: #{tpu_custom_call.1} parent=5 // pred_check_branch
        %526 = sbr.rel (%p524) target = $region32
      $region31: #{tpu_custom_call.1} parent=5 // pred_region
        // Predicated region
        $region33: #{tpu_custom_call.1} parent=31 // pred_check
          %p527 = pneg %p109
        $region34: #{tpu_custom_call.1} parent=31 // pred_check_branch
          %529 = sbr.rel (%p527) target = $region36
        $region35: #{tpu_custom_call.1} parent=31 // pred_region
          %s530 = sand.u32 %s25, 1
          %s531 = scalar_lea.sflag [#allocation3], %s530
          %s532 = sand.u32 %s99, 1
          %s533 = scalar_lea.vmem [#allocation7], %s532
          %535 = vsyncadd %s531, 0
          %s536 = scalar_lea.hbm %s2, %s33
          %s538 = sshll.u32 %s536, 4
          %s539 = int_to_ptr.hbm [resolvable:$true] %s538
          %s540 = sshll.u32 %s533, 4
          %s541 = int_to_ptr.vmem [resolvable:$true] %s540
          %543 = dma.hbm_to_vmem [thread:$0]  %s539, 16, %s541, %s531
        $region36: #{tpu_custom_call.1} parent=31 // pred_fallthru
          _
        // Predicated region
        $region37: #{tpu_custom_call.1} parent=31 // pred_check
          %p544 = pneg %p135
        $region38: #{tpu_custom_call.1} parent=31 // pred_check_branch
          %546 = sbr.rel (%p544) target = $region40
        $region39: #{tpu_custom_call.1} parent=31 // pred_region
          %p547 = scmp.lt.s32.totalorder %s33, 1
          %s548 = scalar_select %p547, %s33, 1
          %s549 = scalar_lea.vmem %s3, %s548
        $region40: #{tpu_custom_call.1} parent=31 // pred_fallthru
          _
        // Predicated region
        $region41: #{tpu_custom_call.1} parent=31 // pred_check
          %p550 = pneg %p161
        $region42: #{tpu_custom_call.1} parent=31 // pred_check_branch
          %552 = sbr.rel (%p550) target = $region44
        $region43: #{tpu_custom_call.1} parent=31 // pred_region
          %s553 = sand.u32 %s25, 1
          %s554 = scalar_lea.sflag [#allocation3], %s553
          %s555 = sand.u32 %s151, 1
          %s556 = smul.addr %s555, 32
          %s557 = scalar_lea.vmem [#allocation8], %s556
          %559 = vsyncadd %s554, 0
          %s560 = smul.addr %s33, 4
          %s561 = smul.addr %s560, 8
          %s562 = scalar_lea.hbm %s4, %s561
          %s563 = sshll.u32 %s562, 4
          %s564 = int_to_ptr.hbm [resolvable:$true] %s563
          %s565 = sshll.u32 %s557, 4
          %s566 = int_to_ptr.vmem [resolvable:$true] %s565
          %571 = dma.hbm_to_vmem [thread:$0]  %s564, 512, %s566, %s554, 128, 128, 8
        $region44: #{tpu_custom_call.1} parent=31 // pred_fallthru
          _
        // Predicated region
        $region45: #{tpu_custom_call.1} parent=31 // pred_check
          %p572 = pneg %p187
        $region46: #{tpu_custom_call.1} parent=31 // pred_check_branch
          %574 = sbr.rel (%p572) target = $region48
        $region47: #{tpu_custom_call.1} parent=31 // pred_region
          %p575 = scmp.lt.s32.totalorder %s33, 1
          %s576 = scalar_select %p575, %s33, 1
          %s577 = scalar_lea.vmem %s5, %s576
        $region48: #{tpu_custom_call.1} parent=31 // pred_fallthru
          _
        // Predicated region
        $region49: #{tpu_custom_call.1} parent=31 // pred_check
          %p578 = pneg %p213
        $region50: #{tpu_custom_call.1} parent=31 // pred_check_branch
          %580 = sbr.rel (%p578) target = $region52
        $region51: #{tpu_custom_call.1} parent=31 // pred_region
          %s581 = sand.u32 %s25, 1
          %s582 = scalar_lea.sflag [#allocation3], %s581
          %s583 = sand.u32 %s203, 1
          %s584 = smul.addr %s583, 32
          %s585 = scalar_lea.vmem [#allocation9], %s584
          %587 = vsyncadd %s582, 0
          %s588 = smul.addr %s33, 4
          %s589 = smul.addr %s588, 8
          %s590 = scalar_lea.hbm %s6, %s589
          %s591 = sshll.u32 %s590, 4
          %s592 = int_to_ptr.hbm [resolvable:$true] %s591
          %s593 = sshll.u32 %s585, 4
          %s594 = int_to_ptr.vmem [resolvable:$true] %s593
          %599 = dma.hbm_to_vmem [thread:$0]  %s592, 512, %s594, %s582, 128, 128, 8
        $region52: #{tpu_custom_call.1} parent=31 // pred_fallthru
          _
        // Predicated region
        $region53: #{tpu_custom_call.1} parent=31 // pred_check
          %p600 = pneg %p239
        $region54: #{tpu_custom_call.1} parent=31 // pred_check_branch
          %602 = sbr.rel (%p600) target = $region56
        $region55: #{tpu_custom_call.1} parent=31 // pred_region
          %p603 = scmp.lt.s32.totalorder %s33, 1
          %s604 = scalar_select %p603, %s33, 1
          %s605 = scalar_lea.vmem %s7, %s604
        $region56: #{tpu_custom_call.1} parent=31 // pred_fallthru
          _
        // Predicated region
        $region57: #{tpu_custom_call.1} parent=31 // pred_check
          %p606 = pneg %p265
        $region58: #{tpu_custom_call.1} parent=31 // pred_check_branch
          %608 = sbr.rel (%p606) target = $region60
        $region59: #{tpu_custom_call.1} parent=31 // pred_region
          %s609 = sand.u32 %s25, 1
          %s610 = scalar_lea.sflag [#allocation3], %s609
          %s611 = sand.u32 %s255, 1
          %s612 = scalar_lea.vmem [#allocation10], %s611
          %614 = vsyncadd %s610, 0
          %s615 = scalar_lea.hbm %s8, %s33
          %s617 = sshll.u32 %s615, 4
          %s618 = int_to_ptr.hbm [resolvable:$true] %s617
          %s619 = sshll.u32 %s612, 4
          %s620 = int_to_ptr.vmem [resolvable:$true] %s619
          %622 = dma.hbm_to_vmem [thread:$0]  %s618, 16, %s620, %s610
        $region60: #{tpu_custom_call.1} parent=31 // pred_fallthru
          _
        // Predicated region
        $region61: #{tpu_custom_call.1} parent=31 // pred_check
          %p623 = pneg %p291
        $region62: #{tpu_custom_call.1} parent=31 // pred_check_branch
          %625 = sbr.rel (%p623) target = $region64
        $region63: #{tpu_custom_call.1} parent=31 // pred_region
          %p626 = scmp.lt.s32.totalorder %s33, 1
          %s627 = scalar_select %p626, %s33, 1
          %s628 = scalar_lea.vmem %s9, %s627
        $region64: #{tpu_custom_call.1} parent=31 // pred_fallthru
          _
        // Predicated region
        $region65: #{tpu_custom_call.1} parent=31 // pred_check
          %p629 = pneg %p317
        $region66: #{tpu_custom_call.1} parent=31 // pred_check_branch
          %631 = sbr.rel (%p629) target = $region68
        $region67: #{tpu_custom_call.1} parent=31 // pred_region
          %s632 = sand.u32 %s25, 1
          %s633 = scalar_lea.sflag [#allocation3], %s632
          %s634 = sand.u32 %s307, 1
          %s635 = smul.addr %s634, 32
          %s636 = scalar_lea.vmem [#allocation11], %s635
          %638 = vsyncadd %s633, 0
          %s639 = smul.addr %s33, 4
          %s640 = smul.addr %s639, 8
          %s641 = scalar_lea.hbm %s10, %s640
          %s642 = sshll.u32 %s641, 4
          %s643 = int_to_ptr.hbm [resolvable:$true] %s642
          %s644 = sshll.u32 %s636, 4
          %s645 = int_to_ptr.vmem [resolvable:$true] %s644
          %650 = dma.hbm_to_vmem [thread:$0]  %s643, 512, %s645, %s633, 128, 128, 8
        $region68: #{tpu_custom_call.1} parent=31 // pred_fallthru
          _
        // Predicated region
        $region69: #{tpu_custom_call.1} parent=31 // pred_check
          %p651 = pneg %p343
        $region70: #{tpu_custom_call.1} parent=31 // pred_check_branch
          %653 = sbr.rel (%p651) target = $region72
        $region71: #{tpu_custom_call.1} parent=31 // pred_region
          %p654 = scmp.lt.s32.totalorder %s33, 1
          %s655 = scalar_select %p654, %s33, 1
          %s656 = scalar_lea.vmem %s11, %s655
        $region72: #{tpu_custom_call.1} parent=31 // pred_fallthru
          _
        // Predicated region
        $region73: #{tpu_custom_call.1} parent=31 // pred_check
          %p657 = pneg %p369
        $region74: #{tpu_custom_call.1} parent=31 // pred_check_branch
          %659 = sbr.rel (%p657) target = $region76
        $region75: #{tpu_custom_call.1} parent=31 // pred_region
          %s660 = sand.u32 %s25, 1
          %s661 = scalar_lea.sflag [#allocation3], %s660
          %s662 = sand.u32 %s359, 1
          %s663 = smul.addr %s662, 32
          %s664 = scalar_lea.vmem [#allocation12], %s663
          %666 = vsyncadd %s661, 0
          %s667 = smul.addr %s33, 4
          %s668 = smul.addr %s667, 8
          %s669 = scalar_lea.hbm %s12, %s668
          %s670 = sshll.u32 %s669, 4
          %s671 = int_to_ptr.hbm [resolvable:$true] %s670
          %s672 = sshll.u32 %s664, 4
          %s673 = int_to_ptr.vmem [resolvable:$true] %s672
          %678 = dma.hbm_to_vmem [thread:$0]  %s671, 512, %s673, %s661, 128, 128, 8
        $region76: #{tpu_custom_call.1} parent=31 // pred_fallthru
          _
        // Predicated region
        $region77: #{tpu_custom_call.1} parent=31 // pred_check
          %p679 = pneg %p395
        $region78: #{tpu_custom_call.1} parent=31 // pred_check_branch
          %681 = sbr.rel (%p679) target = $region80
        $region79: #{tpu_custom_call.1} parent=31 // pred_region
          %p682 = scmp.lt.s32.totalorder %s33, 1
          %s683 = scalar_select %p682, %s33, 1
          %s684 = scalar_lea.vmem %s13, %s683
        $region80: #{tpu_custom_call.1} parent=31 // pred_fallthru
          _
      $region32: #{tpu_custom_call.1} parent=5 // pred_fallthru
        _
      %p685 = scmp.le.s32.totalorder 1, %s25
      %p686 = scmp.lt.s32.totalorder %s25, 3
      %p687 = pnand %p685, %p686
      %p688 = pneg %p687
      // Predicated region
      $region81: #{tpu_custom_call.1} parent=5 // pred_check
        _
      $region82: #{tpu_custom_call.1} parent=5 // pred_check_branch
        %690 = sbr.rel (%p687) target = $region84
      $region83: #{tpu_custom_call.1} parent=5 // pred_region
        %s691 = ssub.s32 %s25, 1
        // Predicated region
        $region85: #{tpu_custom_call.1} parent=83 // pred_check
          %p692 = pneg %p63
        $region86: #{tpu_custom_call.1} parent=83 // pred_check_branch
          %694 = sbr.rel (%p692) target = $region88
        $region87: #{tpu_custom_call.1} parent=83 // pred_region
          %696 = dma.done [#allocation3], 256
        $region88: #{tpu_custom_call.1} parent=83 // pred_fallthru
          _
        // Predicated region
        $region89: #{tpu_custom_call.1} parent=83 // pred_check
          %p697 = pneg %p89
        $region90: #{tpu_custom_call.1} parent=83 // pred_check_branch
          %699 = sbr.rel (%p697) target = $region92
        $region91: #{tpu_custom_call.1} parent=83 // pred_region
          %701 = dma.done [#allocation6], 128
        $region92: #{tpu_custom_call.1} parent=83 // pred_fallthru
          _
        %s702 = sand.u32 %s30, 1
        %s703 = scalar_lea.sflag [#allocation3], %s702
        %s704 = sand.u32 %s102, 1
        %s705 = scalar_lea.vmem [#allocation7], %s704
        // Predicated region
        $region93: #{tpu_custom_call.1} parent=83 // pred_check
          %p706 = pneg %p115
        $region94: #{tpu_custom_call.1} parent=83 // pred_check_branch
          %708 = sbr.rel (%p706) target = $region96
        $region95: #{tpu_custom_call.1} parent=83 // pred_region
          %710 = dma.done %s703, 16
        $region96: #{tpu_custom_call.1} parent=83 // pred_fallthru
          _
        %s711 = sand.u32 %s30, 1
        %s712 = scalar_lea.sflag [#allocation3], %s711
        %s713 = sand.u32 %s154, 1
        %s714 = smul.addr %s713, 32
        %s715 = scalar_lea.vmem [#allocation8], %s714
        // Predicated region
        $region97: #{tpu_custom_call.1} parent=83 // pred_check
          %p716 = pneg %p167
        $region98: #{tpu_custom_call.1} parent=83 // pred_check_branch
          %718 = sbr.rel (%p716) target = $region100
        $region99: #{tpu_custom_call.1} parent=83 // pred_region
          %720 = dma.done %s712, 512
        $region100: #{tpu_custom_call.1} parent=83 // pred_fallthru
          _
        %s721 = sand.u32 %s30, 1
        %s722 = scalar_lea.sflag [#allocation3], %s721
        %s723 = sand.u32 %s206, 1
        %s724 = smul.addr %s723, 32
        %s725 = scalar_lea.vmem [#allocation9], %s724
        // Predicated region
        $region101: #{tpu_custom_call.1} parent=83 // pred_check
          %p726 = pneg %p219
        $region102: #{tpu_custom_call.1} parent=83 // pred_check_branch
          %728 = sbr.rel (%p726) target = $region104
        $region103: #{tpu_custom_call.1} parent=83 // pred_region
          %730 = dma.done %s722, 512
        $region104: #{tpu_custom_call.1} parent=83 // pred_fallthru
          _
        %s731 = sand.u32 %s30, 1
        %s732 = scalar_lea.sflag [#allocation3], %s731
        %s733 = sand.u32 %s258, 1
        %s734 = scalar_lea.vmem [#allocation10], %s733
        // Predicated region
        $region105: #{tpu_custom_call.1} parent=83 // pred_check
          %p735 = pneg %p271
        $region106: #{tpu_custom_call.1} parent=83 // pred_check_branch
          %737 = sbr.rel (%p735) target = $region108
        $region107: #{tpu_custom_call.1} parent=83 // pred_region
          %739 = dma.done %s732, 16
        $region108: #{tpu_custom_call.1} parent=83 // pred_fallthru
          _
        %s740 = sand.u32 %s30, 1
        %s741 = scalar_lea.sflag [#allocation3], %s740
        %s742 = sand.u32 %s310, 1
        %s743 = smul.addr %s742, 32
        %s744 = scalar_lea.vmem [#allocation11], %s743
        // Predicated region
        $region109: #{tpu_custom_call.1} parent=83 // pred_check
          %p745 = pneg %p323
        $region110: #{tpu_custom_call.1} parent=83 // pred_check_branch
          %747 = sbr.rel (%p745) target = $region112
        $region111: #{tpu_custom_call.1} parent=83 // pred_region
          %749 = dma.done %s741, 512
        $region112: #{tpu_custom_call.1} parent=83 // pred_fallthru
          _
        %s750 = sand.u32 %s30, 1
        %s751 = scalar_lea.sflag [#allocation3], %s750
        %s752 = sand.u32 %s362, 1
        %s753 = smul.addr %s752, 32
        %s754 = scalar_lea.vmem [#allocation12], %s753
        // Predicated region
        $region113: #{tpu_custom_call.1} parent=83 // pred_check
          %p755 = pneg %p375
        $region114: #{tpu_custom_call.1} parent=83 // pred_check_branch
          %757 = sbr.rel (%p755) target = $region116
        $region115: #{tpu_custom_call.1} parent=83 // pred_region
          %759 = dma.done %s751, 512
        $region116: #{tpu_custom_call.1} parent=83 // pred_fallthru
          _
        %p760 = pneg %p63
        %p761 = pneg %p60
        %p762 = pneg %p89
        %p763 = pneg %p86
        %s764 = sand.u32 %s30, 1
        %s765 = scalar_lea.sflag [#allocation3], %s764
        %s766 = sand.u32 %s102, 1
        %s767 = scalar_lea.vmem [#allocation7], %s766
        %p768 = pneg %p115
        %p769 = pneg %p112
        %p770 = scmp.lt.s32.totalorder %s35, 1
        %s771 = scalar_select %p770, %s35, 1
        %s772 = scalar_lea.vmem %s3, %s771
        %p773 = pneg %p141
        %p774 = pneg %p138
        %s775 = sand.u32 %s30, 1
        %s776 = scalar_lea.sflag [#allocation3], %s775
        %s777 = sand.u32 %s154, 1
        %s778 = smul.addr %s777, 32
        %s779 = scalar_lea.vmem [#allocation8], %s778
        %p780 = pneg %p167
        %p781 = pneg %p164
        %p782 = scmp.lt.s32.totalorder %s35, 1
        %s783 = scalar_select %p782, %s35, 1
        %s784 = scalar_lea.vmem %s5, %s783
        %p785 = pneg %p193
        %p786 = pneg %p190
        %s787 = sand.u32 %s30, 1
        %s788 = scalar_lea.sflag [#allocation3], %s787
        %s789 = sand.u32 %s206, 1
        %s790 = smul.addr %s789, 32
        %s791 = scalar_lea.vmem [#allocation9], %s790
        %p792 = pneg %p219
        %p793 = pneg %p216
        %p794 = scmp.lt.s32.totalorder %s35, 1
        %s795 = scalar_select %p794, %s35, 1
        %s796 = scalar_lea.vmem %s7, %s795
        %p797 = pneg %p245
        %p798 = pneg %p242
        %s799 = sand.u32 %s30, 1
        %s800 = scalar_lea.sflag [#allocation3], %s799
        %s801 = sand.u32 %s258, 1
        %s802 = scalar_lea.vmem [#allocation10], %s801
        %p803 = pneg %p271
        %p804 = pneg %p268
        %p805 = scmp.lt.s32.totalorder %s35, 1
        %s806 = scalar_select %p805, %s35, 1
        %s807 = scalar_lea.vmem %s9, %s806
        %p808 = pneg %p297
        %p809 = pneg %p294
        %s810 = sand.u32 %s30, 1
        %s811 = scalar_lea.sflag [#allocation3], %s810
        %s812 = sand.u32 %s310, 1
        %s813 = smul.addr %s812, 32
        %s814 = scalar_lea.vmem [#allocation11], %s813
        %p815 = pneg %p323
        %p816 = pneg %p320
        %p817 = scmp.lt.s32.totalorder %s35, 1
        %s818 = scalar_select %p817, %s35, 1
        %s819 = scalar_lea.vmem %s11, %s818
        %p820 = pneg %p349
        %p821 = pneg %p346
        %s822 = sand.u32 %s30, 1
        %s823 = scalar_lea.sflag [#allocation3], %s822
        %s824 = sand.u32 %s362, 1
        %s825 = smul.addr %s824, 32
        %s826 = scalar_lea.vmem [#allocation12], %s825
        %p827 = pneg %p375
        %p828 = pneg %p372
        %p829 = scmp.lt.s32.totalorder %s35, 1
        %s830 = scalar_select %p829, %s35, 1
        %s831 = scalar_lea.vmem %s13, %s830
        %p832 = pneg %p401
        %p833 = pneg %p398
        %p834 = pneg %p422
        %p835 = pneg %p419
        %p836 = pneg %p443
        %p837 = pneg %p440
        %p838 = pneg %p469
        %p839 = pneg %p466
        %s840 = smul.u32 8, %s34
        %s841 = smul.u32 8, %s34
        %p842 = scmp.lt.s32.totalorder %s35, 1
        %s843 = scalar_select %p842, %s35, 1
        %s844 = scalar_lea.vmem %s3, %s843
        %p845 = scmp.lt.s32.totalorder %s35, 1
        %s846 = scalar_select %p845, %s35, 1
        %s847 = scalar_lea.vmem %s5, %s846
        %p848 = scmp.lt.s32.totalorder %s35, 1
        %s849 = scalar_select %p848, %s35, 1
        %s850 = scalar_lea.vmem %s7, %s849
        %p851 = scmp.lt.s32.totalorder %s35, 1
        %s852 = scalar_select %p851, %s35, 1
        %s853 = scalar_lea.vmem %s9, %s852
        %p854 = scmp.lt.s32.totalorder %s35, 1
        %s855 = scalar_select %p854, %s35, 1
        %s856 = scalar_lea.vmem %s11, %s855
        %p857 = scmp.lt.s32.totalorder %s35, 1
        %s858 = scalar_select %p857, %s35, 1
        %s859 = scalar_lea.vmem %s13, %s858
        %s860 = smul.u32 8, %s34
        %p861 = scmp.eq.s32.totalorder %s35, 0
        // Predicated region
        $region117: #{tpu_custom_call.1} parent=83 // pred_check
          %p862 = pneg %p861
        $region118: #{tpu_custom_call.1} parent=83 // pred_check_branch
          %864 = sbr.rel (%p862) target = $region120
        $region119: #{tpu_custom_call.1} parent=83 // pred_region
          %v865 = vld [vmem:[#allocation2] sm:$0x3]
          %v866 = vld [vmem:[#allocation2 + $0x2] sm:$0x3]
          %v867 = vld [vmem:[#allocation2 + $0x4] sm:$0x3]
          %v868 = vld [vmem:[#allocation2 + $0x6] sm:$0x3]
          %v869 = vld [vmem:[#allocation2 + $0x8] sm:$0x3]
          %v870 = vld [vmem:[#allocation2 + $0xa] sm:$0x3]
          %v871 = vld [vmem:[#allocation2 + $0xc] sm:$0x3]
          %v872 = vld [vmem:[#allocation2 + $0xe] sm:$0x3]
          %v873 = vld [vmem:[#allocation5] sm:$0x1]
          %v874 = vld [vmem:[#allocation5 + $0x1] sm:$0x1]
          %v875 = vld [vmem:[#allocation5 + $0x2] sm:$0x1]
          %v876 = vld [vmem:[#allocation5 + $0x3] sm:$0x1]
          %v877 = vld [vmem:[#allocation5 + $0x4] sm:$0x1]
          %v878 = vld [vmem:[#allocation5 + $0x5] sm:$0x1]
          %v879 = vld [vmem:[#allocation5 + $0x6] sm:$0x1]
          %v880 = vld [vmem:[#allocation5 + $0x7] sm:$0x1]
          %v889 = vperm.slane %v873, 0
          %v890 = vperm.slane %v874, 0
          %v891 = vperm.slane %v875, 0
          %v892 = vperm.slane %v876, 0
          %v893 = vperm.slane %v877, 0
          %v894 = vperm.slane %v878, 0
          %v895 = vperm.slane %v879, 0
          %v896 = vperm.slane %v880, 0
          %v905 = vadd.f32 %v865, %v889
          %v906 = vadd.f32 %v866, %v890
          %v907 = vadd.f32 %v867, %v891
          %v908 = vadd.f32 %v868, %v892
          %v909 = vadd.f32 %v869, %v893
          %v910 = vadd.f32 %v870, %v894
          %v911 = vadd.f32 %v871, %v895
          %v912 = vadd.f32 %v872, %v896
          %vm913 = vcmask 254976
          %914 = vst.msk [vmem:[#allocation13] sm:$0x3] %vm913, %v905
          %915 = vst.msk [vmem:[#allocation13 + $0x2] sm:$0x3] %vm913, %v906
          %916 = vst.msk [vmem:[#allocation13 + $0x4] sm:$0x3] %vm913, %v907
          %917 = vst.msk [vmem:[#allocation13 + $0x6] sm:$0x3] %vm913, %v908
          %918 = vst.msk [vmem:[#allocation13 + $0x8] sm:$0x3] %vm913, %v909
          %919 = vst.msk [vmem:[#allocation13 + $0xa] sm:$0x3] %vm913, %v910
          %920 = vst.msk [vmem:[#allocation13 + $0xc] sm:$0x3] %vm913, %v911
          %921 = vst.msk [vmem:[#allocation13 + $0xe] sm:$0x3] %vm913, %v912
        $region120: #{tpu_custom_call.1} parent=83 // pred_fallthru
          _
        %v922 = vld [vmem:[#allocation13] sm:$0x3]
        %v923 = vld [vmem:[#allocation13 + $0x2] sm:$0x3]
        %v924 = vld [vmem:[#allocation13 + $0x4] sm:$0x3]
        %v925 = vld [vmem:[#allocation13 + $0x6] sm:$0x3]
        %v926 = vld [vmem:[#allocation13 + $0x8] sm:$0x3]
        %v927 = vld [vmem:[#allocation13 + $0xa] sm:$0x3]
        %v928 = vld [vmem:[#allocation13 + $0xc] sm:$0x3]
        %v929 = vld [vmem:[#allocation13 + $0xe] sm:$0x3]
        %v930 = vld [vmem:[%s705] sm:$0x1]
        %v931 = vld [vmem:[%s844] sm:$0x1]
        %vm932 = vcmask 254976
        %v933 = vsel %vm932, %v922, 0.0
        %934 = vadd.xlane.f32.xlu0 %v933
        %v935 = vpop.xlane.xlu0 %934
        %v936 = vsel %vm932, %v923, 0.0
        %937 = vadd.xlane.f32.xlu0 %v936
        %v938 = vpop.xlane.xlu0 %937
        %v939 = vsel %vm932, %v924, 0.0
        %940 = vadd.xlane.f32.xlu0 %v939
        %v941 = vpop.xlane.xlu0 %940
        %v942 = vsel %vm932, %v925, 0.0
        %943 = vadd.xlane.f32.xlu0 %v942
        %v944 = vpop.xlane.xlu0 %943
        %v945 = vsel %vm932, %v926, 0.0
        %946 = vadd.xlane.f32.xlu0 %v945
        %v947 = vpop.xlane.xlu0 %946
        %v948 = vsel %vm932, %v927, 0.0
        %949 = vadd.xlane.f32.xlu0 %v948
        %v950 = vpop.xlane.xlu0 %949
        %v951 = vsel %vm932, %v928, 0.0
        %952 = vadd.xlane.f32.xlu0 %v951
        %v953 = vpop.xlane.xlu0 %952
        %v954 = vsel %vm932, %v929, 0.0
        %955 = vadd.xlane.f32.xlu0 %v954
        %v956 = vpop.xlane.xlu0 %955
        %v957 = vrcp.pop 32.0
        %v958 = vmul.f32 32.0, %v957
        %v959 = vsub.f32 1.0, %v958
        %v960 = vmul.f32 %v957, %v959
        %v961 = vadd.f32 %v957, %v960
        %vm962 = vweird.f32 %v957
        %v963 = vsel %vm962, %v957, %v961
        %v964 = vmul.f32 %v935, %v963
        %v965 = vmul.f32 %v938, %v963
        %v966 = vmul.f32 %v941, %v963
        %v967 = vmul.f32 %v944, %v963
        %v968 = vmul.f32 %v947, %v963
        %v969 = vmul.f32 %v950, %v963
        %v970 = vmul.f32 %v953, %v963
        %v971 = vmul.f32 %v956, %v963
        %v972 = vsub.f32 %v922, %v964
        %v973 = vsub.f32 %v923, %v965
        %v974 = vsub.f32 %v924, %v966
        %v975 = vsub.f32 %v925, %v967
        %v976 = vsub.f32 %v926, %v968
        %v977 = vsub.f32 %v927, %v969
        %v978 = vsub.f32 %v928, %v970
        %v979 = vsub.f32 %v929, %v971
        %v980 = vmul.f32 %v972, %v972
        %v981 = vmul.f32 %v973, %v973
        %v982 = vmul.f32 %v974, %v974
        %v983 = vmul.f32 %v975, %v975
        %v984 = vmul.f32 %v976, %v976
        %v985 = vmul.f32 %v977, %v977
        %v986 = vmul.f32 %v978, %v978
        %v987 = vmul.f32 %v979, %v979
        %v988 = vsel %vm932, %v980, 0.0
        %989 = vadd.xlane.f32.xlu0 %v988
        %v990 = vpop.xlane.xlu0 %989
        %v991 = vsel %vm932, %v981, 0.0
        %992 = vadd.xlane.f32.xlu0 %v991
        %v993 = vpop.xlane.xlu0 %992
        %v994 = vsel %vm932, %v982, 0.0
        %995 = vadd.xlane.f32.xlu0 %v994
        %v996 = vpop.xlane.xlu0 %995
        %v997 = vsel %vm932, %v983, 0.0
        %998 = vadd.xlane.f32.xlu0 %v997
        %v999 = vpop.xlane.xlu0 %998
        %v1000 = vsel %vm932, %v984, 0.0
        %1001 = vadd.xlane.f32.xlu0 %v1000
        %v1002 = vpop.xlane.xlu0 %1001
        %v1003 = vsel %vm932, %v985, 0.0
        %1004 = vadd.xlane.f32.xlu0 %v1003
        %v1005 = vpop.xlane.xlu0 %1004
        %v1006 = vsel %vm932, %v986, 0.0
        %1007 = vadd.xlane.f32.xlu0 %v1006
        %v1008 = vpop.xlane.xlu0 %1007
        %v1009 = vsel %vm932, %v987, 0.0
        %1010 = vadd.xlane.f32.xlu0 %v1009
        %v1011 = vpop.xlane.xlu0 %1010
        %v1012 = vmul.f32 %v990, %v963
        %v1013 = vmul.f32 %v993, %v963
        %v1014 = vmul.f32 %v996, %v963
        %v1015 = vmul.f32 %v999, %v963
        %v1016 = vmul.f32 %v1002, %v963
        %v1017 = vmul.f32 %v1005, %v963
        %v1018 = vmul.f32 %v1008, %v963
        %v1019 = vmul.f32 %v1011, %v963
        %v1020 = vadd.f32 %v1012, 1e-05
        %v1021 = vadd.f32 %v1013, 1e-05
        %v1022 = vadd.f32 %v1014, 1e-05
        %v1023 = vadd.f32 %v1015, 1e-05
        %v1024 = vadd.f32 %v1016, 1e-05
        %v1025 = vadd.f32 %v1017, 1e-05
        %v1026 = vadd.f32 %v1018, 1e-05
        %v1027 = vadd.f32 %v1019, 1e-05
        %v1028 = vrsqrt.pop %v1020
        %v1029 = vmul.f32 %v1028, %v1020
        %v1030 = vmul.f32 %v1029, %v1028
        %v1031 = vmul.f32 0.5, %v1030
        %v1032 = vsub.f32 1.5, %v1031
        %v1033 = vmul.f32 %v1028, %v1032
        %vm1034 = vweird.f32 %v1020
        %vm1035 = vweird.f32 %v1028
        %vm1036 = vmor %vm1034, %vm1035
        %v1037 = vsel %vm1036, %v1028, %v1033
        %v1038 = vrsqrt.pop %v1021
        %v1039 = vmul.f32 %v1038, %v1021
        %v1040 = vmul.f32 %v1039, %v1038
        %v1041 = vmul.f32 0.5, %v1040
        %v1042 = vsub.f32 1.5, %v1041
        %v1043 = vmul.f32 %v1038, %v1042
        %vm1044 = vweird.f32 %v1021
        %vm1045 = vweird.f32 %v1038
        %vm1046 = vmor %vm1044, %vm1045
        %v1047 = vsel %vm1046, %v1038, %v1043
        %v1048 = vrsqrt.pop %v1022
        %v1049 = vmul.f32 %v1048, %v1022
        %v1050 = vmul.f32 %v1049, %v1048
        %v1051 = vmul.f32 0.5, %v1050
        %v1052 = vsub.f32 1.5, %v1051
        %v1053 = vmul.f32 %v1048, %v1052
        %vm1054 = vweird.f32 %v1022
        %vm1055 = vweird.f32 %v1048
        %vm1056 = vmor %vm1054, %vm1055
        %v1057 = vsel %vm1056, %v1048, %v1053
        %v1058 = vrsqrt.pop %v1023
        %v1059 = vmul.f32 %v1058, %v1023
        %v1060 = vmul.f32 %v1059, %v1058
        %v1061 = vmul.f32 0.5, %v1060
        %v1062 = vsub.f32 1.5, %v1061
        %v1063 = vmul.f32 %v1058, %v1062
        %vm1064 = vweird.f32 %v1023
        %vm1065 = vweird.f32 %v1058
        %vm1066 = vmor %vm1064, %vm1065
        %v1067 = vsel %vm1066, %v1058, %v1063
        %v1068 = vrsqrt.pop %v1024
        %v1069 = vmul.f32 %v1068, %v1024
        %v1070 = vmul.f32 %v1069, %v1068
        %v1071 = vmul.f32 0.5, %v1070
        %v1072 = vsub.f32 1.5, %v1071
        %v1073 = vmul.f32 %v1068, %v1072
        %vm1074 = vweird.f32 %v1024
        %vm1075 = vweird.f32 %v1068
        %vm1076 = vmor %vm1074, %vm1075
        %v1077 = vsel %vm1076, %v1068, %v1073
        %v1078 = vrsqrt.pop %v1025
        %v1079 = vmul.f32 %v1078, %v1025
        %v1080 = vmul.f32 %v1079, %v1078
        %v1081 = vmul.f32 0.5, %v1080
        %v1082 = vsub.f32 1.5, %v1081
        %v1083 = vmul.f32 %v1078, %v1082
        %vm1084 = vweird.f32 %v1025
        %vm1085 = vweird.f32 %v1078
        %vm1086 = vmor %vm1084, %vm1085
        %v1087 = vsel %vm1086, %v1078, %v1083
        %v1088 = vrsqrt.pop %v1026
        %v1089 = vmul.f32 %v1088, %v1026
        %v1090 = vmul.f32 %v1089, %v1088
        %v1091 = vmul.f32 0.5, %v1090
        %v1092 = vsub.f32 1.5, %v1091
        %v1093 = vmul.f32 %v1088, %v1092
        %vm1094 = vweird.f32 %v1026
        %vm1095 = vweird.f32 %v1088
        %vm1096 = vmor %vm1094, %vm1095
        %v1097 = vsel %vm1096, %v1088, %v1093
        %v1098 = vrsqrt.pop %v1027
        %v1099 = vmul.f32 %v1098, %v1027
        %v1100 = vmul.f32 %v1099, %v1098
        %v1101 = vmul.f32 0.5, %v1100
        %v1102 = vsub.f32 1.5, %v1101
        %v1103 = vmul.f32 %v1098, %v1102
        %vm1104 = vweird.f32 %v1027
        %vm1105 = vweird.f32 %v1098
        %vm1106 = vmor %vm1104, %vm1105
        %v1107 = vsel %vm1106, %v1098, %v1103
        %v1108 = vmul.f32 %v972, %v1037
        %v1109 = vmul.f32 %v973, %v1047
        %v1110 = vmul.f32 %v974, %v1057
        %v1111 = vmul.f32 %v975, %v1067
        %v1112 = vmul.f32 %v976, %v1077
        %v1113 = vmul.f32 %v977, %v1087
        %v1114 = vmul.f32 %v978, %v1097
        %v1115 = vmul.f32 %v979, %v1107
        %v1117 = vperm.slane %v930, 0
        %v1119 = vmul.f32 %v1108, %v1117
        %v1120 = vmul.f32 %v1109, %v1117
        %v1121 = vmul.f32 %v1110, %v1117
        %v1122 = vmul.f32 %v1111, %v1117
        %v1123 = vmul.f32 %v1112, %v1117
        %v1124 = vmul.f32 %v1113, %v1117
        %v1125 = vmul.f32 %v1114, %v1117
        %v1126 = vmul.f32 %v1115, %v1117
        %v1128 = vperm.slane %v931, 0
        %v1130 = vadd.f32 %v1119, %v1128
        %v1131 = vadd.f32 %v1120, %v1128
        %v1132 = vadd.f32 %v1121, %v1128
        %v1133 = vadd.f32 %v1122, %v1128
        %v1134 = vadd.f32 %v1123, %v1128
        %v1135 = vadd.f32 %v1124, %v1128
        %v1136 = vadd.f32 %v1125, %v1128
        %v1137 = vadd.f32 %v1126, %v1128
        %v1138 = vld [vmem:[%s715] sm:$0xff]
        %v1139 = vld [vmem:[%s715 + $0x8] sm:$0xff]
        %v1140 = vld [vmem:[%s715 + $0x10] sm:$0xff]
        %v1141 = vld [vmem:[%s715 + $0x18] sm:$0xff]
        %v1142 = vld [vmem:[%s847] sm:$0x1]
        %v1144 = vperm.slane %v1142, 0
        %1154 = vst [vmem:[#allocation1] ss:$4 sm:$0xff] %v1130
        %s1155 = scalar_lea.vmem [#allocation1], 1
        %1156 = vst [vmem:[%s1155] ss:$4 sm:$0xff] %v1131
        %s1157 = scalar_lea.vmem [#allocation1], 2
        %1158 = vst [vmem:[%s1157] ss:$4 sm:$0xff] %v1132
        %s1159 = scalar_lea.vmem [#allocation1], 3
        %1160 = vst [vmem:[%s1159] ss:$4 sm:$0xff] %v1133
        %s1161 = scalar_lea.vmem [#allocation1], 32
        %1162 = vst [vmem:[%s1161] ss:$4 sm:$0xff] %v1134
        %s1163 = scalar_lea.vmem [#allocation1], 33
        %1164 = vst [vmem:[%s1163] ss:$4 sm:$0xff] %v1135
        %s1165 = scalar_lea.vmem [#allocation1], 34
        %1166 = vst [vmem:[%s1165] ss:$4 sm:$0xff] %v1136
        %s1167 = scalar_lea.vmem [#allocation1], 35
        %1168 = vst [vmem:[%s1167] ss:$4 sm:$0xff] %v1137
        %v1169 = vld.sshfl [vmem:[#allocation1] sm:$0xff pattern:$0x73625140]
        %v1170 = vld.sshfl [vmem:[#allocation1 + $0x20] sm:$0xff pattern:$0x73625140]
        %vm1171 = vcmask 261120
        %v1172 = vsel %vm1171, %v1169, 0
        %v1174 = vsel %vm1171, %v1170, 0
        %1176 = vmatpush.msra.mxu0 0.0
        %1177 = vmatpush.msra.mxu0 0.0
        %1178 = vmatpush.msra.mxu0 0.0
        %1179 = vmatpush.msra.mxu0 0.0
        %1180 = vmatpush.msra.mxu0 0.0
        %1181 = vmatpush.msra.mxu0 0.0
        %1182 = vmatpush.msra.mxu0 0.0
        %1183 = vmatpush.msra.mxu0 0.0
        %1184 = vmatpush.msra.mxu0 0.0
        %1185 = vmatpush.msra.mxu0 0.0
        %1186 = vmatpush.msra.mxu0 0.0
        %1187 = vmatpush.msra.mxu0 0.0
        %1188 = vmatpush.msra.mxu0 %v1141
        %1189 = vmatpush.msra.mxu0 %v1140
        %1190 = vmatpush.msra.mxu0 %v1139
        %1191 = vmatpush.msra.mxu0 %v1138
        %1192 = vmatmul.f32.gmra.mxu0 %v1172
        %v1193 = vpop.f32.mrf.mxu0
        %v1194 = vadd.f32 %v1144, %v1193
        %1195 = vmatmul.f32.gmra.mxu0 %v1174
        %v1196 = vpop.f32.mrf.mxu0
        %v1197 = vadd.f32 %v1144, %v1196
        %1198 = vdwg.mxu0
        %v1201 = vrot.slane %v1194, 2
        %v1202 = vrot.slane %v1194, 4
        %v1203 = vrot.slane %v1194, 6
        %v1204 = vrot.slane %v1197, 2
        %v1205 = vrot.slane %v1197, 4
        %v1206 = vrot.slane %v1197, 6
        %1207 = vrot.lane.b32.xlu0 %v1194, 120
        %v1208 = vpop.permute.xlu0 %1207
        %1209 = vrot.lane.b32.xlu0 %v1201, 120
        %v1210 = vpop.permute.xlu0 %1209
        %1211 = vrot.lane.b32.xlu0 %v1202, 120
        %v1212 = vpop.permute.xlu0 %1211
        %1213 = vrot.lane.b32.xlu0 %v1203, 120
        %v1214 = vpop.permute.xlu0 %1213
        %1215 = vrot.lane.b32.xlu0 %v1197, 120
        %v1216 = vpop.permute.xlu0 %1215
        %1217 = vrot.lane.b32.xlu0 %v1204, 120
        %v1218 = vpop.permute.xlu0 %1217
        %1219 = vrot.lane.b32.xlu0 %v1205, 120
        %v1220 = vpop.permute.xlu0 %1219
        %1221 = vrot.lane.b32.xlu0 %v1206, 120
        %v1222 = vpop.permute.xlu0 %1221
        %1223 = vrot.lane.b32.xlu0 %v1194, 112
        %v1224 = vpop.permute.xlu0 %1223
        %1225 = vrot.lane.b32.xlu0 %v1201, 112
        %v1226 = vpop.permute.xlu0 %1225
        %1227 = vrot.lane.b32.xlu0 %v1202, 112
        %v1228 = vpop.permute.xlu0 %1227
        %1229 = vrot.lane.b32.xlu0 %v1203, 112
        %v1230 = vpop.permute.xlu0 %1229
        %1231 = vrot.lane.b32.xlu0 %v1197, 112
        %v1232 = vpop.permute.xlu0 %1231
        %1233 = vrot.lane.b32.xlu0 %v1204, 112
        %v1234 = vpop.permute.xlu0 %1233
        %1235 = vrot.lane.b32.xlu0 %v1205, 112
        %v1236 = vpop.permute.xlu0 %1235
        %1237 = vrot.lane.b32.xlu0 %v1206, 112
        %v1238 = vpop.permute.xlu0 %1237
        %1239 = vrot.lane.b32.xlu0 %v1194, 104
        %v1240 = vpop.permute.xlu0 %1239
        %1241 = vrot.lane.b32.xlu0 %v1201, 104
        %v1242 = vpop.permute.xlu0 %1241
        %1243 = vrot.lane.b32.xlu0 %v1202, 104
        %v1244 = vpop.permute.xlu0 %1243
        %1245 = vrot.lane.b32.xlu0 %v1203, 104
        %v1246 = vpop.permute.xlu0 %1245
        %1247 = vrot.lane.b32.xlu0 %v1197, 104
        %v1248 = vpop.permute.xlu0 %1247
        %1249 = vrot.lane.b32.xlu0 %v1204, 104
        %v1250 = vpop.permute.xlu0 %1249
        %1251 = vrot.lane.b32.xlu0 %v1205, 104
        %v1252 = vpop.permute.xlu0 %1251
        %1253 = vrot.lane.b32.xlu0 %v1206, 104
        %v1254 = vpop.permute.xlu0 %1253
        %1255 = vst [vmem:[#allocation1] ss:$4 sm:$0xff] %v1194
        %v1256 = vld.sshfl [vmem:[#allocation1] sm:$0xff pattern:$0x73625140]
        %1257 = vrot.lane.b32.xlu0 %v1256, 96
        %v1258 = vpop.permute.xlu0 %1257
        %vm1259 = vcmask 64512
        %v1260 = vsel %vm1259, %v1194, 0
        %v1262 = vsel %vm1259, %v1258, 0
        %1264 = vmatpush.xpose.msra.mxu0 0.0
        %1265 = vmatpush.xpose.msra.mxu0 0.0
        %1266 = vmatpush.xpose.msra.mxu0 0.0
        %1267 = vmatpush.xpose.msra.mxu0 0.0
        %1268 = vmatpush.xpose.msra.mxu0 0.0
        %1269 = vmatpush.xpose.msra.mxu0 0.0
        %1270 = vmatpush.xpose.msra.mxu0 0.0
        %1271 = vmatpush.xpose.msra.mxu0 0.0
        %1272 = vmatpush.xpose.msra.mxu0 0.0
        %1273 = vmatpush.xpose.msra.mxu0 0.0
        %1274 = vmatpush.xpose.msra.mxu0 0.0
        %1275 = vmatpush.xpose.msra.mxu0 0.0
        %1276 = vmatpush.xpose.msra.mxu0 0.0
        %1277 = vmatpush.xpose.msra.mxu0 0.0
        %1278 = vmatpush.xpose.msra.mxu0 0.0
        %1279 = vmatpush.xpose.msra.mxu0 %v1262
        %1280 = vmatmul.f32.gmra.mxu0 %v1260
        %v1281 = vpop.f32.mrf.mxu0
        %v1282 = vadd.f32 0.0, %v1281
        %1283 = vdwg.mxu0
        %1284 = vst [vmem:[#allocation1] ss:$4 sm:$0xff] %v1201
        %v1285 = vld.sshfl [vmem:[#allocation1] sm:$0xff pattern:$0x73625140]
        %1286 = vrot.lane.b32.xlu0 %v1285, 96
        %v1287 = vpop.permute.xlu0 %1286
        %v1288 = vsel %vm1259, %v1201, 0
        %v1290 = vsel %vm1259, %v1287, 0
        %1292 = vmatpush.xpose.msra.mxu0 0.0
        %1293 = vmatpush.xpose.msra.mxu0 0.0
        %1294 = vmatpush.xpose.msra.mxu0 0.0
        %1295 = vmatpush.xpose.msra.mxu0 0.0
        %1296 = vmatpush.xpose.msra.mxu0 0.0
        %1297 = vmatpush.xpose.msra.mxu0 0.0
        %1298 = vmatpush.xpose.msra.mxu0 0.0
        %1299 = vmatpush.xpose.msra.mxu0 0.0
        %1300 = vmatpush.xpose.msra.mxu0 0.0
        %1301 = vmatpush.xpose.msra.mxu0 0.0
        %1302 = vmatpush.xpose.msra.mxu0 0.0
        %1303 = vmatpush.xpose.msra.mxu0 0.0
        %1304 = vmatpush.xpose.msra.mxu0 0.0
        %1305 = vmatpush.xpose.msra.mxu0 0.0
        %1306 = vmatpush.xpose.msra.mxu0 0.0
        %1307 = vmatpush.xpose.msra.mxu0 %v1290
        %1308 = vmatmul.f32.gmra.mxu0 %v1288
        %v1309 = vpop.f32.mrf.mxu0
        %v1310 = vadd.f32 0.0, %v1309
        %1311 = vdwg.mxu0
        %1312 = vst [vmem:[#allocation1] ss:$4 sm:$0xff] %v1202
        %v1313 = vld.sshfl [vmem:[#allocation1] sm:$0xff pattern:$0x73625140]
        %1314 = vrot.lane.b32.xlu0 %v1313, 96
        %v1315 = vpop.permute.xlu0 %1314
        %v1316 = vsel %vm1259, %v1202, 0
        %v1318 = vsel %vm1259, %v1315, 0
        %1320 = vmatpush.xpose.msra.mxu0 0.0
        %1321 = vmatpush.xpose.msra.mxu0 0.0
        %1322 = vmatpush.xpose.msra.mxu0 0.0
        %1323 = vmatpush.xpose.msra.mxu0 0.0
        %1324 = vmatpush.xpose.msra.mxu0 0.0
        %1325 = vmatpush.xpose.msra.mxu0 0.0
        %1326 = vmatpush.xpose.msra.mxu0 0.0
        %1327 = vmatpush.xpose.msra.mxu0 0.0
        %1328 = vmatpush.xpose.msra.mxu0 0.0
        %1329 = vmatpush.xpose.msra.mxu0 0.0
        %1330 = vmatpush.xpose.msra.mxu0 0.0
        %1331 = vmatpush.xpose.msra.mxu0 0.0
        %1332 = vmatpush.xpose.msra.mxu0 0.0
        %1333 = vmatpush.xpose.msra.mxu0 0.0
        %1334 = vmatpush.xpose.msra.mxu0 0.0
        %1335 = vmatpush.xpose.msra.mxu0 %v1318
        %1336 = vmatmul.f32.gmra.mxu0 %v1316
        %v1337 = vpop.f32.mrf.mxu0
        %v1338 = vadd.f32 0.0, %v1337
        %1339 = vdwg.mxu0
        %1340 = vst [vmem:[#allocation1] ss:$4 sm:$0xff] %v1203
        %v1341 = vld.sshfl [vmem:[#allocation1] sm:$0xff pattern:$0x73625140]
        %1342 = vrot.lane.b32.xlu0 %v1341, 96
        %v1343 = vpop.permute.xlu0 %1342
        %v1344 = vsel %vm1259, %v1203, 0
        %v1346 = vsel %vm1259, %v1343, 0
        %1348 = vmatpush.xpose.msra.mxu0 0.0
        %1349 = vmatpush.xpose.msra.mxu0 0.0
        %1350 = vmatpush.xpose.msra.mxu0 0.0
        %1351 = vmatpush.xpose.msra.mxu0 0.0
        %1352 = vmatpush.xpose.msra.mxu0 0.0
        %1353 = vmatpush.xpose.msra.mxu0 0.0
        %1354 = vmatpush.xpose.msra.mxu0 0.0
        %1355 = vmatpush.xpose.msra.mxu0 0.0
        %1356 = vmatpush.xpose.msra.mxu0 0.0
        %1357 = vmatpush.xpose.msra.mxu0 0.0
        %1358 = vmatpush.xpose.msra.mxu0 0.0
        %1359 = vmatpush.xpose.msra.mxu0 0.0
        %1360 = vmatpush.xpose.msra.mxu0 0.0
        %1361 = vmatpush.xpose.msra.mxu0 0.0
        %1362 = vmatpush.xpose.msra.mxu0 0.0
        %1363 = vmatpush.xpose.msra.mxu0 %v1346
        %1364 = vmatmul.f32.gmra.mxu0 %v1344
        %v1365 = vpop.f32.mrf.mxu0
        %v1366 = vadd.f32 0.0, %v1365
        %1367 = vdwg.mxu0
        %1368 = vst [vmem:[#allocation1] ss:$4 sm:$0xff] %v1197
        %v1369 = vld.sshfl [vmem:[#allocation1] sm:$0xff pattern:$0x73625140]
        %1370 = vrot.lane.b32.xlu0 %v1369, 96
        %v1371 = vpop.permute.xlu0 %1370
        %v1372 = vsel %vm1259, %v1197, 0
        %v1374 = vsel %vm1259, %v1371, 0
        %1376 = vmatpush.xpose.msra.mxu0 0.0
        %1377 = vmatpush.xpose.msra.mxu0 0.0
        %1378 = vmatpush.xpose.msra.mxu0 0.0
        %1379 = vmatpush.xpose.msra.mxu0 0.0
        %1380 = vmatpush.xpose.msra.mxu0 0.0
        %1381 = vmatpush.xpose.msra.mxu0 0.0
        %1382 = vmatpush.xpose.msra.mxu0 0.0
        %1383 = vmatpush.xpose.msra.mxu0 0.0
        %1384 = vmatpush.xpose.msra.mxu0 0.0
        %1385 = vmatpush.xpose.msra.mxu0 0.0
        %1386 = vmatpush.xpose.msra.mxu0 0.0
        %1387 = vmatpush.xpose.msra.mxu0 0.0
        %1388 = vmatpush.xpose.msra.mxu0 0.0
        %1389 = vmatpush.xpose.msra.mxu0 0.0
        %1390 = vmatpush.xpose.msra.mxu0 0.0
        %1391 = vmatpush.xpose.msra.mxu0 %v1374
        %1392 = vmatmul.f32.gmra.mxu0 %v1372
        %v1393 = vpop.f32.mrf.mxu0
        %v1394 = vadd.f32 0.0, %v1393
        %1395 = vdwg.mxu0
        %1396 = vst [vmem:[#allocation1] ss:$4 sm:$0xff] %v1204
        %v1397 = vld.sshfl [vmem:[#allocation1] sm:$0xff pattern:$0x73625140]
        %1398 = vrot.lane.b32.xlu0 %v1397, 96
        %v1399 = vpop.permute.xlu0 %1398
        %v1400 = vsel %vm1259, %v1204, 0
        %v1402 = vsel %vm1259, %v1399, 0
        %1404 = vmatpush.xpose.msra.mxu0 0.0
        %1405 = vmatpush.xpose.msra.mxu0 0.0
        %1406 = vmatpush.xpose.msra.mxu0 0.0
        %1407 = vmatpush.xpose.msra.mxu0 0.0
        %1408 = vmatpush.xpose.msra.mxu0 0.0
        %1409 = vmatpush.xpose.msra.mxu0 0.0
        %1410 = vmatpush.xpose.msra.mxu0 0.0
        %1411 = vmatpush.xpose.msra.mxu0 0.0
        %1412 = vmatpush.xpose.msra.mxu0 0.0
        %1413 = vmatpush.xpose.msra.mxu0 0.0
        %1414 = vmatpush.xpose.msra.mxu0 0.0
        %1415 = vmatpush.xpose.msra.mxu0 0.0
        %1416 = vmatpush.xpose.msra.mxu0 0.0
        %1417 = vmatpush.xpose.msra.mxu0 0.0
        %1418 = vmatpush.xpose.msra.mxu0 0.0
        %1419 = vmatpush.xpose.msra.mxu0 %v1402
        %1420 = vmatmul.f32.gmra.mxu0 %v1400
        %v1421 = vpop.f32.mrf.mxu0
        %v1422 = vadd.f32 0.0, %v1421
        %1423 = vdwg.mxu0
        %1424 = vst [vmem:[#allocation1] ss:$4 sm:$0xff] %v1205
        %v1425 = vld.sshfl [vmem:[#allocation1] sm:$0xff pattern:$0x73625140]
        %1426 = vrot.lane.b32.xlu0 %v1425, 96
        %v1427 = vpop.permute.xlu0 %1426
        %v1428 = vsel %vm1259, %v1205, 0
        %v1430 = vsel %vm1259, %v1427, 0
        %1432 = vmatpush.xpose.msra.mxu0 0.0
        %1433 = vmatpush.xpose.msra.mxu0 0.0
        %1434 = vmatpush.xpose.msra.mxu0 0.0
        %1435 = vmatpush.xpose.msra.mxu0 0.0
        %1436 = vmatpush.xpose.msra.mxu0 0.0
        %1437 = vmatpush.xpose.msra.mxu0 0.0
        %1438 = vmatpush.xpose.msra.mxu0 0.0
        %1439 = vmatpush.xpose.msra.mxu0 0.0
        %1440 = vmatpush.xpose.msra.mxu0 0.0
        %1441 = vmatpush.xpose.msra.mxu0 0.0
        %1442 = vmatpush.xpose.msra.mxu0 0.0
        %1443 = vmatpush.xpose.msra.mxu0 0.0
        %1444 = vmatpush.xpose.msra.mxu0 0.0
        %1445 = vmatpush.xpose.msra.mxu0 0.0
        %1446 = vmatpush.xpose.msra.mxu0 0.0
        %1447 = vmatpush.xpose.msra.mxu0 %v1430
        %1448 = vmatmul.f32.gmra.mxu0 %v1428
        %v1449 = vpop.f32.mrf.mxu0
        %v1450 = vadd.f32 0.0, %v1449
        %1451 = vdwg.mxu0
        %1452 = vst [vmem:[#allocation1] ss:$4 sm:$0xff] %v1206
        %v1453 = vld.sshfl [vmem:[#allocation1] sm:$0xff pattern:$0x73625140]
        %1454 = vrot.lane.b32.xlu0 %v1453, 96
        %v1455 = vpop.permute.xlu0 %1454
        %v1456 = vsel %vm1259, %v1206, 0
        %v1458 = vsel %vm1259, %v1455, 0
        %1460 = vmatpush.xpose.msra.mxu0 0.0
        %1461 = vmatpush.xpose.msra.mxu0 0.0
        %1462 = vmatpush.xpose.msra.mxu0 0.0
        %1463 = vmatpush.xpose.msra.mxu0 0.0
        %1464 = vmatpush.xpose.msra.mxu0 0.0
        %1465 = vmatpush.xpose.msra.mxu0 0.0
        %1466 = vmatpush.xpose.msra.mxu0 0.0
        %1467 = vmatpush.xpose.msra.mxu0 0.0
        %1468 = vmatpush.xpose.msra.mxu0 0.0
        %1469 = vmatpush.xpose.msra.mxu0 0.0
        %1470 = vmatpush.xpose.msra.mxu0 0.0
        %1471 = vmatpush.xpose.msra.mxu0 0.0
        %1472 = vmatpush.xpose.msra.mxu0 0.0
        %1473 = vmatpush.xpose.msra.mxu0 0.0
        %1474 = vmatpush.xpose.msra.mxu0 0.0
        %1475 = vmatpush.xpose.msra.mxu0 %v1458
        %1476 = vmatmul.f32.gmra.mxu0 %v1456
        %v1477 = vpop.f32.mrf.mxu0
        %v1478 = vadd.f32 0.0, %v1477
        %1479 = vdwg.mxu0
        %1480 = vst [vmem:[#allocation1] ss:$4 sm:$0xff] %v1208
        %v1481 = vld.sshfl [vmem:[#allocation1] sm:$0xff pattern:$0x73625140]
        %1482 = vrot.lane.b32.xlu0 %v1481, 96
        %v1483 = vpop.permute.xlu0 %1482
        %v1484 = vsel %vm1259, %v1208, 0
        %v1486 = vsel %vm1259, %v1483, 0
        %1488 = vmatpush.xpose.msra.mxu0 0.0
        %1489 = vmatpush.xpose.msra.mxu0 0.0
        %1490 = vmatpush.xpose.msra.mxu0 0.0
        %1491 = vmatpush.xpose.msra.mxu0 0.0
        %1492 = vmatpush.xpose.msra.mxu0 0.0
        %1493 = vmatpush.xpose.msra.mxu0 0.0
        %1494 = vmatpush.xpose.msra.mxu0 0.0
        %1495 = vmatpush.xpose.msra.mxu0 0.0
        %1496 = vmatpush.xpose.msra.mxu0 0.0
        %1497 = vmatpush.xpose.msra.mxu0 0.0
        %1498 = vmatpush.xpose.msra.mxu0 0.0
        %1499 = vmatpush.xpose.msra.mxu0 0.0
        %1500 = vmatpush.xpose.msra.mxu0 0.0
        %1501 = vmatpush.xpose.msra.mxu0 0.0
        %1502 = vmatpush.xpose.msra.mxu0 0.0
        %1503 = vmatpush.xpose.msra.mxu0 %v1486
        %1504 = vmatmul.f32.gmra.mxu0 %v1484
        %v1505 = vpop.f32.mrf.mxu0
        %v1506 = vadd.f32 0.0, %v1505
        %1507 = vdwg.mxu0
        %1508 = vst [vmem:[#allocation1] ss:$4 sm:$0xff] %v1210
        %v1509 = vld.sshfl [vmem:[#allocation1] sm:$0xff pattern:$0x73625140]
        %1510 = vrot.lane.b32.xlu0 %v1509, 96
        %v1511 = vpop.permute.xlu0 %1510
        %v1512 = vsel %vm1259, %v1210, 0
        %v1514 = vsel %vm1259, %v1511, 0
        %1516 = vmatpush.xpose.msra.mxu0 0.0
        %1517 = vmatpush.xpose.msra.mxu0 0.0
        %1518 = vmatpush.xpose.msra.mxu0 0.0
        %1519 = vmatpush.xpose.msra.mxu0 0.0
        %1520 = vmatpush.xpose.msra.mxu0 0.0
        %1521 = vmatpush.xpose.msra.mxu0 0.0
        %1522 = vmatpush.xpose.msra.mxu0 0.0
        %1523 = vmatpush.xpose.msra.mxu0 0.0
        %1524 = vmatpush.xpose.msra.mxu0 0.0
        %1525 = vmatpush.xpose.msra.mxu0 0.0
        %1526 = vmatpush.xpose.msra.mxu0 0.0
        %1527 = vmatpush.xpose.msra.mxu0 0.0
        %1528 = vmatpush.xpose.msra.mxu0 0.0
        %1529 = vmatpush.xpose.msra.mxu0 0.0
        %1530 = vmatpush.xpose.msra.mxu0 0.0
        %1531 = vmatpush.xpose.msra.mxu0 %v1514
        %1532 = vmatmul.f32.gmra.mxu0 %v1512
        %v1533 = vpop.f32.mrf.mxu0
        %v1534 = vadd.f32 0.0, %v1533
        %1535 = vdwg.mxu0
        %1536 = vst [vmem:[#allocation1] ss:$4 sm:$0xff] %v1212
        %v1537 = vld.sshfl [vmem:[#allocation1] sm:$0xff pattern:$0x73625140]
        %1538 = vrot.lane.b32.xlu0 %v1537, 96
        %v1539 = vpop.permute.xlu0 %1538
        %v1540 = vsel %vm1259, %v1212, 0
        %v1542 = vsel %vm1259, %v1539, 0
        %1544 = vmatpush.xpose.msra.mxu0 0.0
        %1545 = vmatpush.xpose.msra.mxu0 0.0
        %1546 = vmatpush.xpose.msra.mxu0 0.0
        %1547 = vmatpush.xpose.msra.mxu0 0.0
        %1548 = vmatpush.xpose.msra.mxu0 0.0
        %1549 = vmatpush.xpose.msra.mxu0 0.0
        %1550 = vmatpush.xpose.msra.mxu0 0.0
        %1551 = vmatpush.xpose.msra.mxu0 0.0
        %1552 = vmatpush.xpose.msra.mxu0 0.0
        %1553 = vmatpush.xpose.msra.mxu0 0.0
        %1554 = vmatpush.xpose.msra.mxu0 0.0
        %1555 = vmatpush.xpose.msra.mxu0 0.0
        %1556 = vmatpush.xpose.msra.mxu0 0.0
        %1557 = vmatpush.xpose.msra.mxu0 0.0
        %1558 = vmatpush.xpose.msra.mxu0 0.0
        %1559 = vmatpush.xpose.msra.mxu0 %v1542
        %1560 = vmatmul.f32.gmra.mxu0 %v1540
        %v1561 = vpop.f32.mrf.mxu0
        %v1562 = vadd.f32 0.0, %v1561
        %1563 = vdwg.mxu0
        %1564 = vst [vmem:[#allocation1] ss:$4 sm:$0xff] %v1214
        %v1565 = vld.sshfl [vmem:[#allocation1] sm:$0xff pattern:$0x73625140]
        %1566 = vrot.lane.b32.xlu0 %v1565, 96
        %v1567 = vpop.permute.xlu0 %1566
        %v1568 = vsel %vm1259, %v1214, 0
        %v1570 = vsel %vm1259, %v1567, 0
        %1572 = vmatpush.xpose.msra.mxu0 0.0
        %1573 = vmatpush.xpose.msra.mxu0 0.0
        %1574 = vmatpush.xpose.msra.mxu0 0.0
        %1575 = vmatpush.xpose.msra.mxu0 0.0
        %1576 = vmatpush.xpose.msra.mxu0 0.0
        %1577 = vmatpush.xpose.msra.mxu0 0.0
        %1578 = vmatpush.xpose.msra.mxu0 0.0
        %1579 = vmatpush.xpose.msra.mxu0 0.0
        %1580 = vmatpush.xpose.msra.mxu0 0.0
        %1581 = vmatpush.xpose.msra.mxu0 0.0
        %1582 = vmatpush.xpose.msra.mxu0 0.0
        %1583 = vmatpush.xpose.msra.mxu0 0.0
        %1584 = vmatpush.xpose.msra.mxu0 0.0
        %1585 = vmatpush.xpose.msra.mxu0 0.0
        %1586 = vmatpush.xpose.msra.mxu0 0.0
        %1587 = vmatpush.xpose.msra.mxu0 %v1570
        %1588 = vmatmul.f32.gmra.mxu0 %v1568
        %v1589 = vpop.f32.mrf.mxu0
        %v1590 = vadd.f32 0.0, %v1589
        %1591 = vdwg.mxu0
        %1592 = vst [vmem:[#allocation1] ss:$4 sm:$0xff] %v1216
        %v1593 = vld.sshfl [vmem:[#allocation1] sm:$0xff pattern:$0x73625140]
        %1594 = vrot.lane.b32.xlu0 %v1593, 96
        %v1595 = vpop.permute.xlu0 %1594
        %v1596 = vsel %vm1259, %v1216, 0
        %v1598 = vsel %vm1259, %v1595, 0
        %1600 = vmatpush.xpose.msra.mxu0 0.0
        %1601 = vmatpush.xpose.msra.mxu0 0.0
        %1602 = vmatpush.xpose.msra.mxu0 0.0
        %1603 = vmatpush.xpose.msra.mxu0 0.0
        %1604 = vmatpush.xpose.msra.mxu0 0.0
        %1605 = vmatpush.xpose.msra.mxu0 0.0
        %1606 = vmatpush.xpose.msra.mxu0 0.0
        %1607 = vmatpush.xpose.msra.mxu0 0.0
        %1608 = vmatpush.xpose.msra.mxu0 0.0
        %1609 = vmatpush.xpose.msra.mxu0 0.0
        %1610 = vmatpush.xpose.msra.mxu0 0.0
        %1611 = vmatpush.xpose.msra.mxu0 0.0
        %1612 = vmatpush.xpose.msra.mxu0 0.0
        %1613 = vmatpush.xpose.msra.mxu0 0.0
        %1614 = vmatpush.xpose.msra.mxu0 0.0
        %1615 = vmatpush.xpose.msra.mxu0 %v1598
        %1616 = vmatmul.f32.gmra.mxu0 %v1596
        %v1617 = vpop.f32.mrf.mxu0
        %v1618 = vadd.f32 0.0, %v1617
        %1619 = vdwg.mxu0
        %1620 = vst [vmem:[#allocation1] ss:$4 sm:$0xff] %v1218
        %v1621 = vld.sshfl [vmem:[#allocation1] sm:$0xff pattern:$0x73625140]
        %1622 = vrot.lane.b32.xlu0 %v1621, 96
        %v1623 = vpop.permute.xlu0 %1622
        %v1624 = vsel %vm1259, %v1218, 0
        %v1626 = vsel %vm1259, %v1623, 0
        %1628 = vmatpush.xpose.msra.mxu0 0.0
        %1629 = vmatpush.xpose.msra.mxu0 0.0
        %1630 = vmatpush.xpose.msra.mxu0 0.0
        %1631 = vmatpush.xpose.msra.mxu0 0.0
        %1632 = vmatpush.xpose.msra.mxu0 0.0
        %1633 = vmatpush.xpose.msra.mxu0 0.0
        %1634 = vmatpush.xpose.msra.mxu0 0.0
        %1635 = vmatpush.xpose.msra.mxu0 0.0
        %1636 = vmatpush.xpose.msra.mxu0 0.0
        %1637 = vmatpush.xpose.msra.mxu0 0.0
        %1638 = vmatpush.xpose.msra.mxu0 0.0
        %1639 = vmatpush.xpose.msra.mxu0 0.0
        %1640 = vmatpush.xpose.msra.mxu0 0.0
        %1641 = vmatpush.xpose.msra.mxu0 0.0
        %1642 = vmatpush.xpose.msra.mxu0 0.0
        %1643 = vmatpush.xpose.msra.mxu0 %v1626
        %1644 = vmatmul.f32.gmra.mxu0 %v1624
        %v1645 = vpop.f32.mrf.mxu0
        %v1646 = vadd.f32 0.0, %v1645
        %1647 = vdwg.mxu0
        %1648 = vst [vmem:[#allocation1] ss:$4 sm:$0xff] %v1220
        %v1649 = vld.sshfl [vmem:[#allocation1] sm:$0xff pattern:$0x73625140]
        %1650 = vrot.lane.b32.xlu0 %v1649, 96
        %v1651 = vpop.permute.xlu0 %1650
        %v1652 = vsel %vm1259, %v1220, 0
        %v1654 = vsel %vm1259, %v1651, 0
        %1656 = vmatpush.xpose.msra.mxu0 0.0
        %1657 = vmatpush.xpose.msra.mxu0 0.0
        %1658 = vmatpush.xpose.msra.mxu0 0.0
        %1659 = vmatpush.xpose.msra.mxu0 0.0
        %1660 = vmatpush.xpose.msra.mxu0 0.0
        %1661 = vmatpush.xpose.msra.mxu0 0.0
        %1662 = vmatpush.xpose.msra.mxu0 0.0
        %1663 = vmatpush.xpose.msra.mxu0 0.0
        %1664 = vmatpush.xpose.msra.mxu0 0.0
        %1665 = vmatpush.xpose.msra.mxu0 0.0
        %1666 = vmatpush.xpose.msra.mxu0 0.0
        %1667 = vmatpush.xpose.msra.mxu0 0.0
        %1668 = vmatpush.xpose.msra.mxu0 0.0
        %1669 = vmatpush.xpose.msra.mxu0 0.0
        %1670 = vmatpush.xpose.msra.mxu0 0.0
        %1671 = vmatpush.xpose.msra.mxu0 %v1654
        %1672 = vmatmul.f32.gmra.mxu0 %v1652
        %v1673 = vpop.f32.mrf.mxu0
        %v1674 = vadd.f32 0.0, %v1673
        %1675 = vdwg.mxu0
        %1676 = vst [vmem:[#allocation1] ss:$4 sm:$0xff] %v1222
        %v1677 = vld.sshfl [vmem:[#allocation1] sm:$0xff pattern:$0x73625140]
        %1678 = vrot.lane.b32.xlu0 %v1677, 96
        %v1679 = vpop.permute.xlu0 %1678
        %v1680 = vsel %vm1259, %v1222, 0
        %v1682 = vsel %vm1259, %v1679, 0
        %1684 = vmatpush.xpose.msra.mxu0 0.0
        %1685 = vmatpush.xpose.msra.mxu0 0.0
        %1686 = vmatpush.xpose.msra.mxu0 0.0
        %1687 = vmatpush.xpose.msra.mxu0 0.0
        %1688 = vmatpush.xpose.msra.mxu0 0.0
        %1689 = vmatpush.xpose.msra.mxu0 0.0
        %1690 = vmatpush.xpose.msra.mxu0 0.0
        %1691 = vmatpush.xpose.msra.mxu0 0.0
        %1692 = vmatpush.xpose.msra.mxu0 0.0
        %1693 = vmatpush.xpose.msra.mxu0 0.0
        %1694 = vmatpush.xpose.msra.mxu0 0.0
        %1695 = vmatpush.xpose.msra.mxu0 0.0
        %1696 = vmatpush.xpose.msra.mxu0 0.0
        %1697 = vmatpush.xpose.msra.mxu0 0.0
        %1698 = vmatpush.xpose.msra.mxu0 0.0
        %1699 = vmatpush.xpose.msra.mxu0 %v1682
        %1700 = vmatmul.f32.gmra.mxu0 %v1680
        %v1701 = vpop.f32.mrf.mxu0
        %v1702 = vadd.f32 0.0, %v1701
        %1703 = vdwg.mxu0
        %1704 = vst [vmem:[#allocation1] ss:$4 sm:$0xff] %v1224
        %v1705 = vld.sshfl [vmem:[#allocation1] sm:$0xff pattern:$0x73625140]
        %1706 = vrot.lane.b32.xlu0 %v1705, 96
        %v1707 = vpop.permute.xlu0 %1706
        %v1708 = vsel %vm1259, %v1224, 0
        %v1710 = vsel %vm1259, %v1707, 0
        %1712 = vmatpush.xpose.msra.mxu0 0.0
        %1713 = vmatpush.xpose.msra.mxu0 0.0
        %1714 = vmatpush.xpose.msra.mxu0 0.0
        %1715 = vmatpush.xpose.msra.mxu0 0.0
        %1716 = vmatpush.xpose.msra.mxu0 0.0
        %1717 = vmatpush.xpose.msra.mxu0 0.0
        %1718 = vmatpush.xpose.msra.mxu0 0.0
        %1719 = vmatpush.xpose.msra.mxu0 0.0
        %1720 = vmatpush.xpose.msra.mxu0 0.0
        %1721 = vmatpush.xpose.msra.mxu0 0.0
        %1722 = vmatpush.xpose.msra.mxu0 0.0
        %1723 = vmatpush.xpose.msra.mxu0 0.0
        %1724 = vmatpush.xpose.msra.mxu0 0.0
        %1725 = vmatpush.xpose.msra.mxu0 0.0
        %1726 = vmatpush.xpose.msra.mxu0 0.0
        %1727 = vmatpush.xpose.msra.mxu0 %v1710
        %1728 = vmatmul.f32.gmra.mxu0 %v1708
        %v1729 = vpop.f32.mrf.mxu0
        %v1730 = vadd.f32 0.0, %v1729
        %1731 = vdwg.mxu0
        %1732 = vst [vmem:[#allocation1] ss:$4 sm:$0xff] %v1226
        %v1733 = vld.sshfl [vmem:[#allocation1] sm:$0xff pattern:$0x73625140]
        %1734 = vrot.lane.b32.xlu0 %v1733, 96
        %v1735 = vpop.permute.xlu0 %1734
        %v1736 = vsel %vm1259, %v1226, 0
        %v1738 = vsel %vm1259, %v1735, 0
        %1740 = vmatpush.xpose.msra.mxu0 0.0
        %1741 = vmatpush.xpose.msra.mxu0 0.0
        %1742 = vmatpush.xpose.msra.mxu0 0.0
        %1743 = vmatpush.xpose.msra.mxu0 0.0
        %1744 = vmatpush.xpose.msra.mxu0 0.0
        %1745 = vmatpush.xpose.msra.mxu0 0.0
        %1746 = vmatpush.xpose.msra.mxu0 0.0
        %1747 = vmatpush.xpose.msra.mxu0 0.0
        %1748 = vmatpush.xpose.msra.mxu0 0.0
        %1749 = vmatpush.xpose.msra.mxu0 0.0
        %1750 = vmatpush.xpose.msra.mxu0 0.0
        %1751 = vmatpush.xpose.msra.mxu0 0.0
        %1752 = vmatpush.xpose.msra.mxu0 0.0
        %1753 = vmatpush.xpose.msra.mxu0 0.0
        %1754 = vmatpush.xpose.msra.mxu0 0.0
        %1755 = vmatpush.xpose.msra.mxu0 %v1738
        %1756 = vmatmul.f32.gmra.mxu0 %v1736
        %v1757 = vpop.f32.mrf.mxu0
        %v1758 = vadd.f32 0.0, %v1757
        %1759 = vdwg.mxu0
        %1760 = vst [vmem:[#allocation1] ss:$4 sm:$0xff] %v1228
        %v1761 = vld.sshfl [vmem:[#allocation1] sm:$0xff pattern:$0x73625140]
        %1762 = vrot.lane.b32.xlu0 %v1761, 96
        %v1763 = vpop.permute.xlu0 %1762
        %v1764 = vsel %vm1259, %v1228, 0
        %v1766 = vsel %vm1259, %v1763, 0
        %1768 = vmatpush.xpose.msra.mxu0 0.0
        %1769 = vmatpush.xpose.msra.mxu0 0.0
        %1770 = vmatpush.xpose.msra.mxu0 0.0
        %1771 = vmatpush.xpose.msra.mxu0 0.0
        %1772 = vmatpush.xpose.msra.mxu0 0.0
        %1773 = vmatpush.xpose.msra.mxu0 0.0
        %1774 = vmatpush.xpose.msra.mxu0 0.0
        %1775 = vmatpush.xpose.msra.mxu0 0.0
        %1776 = vmatpush.xpose.msra.mxu0 0.0
        %1777 = vmatpush.xpose.msra.mxu0 0.0
        %1778 = vmatpush.xpose.msra.mxu0 0.0
        %1779 = vmatpush.xpose.msra.mxu0 0.0
        %1780 = vmatpush.xpose.msra.mxu0 0.0
        %1781 = vmatpush.xpose.msra.mxu0 0.0
        %1782 = vmatpush.xpose.msra.mxu0 0.0
        %1783 = vmatpush.xpose.msra.mxu0 %v1766
        %1784 = vmatmul.f32.gmra.mxu0 %v1764
        %v1785 = vpop.f32.mrf.mxu0
        %v1786 = vadd.f32 0.0, %v1785
        %1787 = vdwg.mxu0
        %1788 = vst [vmem:[#allocation1] ss:$4 sm:$0xff] %v1230
        %v1789 = vld.sshfl [vmem:[#allocation1] sm:$0xff pattern:$0x73625140]
        %1790 = vrot.lane.b32.xlu0 %v1789, 96
        %v1791 = vpop.permute.xlu0 %1790
        %v1792 = vsel %vm1259, %v1230, 0
        %v1794 = vsel %vm1259, %v1791, 0
        %1796 = vmatpush.xpose.msra.mxu0 0.0
        %1797 = vmatpush.xpose.msra.mxu0 0.0
        %1798 = vmatpush.xpose.msra.mxu0 0.0
        %1799 = vmatpush.xpose.msra.mxu0 0.0
        %1800 = vmatpush.xpose.msra.mxu0 0.0
        %1801 = vmatpush.xpose.msra.mxu0 0.0
        %1802 = vmatpush.xpose.msra.mxu0 0.0
        %1803 = vmatpush.xpose.msra.mxu0 0.0
        %1804 = vmatpush.xpose.msra.mxu0 0.0
        %1805 = vmatpush.xpose.msra.mxu0 0.0
        %1806 = vmatpush.xpose.msra.mxu0 0.0
        %1807 = vmatpush.xpose.msra.mxu0 0.0
        %1808 = vmatpush.xpose.msra.mxu0 0.0
        %1809 = vmatpush.xpose.msra.mxu0 0.0
        %1810 = vmatpush.xpose.msra.mxu0 0.0
        %1811 = vmatpush.xpose.msra.mxu0 %v1794
        %1812 = vmatmul.f32.gmra.mxu0 %v1792
        %v1813 = vpop.f32.mrf.mxu0
        %v1814 = vadd.f32 0.0, %v1813
        %1815 = vdwg.mxu0
        %1816 = vst [vmem:[#allocation1] ss:$4 sm:$0xff] %v1232
        %v1817 = vld.sshfl [vmem:[#allocation1] sm:$0xff pattern:$0x73625140]
        %1818 = vrot.lane.b32.xlu0 %v1817, 96
        %v1819 = vpop.permute.xlu0 %1818
        %v1820 = vsel %vm1259, %v1232, 0
        %v1822 = vsel %vm1259, %v1819, 0
        %1824 = vmatpush.xpose.msra.mxu0 0.0
        %1825 = vmatpush.xpose.msra.mxu0 0.0
        %1826 = vmatpush.xpose.msra.mxu0 0.0
        %1827 = vmatpush.xpose.msra.mxu0 0.0
        %1828 = vmatpush.xpose.msra.mxu0 0.0
        %1829 = vmatpush.xpose.msra.mxu0 0.0
        %1830 = vmatpush.xpose.msra.mxu0 0.0
        %1831 = vmatpush.xpose.msra.mxu0 0.0
        %1832 = vmatpush.xpose.msra.mxu0 0.0
        %1833 = vmatpush.xpose.msra.mxu0 0.0
        %1834 = vmatpush.xpose.msra.mxu0 0.0
        %1835 = vmatpush.xpose.msra.mxu0 0.0
        %1836 = vmatpush.xpose.msra.mxu0 0.0
        %1837 = vmatpush.xpose.msra.mxu0 0.0
        %1838 = vmatpush.xpose.msra.mxu0 0.0
        %1839 = vmatpush.xpose.msra.mxu0 %v1822
        %1840 = vmatmul.f32.gmra.mxu0 %v1820
        %v1841 = vpop.f32.mrf.mxu0
        %v1842 = vadd.f32 0.0, %v1841
        %1843 = vdwg.mxu0
        %1844 = vst [vmem:[#allocation1] ss:$4 sm:$0xff] %v1234
        %v1845 = vld.sshfl [vmem:[#allocation1] sm:$0xff pattern:$0x73625140]
        %1846 = vrot.lane.b32.xlu0 %v1845, 96
        %v1847 = vpop.permute.xlu0 %1846
        %v1848 = vsel %vm1259, %v1234, 0
        %v1850 = vsel %vm1259, %v1847, 0
        %1852 = vmatpush.xpose.msra.mxu0 0.0
        %1853 = vmatpush.xpose.msra.mxu0 0.0
        %1854 = vmatpush.xpose.msra.mxu0 0.0
        %1855 = vmatpush.xpose.msra.mxu0 0.0
        %1856 = vmatpush.xpose.msra.mxu0 0.0
        %1857 = vmatpush.xpose.msra.mxu0 0.0
        %1858 = vmatpush.xpose.msra.mxu0 0.0
        %1859 = vmatpush.xpose.msra.mxu0 0.0
        %1860 = vmatpush.xpose.msra.mxu0 0.0
        %1861 = vmatpush.xpose.msra.mxu0 0.0
        %1862 = vmatpush.xpose.msra.mxu0 0.0
        %1863 = vmatpush.xpose.msra.mxu0 0.0
        %1864 = vmatpush.xpose.msra.mxu0 0.0
        %1865 = vmatpush.xpose.msra.mxu0 0.0
        %1866 = vmatpush.xpose.msra.mxu0 0.0
        %1867 = vmatpush.xpose.msra.mxu0 %v1850
        %1868 = vmatmul.f32.gmra.mxu0 %v1848
        %v1869 = vpop.f32.mrf.mxu0
        %v1870 = vadd.f32 0.0, %v1869
        %1871 = vdwg.mxu0
        %1872 = vst [vmem:[#allocation1] ss:$4 sm:$0xff] %v1236
        %v1873 = vld.sshfl [vmem:[#allocation1] sm:$0xff pattern:$0x73625140]
        %1874 = vrot.lane.b32.xlu0 %v1873, 96
        %v1875 = vpop.permute.xlu0 %1874
        %v1876 = vsel %vm1259, %v1236, 0
        %v1878 = vsel %vm1259, %v1875, 0
        %1880 = vmatpush.xpose.msra.mxu0 0.0
        %1881 = vmatpush.xpose.msra.mxu0 0.0
        %1882 = vmatpush.xpose.msra.mxu0 0.0
        %1883 = vmatpush.xpose.msra.mxu0 0.0
        %1884 = vmatpush.xpose.msra.mxu0 0.0
        %1885 = vmatpush.xpose.msra.mxu0 0.0
        %1886 = vmatpush.xpose.msra.mxu0 0.0
        %1887 = vmatpush.xpose.msra.mxu0 0.0
        %1888 = vmatpush.xpose.msra.mxu0 0.0
        %1889 = vmatpush.xpose.msra.mxu0 0.0
        %1890 = vmatpush.xpose.msra.mxu0 0.0
        %1891 = vmatpush.xpose.msra.mxu0 0.0
        %1892 = vmatpush.xpose.msra.mxu0 0.0
        %1893 = vmatpush.xpose.msra.mxu0 0.0
        %1894 = vmatpush.xpose.msra.mxu0 0.0
        %1895 = vmatpush.xpose.msra.mxu0 %v1878
        %1896 = vmatmul.f32.gmra.mxu0 %v1876
        %v1897 = vpop.f32.mrf.mxu0
        %v1898 = vadd.f32 0.0, %v1897
        %1899 = vdwg.mxu0
        %1900 = vst [vmem:[#allocation1] ss:$4 sm:$0xff] %v1238
        %v1901 = vld.sshfl [vmem:[#allocation1] sm:$0xff pattern:$0x73625140]
        %1902 = vrot.lane.b32.xlu0 %v1901, 96
        %v1903 = vpop.permute.xlu0 %1902
        %v1904 = vsel %vm1259, %v1238, 0
        %v1906 = vsel %vm1259, %v1903, 0
        %1908 = vmatpush.xpose.msra.mxu0 0.0
        %1909 = vmatpush.xpose.msra.mxu0 0.0
        %1910 = vmatpush.xpose.msra.mxu0 0.0
        %1911 = vmatpush.xpose.msra.mxu0 0.0
        %1912 = vmatpush.xpose.msra.mxu0 0.0
        %1913 = vmatpush.xpose.msra.mxu0 0.0
        %1914 = vmatpush.xpose.msra.mxu0 0.0
        %1915 = vmatpush.xpose.msra.mxu0 0.0
        %1916 = vmatpush.xpose.msra.mxu0 0.0
        %1917 = vmatpush.xpose.msra.mxu0 0.0
        %1918 = vmatpush.xpose.msra.mxu0 0.0
        %1919 = vmatpush.xpose.msra.mxu0 0.0
        %1920 = vmatpush.xpose.msra.mxu0 0.0
        %1921 = vmatpush.xpose.msra.mxu0 0.0
        %1922 = vmatpush.xpose.msra.mxu0 0.0
        %1923 = vmatpush.xpose.msra.mxu0 %v1906
        %1924 = vmatmul.f32.gmra.mxu0 %v1904
        %v1925 = vpop.f32.mrf.mxu0
        %v1926 = vadd.f32 0.0, %v1925
        %1927 = vdwg.mxu0
        %1928 = vst [vmem:[#allocation1] ss:$4 sm:$0xff] %v1240
        %v1929 = vld.sshfl [vmem:[#allocation1] sm:$0xff pattern:$0x73625140]
        %1930 = vrot.lane.b32.xlu0 %v1929, 96
        %v1931 = vpop.permute.xlu0 %1930
        %v1932 = vsel %vm1259, %v1240, 0
        %v1934 = vsel %vm1259, %v1931, 0
        %1936 = vmatpush.xpose.msra.mxu0 0.0
        %1937 = vmatpush.xpose.msra.mxu0 0.0
        %1938 = vmatpush.xpose.msra.mxu0 0.0
        %1939 = vmatpush.xpose.msra.mxu0 0.0
        %1940 = vmatpush.xpose.msra.mxu0 0.0
        %1941 = vmatpush.xpose.msra.mxu0 0.0
        %1942 = vmatpush.xpose.msra.mxu0 0.0
        %1943 = vmatpush.xpose.msra.mxu0 0.0
        %1944 = vmatpush.xpose.msra.mxu0 0.0
        %1945 = vmatpush.xpose.msra.mxu0 0.0
        %1946 = vmatpush.xpose.msra.mxu0 0.0
        %1947 = vmatpush.xpose.msra.mxu0 0.0
        %1948 = vmatpush.xpose.msra.mxu0 0.0
        %1949 = vmatpush.xpose.msra.mxu0 0.0
        %1950 = vmatpush.xpose.msra.mxu0 0.0
        %1951 = vmatpush.xpose.msra.mxu0 %v1934
        %1952 = vmatmul.f32.gmra.mxu0 %v1932
        %v1953 = vpop.f32.mrf.mxu0
        %v1954 = vadd.f32 0.0, %v1953
        %1955 = vdwg.mxu0
        %1956 = vst [vmem:[#allocation1] ss:$4 sm:$0xff] %v1242
        %v1957 = vld.sshfl [vmem:[#allocation1] sm:$0xff pattern:$0x73625140]
        %1958 = vrot.lane.b32.xlu0 %v1957, 96
        %v1959 = vpop.permute.xlu0 %1958
        %v1960 = vsel %vm1259, %v1242, 0
        %v1962 = vsel %vm1259, %v1959, 0
        %1964 = vmatpush.xpose.msra.mxu0 0.0
        %1965 = vmatpush.xpose.msra.mxu0 0.0
        %1966 = vmatpush.xpose.msra.mxu0 0.0
        %1967 = vmatpush.xpose.msra.mxu0 0.0
        %1968 = vmatpush.xpose.msra.mxu0 0.0
        %1969 = vmatpush.xpose.msra.mxu0 0.0
        %1970 = vmatpush.xpose.msra.mxu0 0.0
        %1971 = vmatpush.xpose.msra.mxu0 0.0
        %1972 = vmatpush.xpose.msra.mxu0 0.0
        %1973 = vmatpush.xpose.msra.mxu0 0.0
        %1974 = vmatpush.xpose.msra.mxu0 0.0
        %1975 = vmatpush.xpose.msra.mxu0 0.0
        %1976 = vmatpush.xpose.msra.mxu0 0.0
        %1977 = vmatpush.xpose.msra.mxu0 0.0
        %1978 = vmatpush.xpose.msra.mxu0 0.0
        %1979 = vmatpush.xpose.msra.mxu0 %v1962
        %1980 = vmatmul.f32.gmra.mxu0 %v1960
        %v1981 = vpop.f32.mrf.mxu0
        %v1982 = vadd.f32 0.0, %v1981
        %1983 = vdwg.mxu0
        %1984 = vst [vmem:[#allocation1] ss:$4 sm:$0xff] %v1244
        %v1985 = vld.sshfl [vmem:[#allocation1] sm:$0xff pattern:$0x73625140]
        %1986 = vrot.lane.b32.xlu0 %v1985, 96
        %v1987 = vpop.permute.xlu0 %1986
        %v1988 = vsel %vm1259, %v1244, 0
        %v1990 = vsel %vm1259, %v1987, 0
        %1992 = vmatpush.xpose.msra.mxu0 0.0
        %1993 = vmatpush.xpose.msra.mxu0 0.0
        %1994 = vmatpush.xpose.msra.mxu0 0.0
        %1995 = vmatpush.xpose.msra.mxu0 0.0
        %1996 = vmatpush.xpose.msra.mxu0 0.0
        %1997 = vmatpush.xpose.msra.mxu0 0.0
        %1998 = vmatpush.xpose.msra.mxu0 0.0
        %1999 = vmatpush.xpose.msra.mxu0 0.0
        %2000 = vmatpush.xpose.msra.mxu0 0.0
        %2001 = vmatpush.xpose.msra.mxu0 0.0
        %2002 = vmatpush.xpose.msra.mxu0 0.0
        %2003 = vmatpush.xpose.msra.mxu0 0.0
        %2004 = vmatpush.xpose.msra.mxu0 0.0
        %2005 = vmatpush.xpose.msra.mxu0 0.0
        %2006 = vmatpush.xpose.msra.mxu0 0.0
        %2007 = vmatpush.xpose.msra.mxu0 %v1990
        %2008 = vmatmul.f32.gmra.mxu0 %v1988
        %v2009 = vpop.f32.mrf.mxu0
        %v2010 = vadd.f32 0.0, %v2009
        %2011 = vdwg.mxu0
        %2012 = vst [vmem:[#allocation1] ss:$4 sm:$0xff] %v1246
        %v2013 = vld.sshfl [vmem:[#allocation1] sm:$0xff pattern:$0x73625140]
        %2014 = vrot.lane.b32.xlu0 %v2013, 96
        %v2015 = vpop.permute.xlu0 %2014
        %v2016 = vsel %vm1259, %v1246, 0
        %v2018 = vsel %vm1259, %v2015, 0
        %2020 = vmatpush.xpose.msra.mxu0 0.0
        %2021 = vmatpush.xpose.msra.mxu0 0.0
        %2022 = vmatpush.xpose.msra.mxu0 0.0
        %2023 = vmatpush.xpose.msra.mxu0 0.0
        %2024 = vmatpush.xpose.msra.mxu0 0.0
        %2025 = vmatpush.xpose.msra.mxu0 0.0
        %2026 = vmatpush.xpose.msra.mxu0 0.0
        %2027 = vmatpush.xpose.msra.mxu0 0.0
        %2028 = vmatpush.xpose.msra.mxu0 0.0
        %2029 = vmatpush.xpose.msra.mxu0 0.0
        %2030 = vmatpush.xpose.msra.mxu0 0.0
        %2031 = vmatpush.xpose.msra.mxu0 0.0
        %2032 = vmatpush.xpose.msra.mxu0 0.0
        %2033 = vmatpush.xpose.msra.mxu0 0.0
        %2034 = vmatpush.xpose.msra.mxu0 0.0
        %2035 = vmatpush.xpose.msra.mxu0 %v2018
        %2036 = vmatmul.f32.gmra.mxu0 %v2016
        %v2037 = vpop.f32.mrf.mxu0
        %v2038 = vadd.f32 0.0, %v2037
        %2039 = vdwg.mxu0
        %2040 = vst [vmem:[#allocation1] ss:$4 sm:$0xff] %v1248
        %v2041 = vld.sshfl [vmem:[#allocation1] sm:$0xff pattern:$0x73625140]
        %2042 = vrot.lane.b32.xlu0 %v2041, 96
        %v2043 = vpop.permute.xlu0 %2042
        %v2044 = vsel %vm1259, %v1248, 0
        %v2046 = vsel %vm1259, %v2043, 0
        %2048 = vmatpush.xpose.msra.mxu0 0.0
        %2049 = vmatpush.xpose.msra.mxu0 0.0
        %2050 = vmatpush.xpose.msra.mxu0 0.0
        %2051 = vmatpush.xpose.msra.mxu0 0.0
        %2052 = vmatpush.xpose.msra.mxu0 0.0
        %2053 = vmatpush.xpose.msra.mxu0 0.0
        %2054 = vmatpush.xpose.msra.mxu0 0.0
        %2055 = vmatpush.xpose.msra.mxu0 0.0
        %2056 = vmatpush.xpose.msra.mxu0 0.0
        %2057 = vmatpush.xpose.msra.mxu0 0.0
        %2058 = vmatpush.xpose.msra.mxu0 0.0
        %2059 = vmatpush.xpose.msra.mxu0 0.0
        %2060 = vmatpush.xpose.msra.mxu0 0.0
        %2061 = vmatpush.xpose.msra.mxu0 0.0
        %2062 = vmatpush.xpose.msra.mxu0 0.0
        %2063 = vmatpush.xpose.msra.mxu0 %v2046
        %2064 = vmatmul.f32.gmra.mxu0 %v2044
        %v2065 = vpop.f32.mrf.mxu0
        %v2066 = vadd.f32 0.0, %v2065
        %2067 = vdwg.mxu0
        %2068 = vst [vmem:[#allocation1] ss:$4 sm:$0xff] %v1250
        %v2069 = vld.sshfl [vmem:[#allocation1] sm:$0xff pattern:$0x73625140]
        %2070 = vrot.lane.b32.xlu0 %v2069, 96
        %v2071 = vpop.permute.xlu0 %2070
        %v2072 = vsel %vm1259, %v1250, 0
        %v2074 = vsel %vm1259, %v2071, 0
        %2076 = vmatpush.xpose.msra.mxu0 0.0
        %2077 = vmatpush.xpose.msra.mxu0 0.0
        %2078 = vmatpush.xpose.msra.mxu0 0.0
        %2079 = vmatpush.xpose.msra.mxu0 0.0
        %2080 = vmatpush.xpose.msra.mxu0 0.0
        %2081 = vmatpush.xpose.msra.mxu0 0.0
        %2082 = vmatpush.xpose.msra.mxu0 0.0
        %2083 = vmatpush.xpose.msra.mxu0 0.0
        %2084 = vmatpush.xpose.msra.mxu0 0.0
        %2085 = vmatpush.xpose.msra.mxu0 0.0
        %2086 = vmatpush.xpose.msra.mxu0 0.0
        %2087 = vmatpush.xpose.msra.mxu0 0.0
        %2088 = vmatpush.xpose.msra.mxu0 0.0
        %2089 = vmatpush.xpose.msra.mxu0 0.0
        %2090 = vmatpush.xpose.msra.mxu0 0.0
        %2091 = vmatpush.xpose.msra.mxu0 %v2074
        %2092 = vmatmul.f32.gmra.mxu0 %v2072
        %v2093 = vpop.f32.mrf.mxu0
        %v2094 = vadd.f32 0.0, %v2093
        %2095 = vdwg.mxu0
        %2096 = vst [vmem:[#allocation1] ss:$4 sm:$0xff] %v1252
        %v2097 = vld.sshfl [vmem:[#allocation1] sm:$0xff pattern:$0x73625140]
        %2098 = vrot.lane.b32.xlu0 %v2097, 96
        %v2099 = vpop.permute.xlu0 %2098
        %v2100 = vsel %vm1259, %v1252, 0
        %v2102 = vsel %vm1259, %v2099, 0
        %2104 = vmatpush.xpose.msra.mxu0 0.0
        %2105 = vmatpush.xpose.msra.mxu0 0.0
        %2106 = vmatpush.xpose.msra.mxu0 0.0
        %2107 = vmatpush.xpose.msra.mxu0 0.0
        %2108 = vmatpush.xpose.msra.mxu0 0.0
        %2109 = vmatpush.xpose.msra.mxu0 0.0
        %2110 = vmatpush.xpose.msra.mxu0 0.0
        %2111 = vmatpush.xpose.msra.mxu0 0.0
        %2112 = vmatpush.xpose.msra.mxu0 0.0
        %2113 = vmatpush.xpose.msra.mxu0 0.0
        %2114 = vmatpush.xpose.msra.mxu0 0.0
        %2115 = vmatpush.xpose.msra.mxu0 0.0
        %2116 = vmatpush.xpose.msra.mxu0 0.0
        %2117 = vmatpush.xpose.msra.mxu0 0.0
        %2118 = vmatpush.xpose.msra.mxu0 0.0
        %2119 = vmatpush.xpose.msra.mxu0 %v2102
        %2120 = vmatmul.f32.gmra.mxu0 %v2100
        %v2121 = vpop.f32.mrf.mxu0
        %v2122 = vadd.f32 0.0, %v2121
        %2123 = vdwg.mxu0
        %2124 = vst [vmem:[#allocation1] ss:$4 sm:$0xff] %v1254
        %v2125 = vld.sshfl [vmem:[#allocation1] sm:$0xff pattern:$0x73625140]
        %2126 = vrot.lane.b32.xlu0 %v2125, 96
        %v2127 = vpop.permute.xlu0 %2126
        %v2128 = vsel %vm1259, %v1254, 0
        %v2130 = vsel %vm1259, %v2127, 0
        %2132 = vmatpush.xpose.msra.mxu0 0.0
        %2133 = vmatpush.xpose.msra.mxu0 0.0
        %2134 = vmatpush.xpose.msra.mxu0 0.0
        %2135 = vmatpush.xpose.msra.mxu0 0.0
        %2136 = vmatpush.xpose.msra.mxu0 0.0
        %2137 = vmatpush.xpose.msra.mxu0 0.0
        %2138 = vmatpush.xpose.msra.mxu0 0.0
        %2139 = vmatpush.xpose.msra.mxu0 0.0
        %2140 = vmatpush.xpose.msra.mxu0 0.0
        %2141 = vmatpush.xpose.msra.mxu0 0.0
        %2142 = vmatpush.xpose.msra.mxu0 0.0
        %2143 = vmatpush.xpose.msra.mxu0 0.0
        %2144 = vmatpush.xpose.msra.mxu0 0.0
        %2145 = vmatpush.xpose.msra.mxu0 0.0
        %2146 = vmatpush.xpose.msra.mxu0 0.0
        %2147 = vmatpush.xpose.msra.mxu0 %v2130
        %2148 = vmatmul.f32.gmra.mxu0 %v2128
        %v2149 = vpop.f32.mrf.mxu0
        %v2150 = vadd.f32 0.0, %v2149
        %2151 = vdwg.mxu0
        %vm2152 = vcmask 9216
        %v2153 = vsel %vm2152, %v1282, -inf
        %2154 = vmax.xlane.f32.xlu0 %v2153
        %v2155 = vpop.xlane.xlu0 %2154
        %v2156 = vsel %vm2152, %v1310, -inf
        %2157 = vmax.xlane.f32.xlu0 %v2156
        %v2158 = vpop.xlane.xlu0 %2157
        %v2159 = vsel %vm2152, %v1338, -inf
        %2160 = vmax.xlane.f32.xlu0 %v2159
        %v2161 = vpop.xlane.xlu0 %2160
        %v2162 = vsel %vm2152, %v1366, -inf
        %2163 = vmax.xlane.f32.xlu0 %v2162
        %v2164 = vpop.xlane.xlu0 %2163
        %v2165 = vsel %vm2152, %v1394, -inf
        %2166 = vmax.xlane.f32.xlu0 %v2165
        %v2167 = vpop.xlane.xlu0 %2166
        %v2168 = vsel %vm2152, %v1422, -inf
        %2169 = vmax.xlane.f32.xlu0 %v2168
        %v2170 = vpop.xlane.xlu0 %2169
        %v2171 = vsel %vm2152, %v1450, -inf
        %2172 = vmax.xlane.f32.xlu0 %v2171
        %v2173 = vpop.xlane.xlu0 %2172
        %v2174 = vsel %vm2152, %v1478, -inf
        %2175 = vmax.xlane.f32.xlu0 %v2174
        %v2176 = vpop.xlane.xlu0 %2175
        %v2177 = vsel %vm2152, %v1506, -inf
        %2178 = vmax.xlane.f32.xlu0 %v2177
        %v2179 = vpop.xlane.xlu0 %2178
        %v2180 = vsel %vm2152, %v1534, -inf
        %2181 = vmax.xlane.f32.xlu0 %v2180
        %v2182 = vpop.xlane.xlu0 %2181
        %v2183 = vsel %vm2152, %v1562, -inf
        %2184 = vmax.xlane.f32.xlu0 %v2183
        %v2185 = vpop.xlane.xlu0 %2184
        %v2186 = vsel %vm2152, %v1590, -inf
        %2187 = vmax.xlane.f32.xlu0 %v2186
        %v2188 = vpop.xlane.xlu0 %2187
        %v2189 = vsel %vm2152, %v1618, -inf
        %2190 = vmax.xlane.f32.xlu0 %v2189
        %v2191 = vpop.xlane.xlu0 %2190
        %v2192 = vsel %vm2152, %v1646, -inf
        %2193 = vmax.xlane.f32.xlu0 %v2192
        %v2194 = vpop.xlane.xlu0 %2193
        %v2195 = vsel %vm2152, %v1674, -inf
        %2196 = vmax.xlane.f32.xlu0 %v2195
        %v2197 = vpop.xlane.xlu0 %2196
        %v2198 = vsel %vm2152, %v1702, -inf
        %2199 = vmax.xlane.f32.xlu0 %v2198
        %v2200 = vpop.xlane.xlu0 %2199
        %v2201 = vsel %vm2152, %v1730, -inf
        %2202 = vmax.xlane.f32.xlu0 %v2201
        %v2203 = vpop.xlane.xlu0 %2202
        %v2204 = vsel %vm2152, %v1758, -inf
        %2205 = vmax.xlane.f32.xlu0 %v2204
        %v2206 = vpop.xlane.xlu0 %2205
        %v2207 = vsel %vm2152, %v1786, -inf
        %2208 = vmax.xlane.f32.xlu0 %v2207
        %v2209 = vpop.xlane.xlu0 %2208
        %v2210 = vsel %vm2152, %v1814, -inf
        %2211 = vmax.xlane.f32.xlu0 %v2210
        %v2212 = vpop.xlane.xlu0 %2211
        %v2213 = vsel %vm2152, %v1842, -inf
        %2214 = vmax.xlane.f32.xlu0 %v2213
        %v2215 = vpop.xlane.xlu0 %2214
        %v2216 = vsel %vm2152, %v1870, -inf
        %2217 = vmax.xlane.f32.xlu0 %v2216
        %v2218 = vpop.xlane.xlu0 %2217
        %v2219 = vsel %vm2152, %v1898, -inf
        %2220 = vmax.xlane.f32.xlu0 %v2219
        %v2221 = vpop.xlane.xlu0 %2220
        %v2222 = vsel %vm2152, %v1926, -inf
        %2223 = vmax.xlane.f32.xlu0 %v2222
        %v2224 = vpop.xlane.xlu0 %2223
        %v2225 = vsel %vm2152, %v1954, -inf
        %2226 = vmax.xlane.f32.xlu0 %v2225
        %v2227 = vpop.xlane.xlu0 %2226
        %v2228 = vsel %vm2152, %v1982, -inf
        %2229 = vmax.xlane.f32.xlu0 %v2228
        %v2230 = vpop.xlane.xlu0 %2229
        %v2231 = vsel %vm2152, %v2010, -inf
        %2232 = vmax.xlane.f32.xlu0 %v2231
        %v2233 = vpop.xlane.xlu0 %2232
        %v2234 = vsel %vm2152, %v2038, -inf
        %2235 = vmax.xlane.f32.xlu0 %v2234
        %v2236 = vpop.xlane.xlu0 %2235
        %v2237 = vsel %vm2152, %v2066, -inf
        %2238 = vmax.xlane.f32.xlu0 %v2237
        %v2239 = vpop.xlane.xlu0 %2238
        %v2240 = vsel %vm2152, %v2094, -inf
        %2241 = vmax.xlane.f32.xlu0 %v2240
        %v2242 = vpop.xlane.xlu0 %2241
        %v2243 = vsel %vm2152, %v2122, -inf
        %2244 = vmax.xlane.f32.xlu0 %v2243
        %v2245 = vpop.xlane.xlu0 %2244
        %v2246 = vsel %vm2152, %v2150, -inf
        %2247 = vmax.xlane.f32.xlu0 %v2246
        %v2248 = vpop.xlane.xlu0 %2247
        %v2249 = vsub.f32 %v1282, %v2155
        %v2250 = vsub.f32 %v1310, %v2158
        %v2251 = vsub.f32 %v1338, %v2161
        %v2252 = vsub.f32 %v1366, %v2164
        %v2253 = vsub.f32 %v1394, %v2167
        %v2254 = vsub.f32 %v1422, %v2170
        %v2255 = vsub.f32 %v1450, %v2173
        %v2256 = vsub.f32 %v1478, %v2176
        %v2257 = vsub.f32 %v1506, %v2179
        %v2258 = vsub.f32 %v1534, %v2182
        %v2259 = vsub.f32 %v1562, %v2185
        %v2260 = vsub.f32 %v1590, %v2188
        %v2261 = vsub.f32 %v1618, %v2191
        %v2262 = vsub.f32 %v1646, %v2194
        %v2263 = vsub.f32 %v1674, %v2197
        %v2264 = vsub.f32 %v1702, %v2200
        %v2265 = vsub.f32 %v1730, %v2203
        %v2266 = vsub.f32 %v1758, %v2206
        %v2267 = vsub.f32 %v1786, %v2209
        %v2268 = vsub.f32 %v1814, %v2212
        %v2269 = vsub.f32 %v1842, %v2215
        %v2270 = vsub.f32 %v1870, %v2218
        %v2271 = vsub.f32 %v1898, %v2221
        %v2272 = vsub.f32 %v1926, %v2224
        %v2273 = vsub.f32 %v1954, %v2227
        %v2274 = vsub.f32 %v1982, %v2230
        %v2275 = vsub.f32 %v2010, %v2233
        %v2276 = vsub.f32 %v2038, %v2236
        %v2277 = vsub.f32 %v2066, %v2239
        %v2278 = vsub.f32 %v2094, %v2242
        %v2279 = vsub.f32 %v2122, %v2245
        %v2280 = vsub.f32 %v2150, %v2248
        %v2281 = vmul.f32 %v2249, 1.442695
        %v2282 = vpow.pop %v2281
        %v2283 = vmul.f32 %v2250, 1.442695
        %v2284 = vpow.pop %v2283
        %v2285 = vmul.f32 %v2251, 1.442695
        %v2286 = vpow.pop %v2285
        %v2287 = vmul.f32 %v2252, 1.442695
        %v2288 = vpow.pop %v2287
        %v2289 = vmul.f32 %v2253, 1.442695
        %v2290 = vpow.pop %v2289
        %v2291 = vmul.f32 %v2254, 1.442695
        %v2292 = vpow.pop %v2291
        %v2293 = vmul.f32 %v2255, 1.442695
        %v2294 = vpow.pop %v2293
        %v2295 = vmul.f32 %v2256, 1.442695
        %v2296 = vpow.pop %v2295
        %v2297 = vmul.f32 %v2257, 1.442695
        %v2298 = vpow.pop %v2297
        %v2299 = vmul.f32 %v2258, 1.442695
        %v2300 = vpow.pop %v2299
        %v2301 = vmul.f32 %v2259, 1.442695
        %v2302 = vpow.pop %v2301
        %v2303 = vmul.f32 %v2260, 1.442695
        %v2304 = vpow.pop %v2303
        %v2305 = vmul.f32 %v2261, 1.442695
        %v2306 = vpow.pop %v2305
        %v2307 = vmul.f32 %v2262, 1.442695
        %v2308 = vpow.pop %v2307
        %v2309 = vmul.f32 %v2263, 1.442695
        %v2310 = vpow.pop %v2309
        %v2311 = vmul.f32 %v2264, 1.442695
        %v2312 = vpow.pop %v2311
        %v2313 = vmul.f32 %v2265, 1.442695
        %v2314 = vpow.pop %v2313
        %v2315 = vmul.f32 %v2266, 1.442695
        %v2316 = vpow.pop %v2315
        %v2317 = vmul.f32 %v2267, 1.442695
        %v2318 = vpow.pop %v2317
        %v2319 = vmul.f32 %v2268, 1.442695
        %v2320 = vpow.pop %v2319
        %v2321 = vmul.f32 %v2269, 1.442695
        %v2322 = vpow.pop %v2321
        %v2323 = vmul.f32 %v2270, 1.442695
        %v2324 = vpow.pop %v2323
        %v2325 = vmul.f32 %v2271, 1.442695
        %v2326 = vpow.pop %v2325
        %v2327 = vmul.f32 %v2272, 1.442695
        %v2328 = vpow.pop %v2327
        %v2329 = vmul.f32 %v2273, 1.442695
        %v2330 = vpow.pop %v2329
        %v2331 = vmul.f32 %v2274, 1.442695
        %v2332 = vpow.pop %v2331
        %v2333 = vmul.f32 %v2275, 1.442695
        %v2334 = vpow.pop %v2333
        %v2335 = vmul.f32 %v2276, 1.442695
        %v2336 = vpow.pop %v2335
        %v2337 = vmul.f32 %v2277, 1.442695
        %v2338 = vpow.pop %v2337
        %v2339 = vmul.f32 %v2278, 1.442695
        %v2340 = vpow.pop %v2339
        %v2341 = vmul.f32 %v2279, 1.442695
        %v2342 = vpow.pop %v2341
        %v2343 = vmul.f32 %v2280, 1.442695
        %v2344 = vpow.pop %v2343
        %v2345 = vsel %vm2152, %v2282, 0.0
        %2346 = vadd.xlane.f32.xlu0 %v2345
        %v2347 = vpop.xlane.xlu0 %2346
        %v2348 = vsel %vm2152, %v2284, 0.0
        %2349 = vadd.xlane.f32.xlu0 %v2348
        %v2350 = vpop.xlane.xlu0 %2349
        %v2351 = vsel %vm2152, %v2286, 0.0
        %2352 = vadd.xlane.f32.xlu0 %v2351
        %v2353 = vpop.xlane.xlu0 %2352
        %v2354 = vsel %vm2152, %v2288, 0.0
        %2355 = vadd.xlane.f32.xlu0 %v2354
        %v2356 = vpop.xlane.xlu0 %2355
        %v2357 = vsel %vm2152, %v2290, 0.0
        %2358 = vadd.xlane.f32.xlu0 %v2357
        %v2359 = vpop.xlane.xlu0 %2358
        %v2360 = vsel %vm2152, %v2292, 0.0
        %2361 = vadd.xlane.f32.xlu0 %v2360
        %v2362 = vpop.xlane.xlu0 %2361
        %v2363 = vsel %vm2152, %v2294, 0.0
        %2364 = vadd.xlane.f32.xlu0 %v2363
        %v2365 = vpop.xlane.xlu0 %2364
        %v2366 = vsel %vm2152, %v2296, 0.0
        %2367 = vadd.xlane.f32.xlu0 %v2366
        %v2368 = vpop.xlane.xlu0 %2367
        %v2369 = vsel %vm2152, %v2298, 0.0
        %2370 = vadd.xlane.f32.xlu0 %v2369
        %v2371 = vpop.xlane.xlu0 %2370
        %v2372 = vsel %vm2152, %v2300, 0.0
        %2373 = vadd.xlane.f32.xlu0 %v2372
        %v2374 = vpop.xlane.xlu0 %2373
        %v2375 = vsel %vm2152, %v2302, 0.0
        %2376 = vadd.xlane.f32.xlu0 %v2375
        %v2377 = vpop.xlane.xlu0 %2376
        %v2378 = vsel %vm2152, %v2304, 0.0
        %2379 = vadd.xlane.f32.xlu0 %v2378
        %v2380 = vpop.xlane.xlu0 %2379
        %v2381 = vsel %vm2152, %v2306, 0.0
        %2382 = vadd.xlane.f32.xlu0 %v2381
        %v2383 = vpop.xlane.xlu0 %2382
        %v2384 = vsel %vm2152, %v2308, 0.0
        %2385 = vadd.xlane.f32.xlu0 %v2384
        %v2386 = vpop.xlane.xlu0 %2385
        %v2387 = vsel %vm2152, %v2310, 0.0
        %2388 = vadd.xlane.f32.xlu0 %v2387
        %v2389 = vpop.xlane.xlu0 %2388
        %v2390 = vsel %vm2152, %v2312, 0.0
        %2391 = vadd.xlane.f32.xlu0 %v2390
        %v2392 = vpop.xlane.xlu0 %2391
        %v2393 = vsel %vm2152, %v2314, 0.0
        %2394 = vadd.xlane.f32.xlu0 %v2393
        %v2395 = vpop.xlane.xlu0 %2394
        %v2396 = vsel %vm2152, %v2316, 0.0
        %2397 = vadd.xlane.f32.xlu0 %v2396
        %v2398 = vpop.xlane.xlu0 %2397
        %v2399 = vsel %vm2152, %v2318, 0.0
        %2400 = vadd.xlane.f32.xlu0 %v2399
        %v2401 = vpop.xlane.xlu0 %2400
        %v2402 = vsel %vm2152, %v2320, 0.0
        %2403 = vadd.xlane.f32.xlu0 %v2402
        %v2404 = vpop.xlane.xlu0 %2403
        %v2405 = vsel %vm2152, %v2322, 0.0
        %2406 = vadd.xlane.f32.xlu0 %v2405
        %v2407 = vpop.xlane.xlu0 %2406
        %v2408 = vsel %vm2152, %v2324, 0.0
        %2409 = vadd.xlane.f32.xlu0 %v2408
        %v2410 = vpop.xlane.xlu0 %2409
        %v2411 = vsel %vm2152, %v2326, 0.0
        %2412 = vadd.xlane.f32.xlu0 %v2411
        %v2413 = vpop.xlane.xlu0 %2412
        %v2414 = vsel %vm2152, %v2328, 0.0
        %2415 = vadd.xlane.f32.xlu0 %v2414
        %v2416 = vpop.xlane.xlu0 %2415
        %v2417 = vsel %vm2152, %v2330, 0.0
        %2418 = vadd.xlane.f32.xlu0 %v2417
        %v2419 = vpop.xlane.xlu0 %2418
        %v2420 = vsel %vm2152, %v2332, 0.0
        %2421 = vadd.xlane.f32.xlu0 %v2420
        %v2422 = vpop.xlane.xlu0 %2421
        %v2423 = vsel %vm2152, %v2334, 0.0
        %2424 = vadd.xlane.f32.xlu0 %v2423
        %v2425 = vpop.xlane.xlu0 %2424
        %v2426 = vsel %vm2152, %v2336, 0.0
        %2427 = vadd.xlane.f32.xlu0 %v2426
        %v2428 = vpop.xlane.xlu0 %2427
        %v2429 = vsel %vm2152, %v2338, 0.0
        %2430 = vadd.xlane.f32.xlu0 %v2429
        %v2431 = vpop.xlane.xlu0 %2430
        %v2432 = vsel %vm2152, %v2340, 0.0
        %2433 = vadd.xlane.f32.xlu0 %v2432
        %v2434 = vpop.xlane.xlu0 %2433
        %v2435 = vsel %vm2152, %v2342, 0.0
        %2436 = vadd.xlane.f32.xlu0 %v2435
        %v2437 = vpop.xlane.xlu0 %2436
        %v2438 = vsel %vm2152, %v2344, 0.0
        %2439 = vadd.xlane.f32.xlu0 %v2438
        %v2440 = vpop.xlane.xlu0 %2439
        %v2441 = vrcp.pop %v2347
        %v2442 = vrcp.pop %v2350
        %v2443 = vrcp.pop %v2353
        %v2444 = vrcp.pop %v2356
        %v2445 = vrcp.pop %v2359
        %v2446 = vrcp.pop %v2362
        %v2447 = vrcp.pop %v2365
        %v2448 = vrcp.pop %v2368
        %v2449 = vrcp.pop %v2371
        %v2450 = vrcp.pop %v2374
        %v2451 = vrcp.pop %v2377
        %v2452 = vrcp.pop %v2380
        %v2453 = vrcp.pop %v2383
        %v2454 = vrcp.pop %v2386
        %v2455 = vrcp.pop %v2389
        %v2456 = vrcp.pop %v2392
        %v2457 = vrcp.pop %v2395
        %v2458 = vrcp.pop %v2398
        %v2459 = vrcp.pop %v2401
        %v2460 = vrcp.pop %v2404
        %v2461 = vrcp.pop %v2407
        %v2462 = vrcp.pop %v2410
        %v2463 = vrcp.pop %v2413
        %v2464 = vrcp.pop %v2416
        %v2465 = vrcp.pop %v2419
        %v2466 = vrcp.pop %v2422
        %v2467 = vrcp.pop %v2425
        %v2468 = vrcp.pop %v2428
        %v2469 = vrcp.pop %v2431
        %v2470 = vrcp.pop %v2434
        %v2471 = vrcp.pop %v2437
        %v2472 = vrcp.pop %v2440
        %v2473 = vmul.f32 %v2282, %v2441
        %v2474 = vmul.f32 %v2284, %v2442
        %v2475 = vmul.f32 %v2286, %v2443
        %v2476 = vmul.f32 %v2288, %v2444
        %v2477 = vmul.f32 %v2290, %v2445
        %v2478 = vmul.f32 %v2292, %v2446
        %v2479 = vmul.f32 %v2294, %v2447
        %v2480 = vmul.f32 %v2296, %v2448
        %v2481 = vmul.f32 %v2298, %v2449
        %v2482 = vmul.f32 %v2300, %v2450
        %v2483 = vmul.f32 %v2302, %v2451
        %v2484 = vmul.f32 %v2304, %v2452
        %v2485 = vmul.f32 %v2306, %v2453
        %v2486 = vmul.f32 %v2308, %v2454
        %v2487 = vmul.f32 %v2310, %v2455
        %v2488 = vmul.f32 %v2312, %v2456
        %v2489 = vmul.f32 %v2314, %v2457
        %v2490 = vmul.f32 %v2316, %v2458
        %v2491 = vmul.f32 %v2318, %v2459
        %v2492 = vmul.f32 %v2320, %v2460
        %v2493 = vmul.f32 %v2322, %v2461
        %v2494 = vmul.f32 %v2324, %v2462
        %v2495 = vmul.f32 %v2326, %v2463
        %v2496 = vmul.f32 %v2328, %v2464
        %v2497 = vmul.f32 %v2330, %v2465
        %v2498 = vmul.f32 %v2332, %v2466
        %v2499 = vmul.f32 %v2334, %v2467
        %v2500 = vmul.f32 %v2336, %v2468
        %v2501 = vmul.f32 %v2338, %v2469
        %v2502 = vmul.f32 %v2340, %v2470
        %v2503 = vmul.f32 %v2342, %v2471
        %v2504 = vmul.f32 %v2344, %v2472
        %2505 = vst [vmem:[#allocation1] ss:$4 sm:$0xff] %v1194
        %v2506 = vld.sshfl [vmem:[#allocation1] sm:$0xff pattern:$0x73625140]
        %2507 = vrot.lane.b32.xlu0 %v2506, 64
        %v2508 = vpop.permute.xlu0 %2507
        %vm2509 = vcmask 15360
        %v2511 = vsel %vm2509, %v2473, 0
        %vm2513 = vcmask 1041408
        %v2514 = vsel %vm2513, %v2508, 0
        %2516 = vmatpush.msra.mxu0 0.0
        %2517 = vmatpush.msra.mxu0 0.0
        %2518 = vmatpush.msra.mxu0 0.0
        %2519 = vmatpush.msra.mxu0 0.0
        %2520 = vmatpush.msra.mxu0 0.0
        %2521 = vmatpush.msra.mxu0 0.0
        %2522 = vmatpush.msra.mxu0 0.0
        %2523 = vmatpush.msra.mxu0 0.0
        %2524 = vmatpush.msra.mxu0 0.0
        %2525 = vmatpush.msra.mxu0 0.0
        %2526 = vmatpush.msra.mxu0 0.0
        %2527 = vmatpush.msra.mxu0 0.0
        %2528 = vmatpush.msra.mxu0 0.0
        %2529 = vmatpush.msra.mxu0 0.0
        %2530 = vmatpush.msra.mxu0 0.0
        %2531 = vmatpush.msra.mxu0 %v2514
        %2532 = vmatmul.f32.gmra.mxu0 %v2511
        %v2533 = vpop.f32.mrf.mxu0
        %v2534 = vadd.f32 0.0, %v2533
        %2535 = vdwg.mxu0
        %2536 = vst [vmem:[#allocation1] ss:$4 sm:$0xff] %v1201
        %v2537 = vld.sshfl [vmem:[#allocation1] sm:$0xff pattern:$0x73625140]
        %2538 = vrot.lane.b32.xlu0 %v2537, 64
        %v2539 = vpop.permute.xlu0 %2538
        %v2541 = vsel %vm2509, %v2474, 0
        %v2543 = vsel %vm2513, %v2539, 0
        %2545 = vmatpush.msra.mxu0 0.0
        %2546 = vmatpush.msra.mxu0 0.0
        %2547 = vmatpush.msra.mxu0 0.0
        %2548 = vmatpush.msra.mxu0 0.0
        %2549 = vmatpush.msra.mxu0 0.0
        %2550 = vmatpush.msra.mxu0 0.0
        %2551 = vmatpush.msra.mxu0 0.0
        %2552 = vmatpush.msra.mxu0 0.0
        %2553 = vmatpush.msra.mxu0 0.0
        %2554 = vmatpush.msra.mxu0 0.0
        %2555 = vmatpush.msra.mxu0 0.0
        %2556 = vmatpush.msra.mxu0 0.0
        %2557 = vmatpush.msra.mxu0 0.0
        %2558 = vmatpush.msra.mxu0 0.0
        %2559 = vmatpush.msra.mxu0 0.0
        %2560 = vmatpush.msra.mxu0 %v2543
        %2561 = vmatmul.f32.gmra.mxu0 %v2541
        %v2562 = vpop.f32.mrf.mxu0
        %v2563 = vadd.f32 0.0, %v2562
        %2564 = vdwg.mxu0
        %2565 = vst [vmem:[#allocation1] ss:$4 sm:$0xff] %v1202
        %v2566 = vld.sshfl [vmem:[#allocation1] sm:$0xff pattern:$0x73625140]
        %2567 = vrot.lane.b32.xlu0 %v2566, 64
        %v2568 = vpop.permute.xlu0 %2567
        %v2570 = vsel %vm2509, %v2475, 0
        %v2572 = vsel %vm2513, %v2568, 0
        %2574 = vmatpush.msra.mxu0 0.0
        %2575 = vmatpush.msra.mxu0 0.0
        %2576 = vmatpush.msra.mxu0 0.0
        %2577 = vmatpush.msra.mxu0 0.0
        %2578 = vmatpush.msra.mxu0 0.0
        %2579 = vmatpush.msra.mxu0 0.0
        %2580 = vmatpush.msra.mxu0 0.0
        %2581 = vmatpush.msra.mxu0 0.0
        %2582 = vmatpush.msra.mxu0 0.0
        %2583 = vmatpush.msra.mxu0 0.0
        %2584 = vmatpush.msra.mxu0 0.0
        %2585 = vmatpush.msra.mxu0 0.0
        %2586 = vmatpush.msra.mxu0 0.0
        %2587 = vmatpush.msra.mxu0 0.0
        %2588 = vmatpush.msra.mxu0 0.0
        %2589 = vmatpush.msra.mxu0 %v2572
        %2590 = vmatmul.f32.gmra.mxu0 %v2570
        %v2591 = vpop.f32.mrf.mxu0
        %v2592 = vadd.f32 0.0, %v2591
        %2593 = vdwg.mxu0
        %2594 = vst [vmem:[#allocation1] ss:$4 sm:$0xff] %v1203
        %v2595 = vld.sshfl [vmem:[#allocation1] sm:$0xff pattern:$0x73625140]
        %2596 = vrot.lane.b32.xlu0 %v2595, 64
        %v2597 = vpop.permute.xlu0 %2596
        %v2599 = vsel %vm2509, %v2476, 0
        %v2601 = vsel %vm2513, %v2597, 0
        %2603 = vmatpush.msra.mxu0 0.0
        %2604 = vmatpush.msra.mxu0 0.0
        %2605 = vmatpush.msra.mxu0 0.0
        %2606 = vmatpush.msra.mxu0 0.0
        %2607 = vmatpush.msra.mxu0 0.0
        %2608 = vmatpush.msra.mxu0 0.0
        %2609 = vmatpush.msra.mxu0 0.0
        %2610 = vmatpush.msra.mxu0 0.0
        %2611 = vmatpush.msra.mxu0 0.0
        %2612 = vmatpush.msra.mxu0 0.0
        %2613 = vmatpush.msra.mxu0 0.0
        %2614 = vmatpush.msra.mxu0 0.0
        %2615 = vmatpush.msra.mxu0 0.0
        %2616 = vmatpush.msra.mxu0 0.0
        %2617 = vmatpush.msra.mxu0 0.0
        %2618 = vmatpush.msra.mxu0 %v2601
        %2619 = vmatmul.f32.gmra.mxu0 %v2599
        %v2620 = vpop.f32.mrf.mxu0
        %v2621 = vadd.f32 0.0, %v2620
        %2622 = vdwg.mxu0
        %2623 = vst [vmem:[#allocation1] ss:$4 sm:$0xff] %v1197
        %v2624 = vld.sshfl [vmem:[#allocation1] sm:$0xff pattern:$0x73625140]
        %2625 = vrot.lane.b32.xlu0 %v2624, 64
        %v2626 = vpop.permute.xlu0 %2625
        %v2628 = vsel %vm2509, %v2477, 0
        %v2630 = vsel %vm2513, %v2626, 0
        %2632 = vmatpush.msra.mxu0 0.0
        %2633 = vmatpush.msra.mxu0 0.0
        %2634 = vmatpush.msra.mxu0 0.0
        %2635 = vmatpush.msra.mxu0 0.0
        %2636 = vmatpush.msra.mxu0 0.0
        %2637 = vmatpush.msra.mxu0 0.0
        %2638 = vmatpush.msra.mxu0 0.0
        %2639 = vmatpush.msra.mxu0 0.0
        %2640 = vmatpush.msra.mxu0 0.0
        %2641 = vmatpush.msra.mxu0 0.0
        %2642 = vmatpush.msra.mxu0 0.0
        %2643 = vmatpush.msra.mxu0 0.0
        %2644 = vmatpush.msra.mxu0 0.0
        %2645 = vmatpush.msra.mxu0 0.0
        %2646 = vmatpush.msra.mxu0 0.0
        %2647 = vmatpush.msra.mxu0 %v2630
        %2648 = vmatmul.f32.gmra.mxu0 %v2628
        %v2649 = vpop.f32.mrf.mxu0
        %v2650 = vadd.f32 0.0, %v2649
        %2651 = vdwg.mxu0
        %2652 = vst [vmem:[#allocation1] ss:$4 sm:$0xff] %v1204
        %v2653 = vld.sshfl [vmem:[#allocation1] sm:$0xff pattern:$0x73625140]
        %2654 = vrot.lane.b32.xlu0 %v2653, 64
        %v2655 = vpop.permute.xlu0 %2654
        %v2657 = vsel %vm2509, %v2478, 0
        %v2659 = vsel %vm2513, %v2655, 0
        %2661 = vmatpush.msra.mxu0 0.0
        %2662 = vmatpush.msra.mxu0 0.0
        %2663 = vmatpush.msra.mxu0 0.0
        %2664 = vmatpush.msra.mxu0 0.0
        %2665 = vmatpush.msra.mxu0 0.0
        %2666 = vmatpush.msra.mxu0 0.0
        %2667 = vmatpush.msra.mxu0 0.0
        %2668 = vmatpush.msra.mxu0 0.0
        %2669 = vmatpush.msra.mxu0 0.0
        %2670 = vmatpush.msra.mxu0 0.0
        %2671 = vmatpush.msra.mxu0 0.0
        %2672 = vmatpush.msra.mxu0 0.0
        %2673 = vmatpush.msra.mxu0 0.0
        %2674 = vmatpush.msra.mxu0 0.0
        %2675 = vmatpush.msra.mxu0 0.0
        %2676 = vmatpush.msra.mxu0 %v2659
        %2677 = vmatmul.f32.gmra.mxu0 %v2657
        %v2678 = vpop.f32.mrf.mxu0
        %v2679 = vadd.f32 0.0, %v2678
        %2680 = vdwg.mxu0
        %2681 = vst [vmem:[#allocation1] ss:$4 sm:$0xff] %v1205
        %v2682 = vld.sshfl [vmem:[#allocation1] sm:$0xff pattern:$0x73625140]
        %2683 = vrot.lane.b32.xlu0 %v2682, 64
        %v2684 = vpop.permute.xlu0 %2683
        %v2686 = vsel %vm2509, %v2479, 0
        %v2688 = vsel %vm2513, %v2684, 0
        %2690 = vmatpush.msra.mxu0 0.0
        %2691 = vmatpush.msra.mxu0 0.0
        %2692 = vmatpush.msra.mxu0 0.0
        %2693 = vmatpush.msra.mxu0 0.0
        %2694 = vmatpush.msra.mxu0 0.0
        %2695 = vmatpush.msra.mxu0 0.0
        %2696 = vmatpush.msra.mxu0 0.0
        %2697 = vmatpush.msra.mxu0 0.0
        %2698 = vmatpush.msra.mxu0 0.0
        %2699 = vmatpush.msra.mxu0 0.0
        %2700 = vmatpush.msra.mxu0 0.0
        %2701 = vmatpush.msra.mxu0 0.0
        %2702 = vmatpush.msra.mxu0 0.0
        %2703 = vmatpush.msra.mxu0 0.0
        %2704 = vmatpush.msra.mxu0 0.0
        %2705 = vmatpush.msra.mxu0 %v2688
        %2706 = vmatmul.f32.gmra.mxu0 %v2686
        %v2707 = vpop.f32.mrf.mxu0
        %v2708 = vadd.f32 0.0, %v2707
        %2709 = vdwg.mxu0
        %2710 = vst [vmem:[#allocation1] ss:$4 sm:$0xff] %v1206
        %v2711 = vld.sshfl [vmem:[#allocation1] sm:$0xff pattern:$0x73625140]
        %2712 = vrot.lane.b32.xlu0 %v2711, 64
        %v2713 = vpop.permute.xlu0 %2712
        %v2715 = vsel %vm2509, %v2480, 0
        %v2717 = vsel %vm2513, %v2713, 0
        %2719 = vmatpush.msra.mxu0 0.0
        %2720 = vmatpush.msra.mxu0 0.0
        %2721 = vmatpush.msra.mxu0 0.0
        %2722 = vmatpush.msra.mxu0 0.0
        %2723 = vmatpush.msra.mxu0 0.0
        %2724 = vmatpush.msra.mxu0 0.0
        %2725 = vmatpush.msra.mxu0 0.0
        %2726 = vmatpush.msra.mxu0 0.0
        %2727 = vmatpush.msra.mxu0 0.0
        %2728 = vmatpush.msra.mxu0 0.0
        %2729 = vmatpush.msra.mxu0 0.0
        %2730 = vmatpush.msra.mxu0 0.0
        %2731 = vmatpush.msra.mxu0 0.0
        %2732 = vmatpush.msra.mxu0 0.0
        %2733 = vmatpush.msra.mxu0 0.0
        %2734 = vmatpush.msra.mxu0 %v2717
        %2735 = vmatmul.f32.gmra.mxu0 %v2715
        %v2736 = vpop.f32.mrf.mxu0
        %v2737 = vadd.f32 0.0, %v2736
        %2738 = vdwg.mxu0
        %2739 = vst [vmem:[#allocation1] ss:$4 sm:$0xff] %v1208
        %v2740 = vld.sshfl [vmem:[#allocation1] sm:$0xff pattern:$0x73625140]
        %2741 = vrot.lane.b32.xlu0 %v2740, 64
        %v2742 = vpop.permute.xlu0 %2741
        %v2744 = vsel %vm2509, %v2481, 0
        %v2746 = vsel %vm2513, %v2742, 0
        %2748 = vmatpush.msra.mxu0 0.0
        %2749 = vmatpush.msra.mxu0 0.0
        %2750 = vmatpush.msra.mxu0 0.0
        %2751 = vmatpush.msra.mxu0 0.0
        %2752 = vmatpush.msra.mxu0 0.0
        %2753 = vmatpush.msra.mxu0 0.0
        %2754 = vmatpush.msra.mxu0 0.0
        %2755 = vmatpush.msra.mxu0 0.0
        %2756 = vmatpush.msra.mxu0 0.0
        %2757 = vmatpush.msra.mxu0 0.0
        %2758 = vmatpush.msra.mxu0 0.0
        %2759 = vmatpush.msra.mxu0 0.0
        %2760 = vmatpush.msra.mxu0 0.0
        %2761 = vmatpush.msra.mxu0 0.0
        %2762 = vmatpush.msra.mxu0 0.0
        %2763 = vmatpush.msra.mxu0 %v2746
        %2764 = vmatmul.f32.gmra.mxu0 %v2744
        %v2765 = vpop.f32.mrf.mxu0
        %v2766 = vadd.f32 0.0, %v2765
        %2767 = vdwg.mxu0
        %2768 = vst [vmem:[#allocation1] ss:$4 sm:$0xff] %v1210
        %v2769 = vld.sshfl [vmem:[#allocation1] sm:$0xff pattern:$0x73625140]
        %2770 = vrot.lane.b32.xlu0 %v2769, 64
        %v2771 = vpop.permute.xlu0 %2770
        %v2773 = vsel %vm2509, %v2482, 0
        %v2775 = vsel %vm2513, %v2771, 0
        %2777 = vmatpush.msra.mxu0 0.0
        %2778 = vmatpush.msra.mxu0 0.0
        %2779 = vmatpush.msra.mxu0 0.0
        %2780 = vmatpush.msra.mxu0 0.0
        %2781 = vmatpush.msra.mxu0 0.0
        %2782 = vmatpush.msra.mxu0 0.0
        %2783 = vmatpush.msra.mxu0 0.0
        %2784 = vmatpush.msra.mxu0 0.0
        %2785 = vmatpush.msra.mxu0 0.0
        %2786 = vmatpush.msra.mxu0 0.0
        %2787 = vmatpush.msra.mxu0 0.0
        %2788 = vmatpush.msra.mxu0 0.0
        %2789 = vmatpush.msra.mxu0 0.0
        %2790 = vmatpush.msra.mxu0 0.0
        %2791 = vmatpush.msra.mxu0 0.0
        %2792 = vmatpush.msra.mxu0 %v2775
        %2793 = vmatmul.f32.gmra.mxu0 %v2773
        %v2794 = vpop.f32.mrf.mxu0
        %v2795 = vadd.f32 0.0, %v2794
        %2796 = vdwg.mxu0
        %2797 = vst [vmem:[#allocation1] ss:$4 sm:$0xff] %v1212
        %v2798 = vld.sshfl [vmem:[#allocation1] sm:$0xff pattern:$0x73625140]
        %2799 = vrot.lane.b32.xlu0 %v2798, 64
        %v2800 = vpop.permute.xlu0 %2799
        %v2802 = vsel %vm2509, %v2483, 0
        %v2804 = vsel %vm2513, %v2800, 0
        %2806 = vmatpush.msra.mxu0 0.0
        %2807 = vmatpush.msra.mxu0 0.0
        %2808 = vmatpush.msra.mxu0 0.0
        %2809 = vmatpush.msra.mxu0 0.0
        %2810 = vmatpush.msra.mxu0 0.0
        %2811 = vmatpush.msra.mxu0 0.0
        %2812 = vmatpush.msra.mxu0 0.0
        %2813 = vmatpush.msra.mxu0 0.0
        %2814 = vmatpush.msra.mxu0 0.0
        %2815 = vmatpush.msra.mxu0 0.0
        %2816 = vmatpush.msra.mxu0 0.0
        %2817 = vmatpush.msra.mxu0 0.0
        %2818 = vmatpush.msra.mxu0 0.0
        %2819 = vmatpush.msra.mxu0 0.0
        %2820 = vmatpush.msra.mxu0 0.0
        %2821 = vmatpush.msra.mxu0 %v2804
        %2822 = vmatmul.f32.gmra.mxu0 %v2802
        %v2823 = vpop.f32.mrf.mxu0
        %v2824 = vadd.f32 0.0, %v2823
        %2825 = vdwg.mxu0
        %2826 = vst [vmem:[#allocation1] ss:$4 sm:$0xff] %v1214
        %v2827 = vld.sshfl [vmem:[#allocation1] sm:$0xff pattern:$0x73625140]
        %2828 = vrot.lane.b32.xlu0 %v2827, 64
        %v2829 = vpop.permute.xlu0 %2828
        %v2831 = vsel %vm2509, %v2484, 0
        %v2833 = vsel %vm2513, %v2829, 0
        %2835 = vmatpush.msra.mxu0 0.0
        %2836 = vmatpush.msra.mxu0 0.0
        %2837 = vmatpush.msra.mxu0 0.0
        %2838 = vmatpush.msra.mxu0 0.0
        %2839 = vmatpush.msra.mxu0 0.0
        %2840 = vmatpush.msra.mxu0 0.0
        %2841 = vmatpush.msra.mxu0 0.0
        %2842 = vmatpush.msra.mxu0 0.0
        %2843 = vmatpush.msra.mxu0 0.0
        %2844 = vmatpush.msra.mxu0 0.0
        %2845 = vmatpush.msra.mxu0 0.0
        %2846 = vmatpush.msra.mxu0 0.0
        %2847 = vmatpush.msra.mxu0 0.0
        %2848 = vmatpush.msra.mxu0 0.0
        %2849 = vmatpush.msra.mxu0 0.0
        %2850 = vmatpush.msra.mxu0 %v2833
        %2851 = vmatmul.f32.gmra.mxu0 %v2831
        %v2852 = vpop.f32.mrf.mxu0
        %v2853 = vadd.f32 0.0, %v2852
        %2854 = vdwg.mxu0
        %2855 = vst [vmem:[#allocation1] ss:$4 sm:$0xff] %v1216
        %v2856 = vld.sshfl [vmem:[#allocation1] sm:$0xff pattern:$0x73625140]
        %2857 = vrot.lane.b32.xlu0 %v2856, 64
        %v2858 = vpop.permute.xlu0 %2857
        %v2860 = vsel %vm2509, %v2485, 0
        %v2862 = vsel %vm2513, %v2858, 0
        %2864 = vmatpush.msra.mxu0 0.0
        %2865 = vmatpush.msra.mxu0 0.0
        %2866 = vmatpush.msra.mxu0 0.0
        %2867 = vmatpush.msra.mxu0 0.0
        %2868 = vmatpush.msra.mxu0 0.0
        %2869 = vmatpush.msra.mxu0 0.0
        %2870 = vmatpush.msra.mxu0 0.0
        %2871 = vmatpush.msra.mxu0 0.0
        %2872 = vmatpush.msra.mxu0 0.0
        %2873 = vmatpush.msra.mxu0 0.0
        %2874 = vmatpush.msra.mxu0 0.0
        %2875 = vmatpush.msra.mxu0 0.0
        %2876 = vmatpush.msra.mxu0 0.0
        %2877 = vmatpush.msra.mxu0 0.0
        %2878 = vmatpush.msra.mxu0 0.0
        %2879 = vmatpush.msra.mxu0 %v2862
        %2880 = vmatmul.f32.gmra.mxu0 %v2860
        %v2881 = vpop.f32.mrf.mxu0
        %v2882 = vadd.f32 0.0, %v2881
        %2883 = vdwg.mxu0
        %2884 = vst [vmem:[#allocation1] ss:$4 sm:$0xff] %v1218
        %v2885 = vld.sshfl [vmem:[#allocation1] sm:$0xff pattern:$0x73625140]
        %2886 = vrot.lane.b32.xlu0 %v2885, 64
        %v2887 = vpop.permute.xlu0 %2886
        %v2889 = vsel %vm2509, %v2486, 0
        %v2891 = vsel %vm2513, %v2887, 0
        %2893 = vmatpush.msra.mxu0 0.0
        %2894 = vmatpush.msra.mxu0 0.0
        %2895 = vmatpush.msra.mxu0 0.0
        %2896 = vmatpush.msra.mxu0 0.0
        %2897 = vmatpush.msra.mxu0 0.0
        %2898 = vmatpush.msra.mxu0 0.0
        %2899 = vmatpush.msra.mxu0 0.0
        %2900 = vmatpush.msra.mxu0 0.0
        %2901 = vmatpush.msra.mxu0 0.0
        %2902 = vmatpush.msra.mxu0 0.0
        %2903 = vmatpush.msra.mxu0 0.0
        %2904 = vmatpush.msra.mxu0 0.0
        %2905 = vmatpush.msra.mxu0 0.0
        %2906 = vmatpush.msra.mxu0 0.0
        %2907 = vmatpush.msra.mxu0 0.0
        %2908 = vmatpush.msra.mxu0 %v2891
        %2909 = vmatmul.f32.gmra.mxu0 %v2889
        %v2910 = vpop.f32.mrf.mxu0
        %v2911 = vadd.f32 0.0, %v2910
        %2912 = vdwg.mxu0
        %2913 = vst [vmem:[#allocation1] ss:$4 sm:$0xff] %v1220
        %v2914 = vld.sshfl [vmem:[#allocation1] sm:$0xff pattern:$0x73625140]
        %2915 = vrot.lane.b32.xlu0 %v2914, 64
        %v2916 = vpop.permute.xlu0 %2915
        %v2918 = vsel %vm2509, %v2487, 0
        %v2920 = vsel %vm2513, %v2916, 0
        %2922 = vmatpush.msra.mxu0 0.0
        %2923 = vmatpush.msra.mxu0 0.0
        %2924 = vmatpush.msra.mxu0 0.0
        %2925 = vmatpush.msra.mxu0 0.0
        %2926 = vmatpush.msra.mxu0 0.0
        %2927 = vmatpush.msra.mxu0 0.0
        %2928 = vmatpush.msra.mxu0 0.0
        %2929 = vmatpush.msra.mxu0 0.0
        %2930 = vmatpush.msra.mxu0 0.0
        %2931 = vmatpush.msra.mxu0 0.0
        %2932 = vmatpush.msra.mxu0 0.0
        %2933 = vmatpush.msra.mxu0 0.0
        %2934 = vmatpush.msra.mxu0 0.0
        %2935 = vmatpush.msra.mxu0 0.0
        %2936 = vmatpush.msra.mxu0 0.0
        %2937 = vmatpush.msra.mxu0 %v2920
        %2938 = vmatmul.f32.gmra.mxu0 %v2918
        %v2939 = vpop.f32.mrf.mxu0
        %v2940 = vadd.f32 0.0, %v2939
        %2941 = vdwg.mxu0
        %2942 = vst [vmem:[#allocation1] ss:$4 sm:$0xff] %v1222
        %v2943 = vld.sshfl [vmem:[#allocation1] sm:$0xff pattern:$0x73625140]
        %2944 = vrot.lane.b32.xlu0 %v2943, 64
        %v2945 = vpop.permute.xlu0 %2944
        %v2947 = vsel %vm2509, %v2488, 0
        %v2949 = vsel %vm2513, %v2945, 0
        %2951 = vmatpush.msra.mxu0 0.0
        %2952 = vmatpush.msra.mxu0 0.0
        %2953 = vmatpush.msra.mxu0 0.0
        %2954 = vmatpush.msra.mxu0 0.0
        %2955 = vmatpush.msra.mxu0 0.0
        %2956 = vmatpush.msra.mxu0 0.0
        %2957 = vmatpush.msra.mxu0 0.0
        %2958 = vmatpush.msra.mxu0 0.0
        %2959 = vmatpush.msra.mxu0 0.0
        %2960 = vmatpush.msra.mxu0 0.0
        %2961 = vmatpush.msra.mxu0 0.0
        %2962 = vmatpush.msra.mxu0 0.0
        %2963 = vmatpush.msra.mxu0 0.0
        %2964 = vmatpush.msra.mxu0 0.0
        %2965 = vmatpush.msra.mxu0 0.0
        %2966 = vmatpush.msra.mxu0 %v2949
        %2967 = vmatmul.f32.gmra.mxu0 %v2947
        %v2968 = vpop.f32.mrf.mxu0
        %v2969 = vadd.f32 0.0, %v2968
        %2970 = vdwg.mxu0
        %2971 = vst [vmem:[#allocation1] ss:$4 sm:$0xff] %v1224
        %v2972 = vld.sshfl [vmem:[#allocation1] sm:$0xff pattern:$0x73625140]
        %2973 = vrot.lane.b32.xlu0 %v2972, 64
        %v2974 = vpop.permute.xlu0 %2973
        %v2976 = vsel %vm2509, %v2489, 0
        %v2978 = vsel %vm2513, %v2974, 0
        %2980 = vmatpush.msra.mxu0 0.0
        %2981 = vmatpush.msra.mxu0 0.0
        %2982 = vmatpush.msra.mxu0 0.0
        %2983 = vmatpush.msra.mxu0 0.0
        %2984 = vmatpush.msra.mxu0 0.0
        %2985 = vmatpush.msra.mxu0 0.0
        %2986 = vmatpush.msra.mxu0 0.0
        %2987 = vmatpush.msra.mxu0 0.0
        %2988 = vmatpush.msra.mxu0 0.0
        %2989 = vmatpush.msra.mxu0 0.0
        %2990 = vmatpush.msra.mxu0 0.0
        %2991 = vmatpush.msra.mxu0 0.0
        %2992 = vmatpush.msra.mxu0 0.0
        %2993 = vmatpush.msra.mxu0 0.0
        %2994 = vmatpush.msra.mxu0 0.0
        %2995 = vmatpush.msra.mxu0 %v2978
        %2996 = vmatmul.f32.gmra.mxu0 %v2976
        %v2997 = vpop.f32.mrf.mxu0
        %v2998 = vadd.f32 0.0, %v2997
        %2999 = vdwg.mxu0
        %3000 = vst [vmem:[#allocation1] ss:$4 sm:$0xff] %v1226
        %v3001 = vld.sshfl [vmem:[#allocation1] sm:$0xff pattern:$0x73625140]
        %3002 = vrot.lane.b32.xlu0 %v3001, 64
        %v3003 = vpop.permute.xlu0 %3002
        %v3005 = vsel %vm2509, %v2490, 0
        %v3007 = vsel %vm2513, %v3003, 0
        %3009 = vmatpush.msra.mxu0 0.0
        %3010 = vmatpush.msra.mxu0 0.0
        %3011 = vmatpush.msra.mxu0 0.0
        %3012 = vmatpush.msra.mxu0 0.0
        %3013 = vmatpush.msra.mxu0 0.0
        %3014 = vmatpush.msra.mxu0 0.0
        %3015 = vmatpush.msra.mxu0 0.0
        %3016 = vmatpush.msra.mxu0 0.0
        %3017 = vmatpush.msra.mxu0 0.0
        %3018 = vmatpush.msra.mxu0 0.0
        %3019 = vmatpush.msra.mxu0 0.0
        %3020 = vmatpush.msra.mxu0 0.0
        %3021 = vmatpush.msra.mxu0 0.0
        %3022 = vmatpush.msra.mxu0 0.0
        %3023 = vmatpush.msra.mxu0 0.0
        %3024 = vmatpush.msra.mxu0 %v3007
        %3025 = vmatmul.f32.gmra.mxu0 %v3005
        %v3026 = vpop.f32.mrf.mxu0
        %v3027 = vadd.f32 0.0, %v3026
        %3028 = vdwg.mxu0
        %3029 = vst [vmem:[#allocation1] ss:$4 sm:$0xff] %v1228
        %v3030 = vld.sshfl [vmem:[#allocation1] sm:$0xff pattern:$0x73625140]
        %3031 = vrot.lane.b32.xlu0 %v3030, 64
        %v3032 = vpop.permute.xlu0 %3031
        %v3034 = vsel %vm2509, %v2491, 0
        %v3036 = vsel %vm2513, %v3032, 0
        %3038 = vmatpush.msra.mxu0 0.0
        %3039 = vmatpush.msra.mxu0 0.0
        %3040 = vmatpush.msra.mxu0 0.0
        %3041 = vmatpush.msra.mxu0 0.0
        %3042 = vmatpush.msra.mxu0 0.0
        %3043 = vmatpush.msra.mxu0 0.0
        %3044 = vmatpush.msra.mxu0 0.0
        %3045 = vmatpush.msra.mxu0 0.0
        %3046 = vmatpush.msra.mxu0 0.0
        %3047 = vmatpush.msra.mxu0 0.0
        %3048 = vmatpush.msra.mxu0 0.0
        %3049 = vmatpush.msra.mxu0 0.0
        %3050 = vmatpush.msra.mxu0 0.0
        %3051 = vmatpush.msra.mxu0 0.0
        %3052 = vmatpush.msra.mxu0 0.0
        %3053 = vmatpush.msra.mxu0 %v3036
        %3054 = vmatmul.f32.gmra.mxu0 %v3034
        %v3055 = vpop.f32.mrf.mxu0
        %v3056 = vadd.f32 0.0, %v3055
        %3057 = vdwg.mxu0
        %3058 = vst [vmem:[#allocation1] ss:$4 sm:$0xff] %v1230
        %v3059 = vld.sshfl [vmem:[#allocation1] sm:$0xff pattern:$0x73625140]
        %3060 = vrot.lane.b32.xlu0 %v3059, 64
        %v3061 = vpop.permute.xlu0 %3060
        %v3063 = vsel %vm2509, %v2492, 0
        %v3065 = vsel %vm2513, %v3061, 0
        %3067 = vmatpush.msra.mxu0 0.0
        %3068 = vmatpush.msra.mxu0 0.0
        %3069 = vmatpush.msra.mxu0 0.0
        %3070 = vmatpush.msra.mxu0 0.0
        %3071 = vmatpush.msra.mxu0 0.0
        %3072 = vmatpush.msra.mxu0 0.0
        %3073 = vmatpush.msra.mxu0 0.0
        %3074 = vmatpush.msra.mxu0 0.0
        %3075 = vmatpush.msra.mxu0 0.0
        %3076 = vmatpush.msra.mxu0 0.0
        %3077 = vmatpush.msra.mxu0 0.0
        %3078 = vmatpush.msra.mxu0 0.0
        %3079 = vmatpush.msra.mxu0 0.0
        %3080 = vmatpush.msra.mxu0 0.0
        %3081 = vmatpush.msra.mxu0 0.0
        %3082 = vmatpush.msra.mxu0 %v3065
        %3083 = vmatmul.f32.gmra.mxu0 %v3063
        %v3084 = vpop.f32.mrf.mxu0
        %v3085 = vadd.f32 0.0, %v3084
        %3086 = vdwg.mxu0
        %3087 = vst [vmem:[#allocation1] ss:$4 sm:$0xff] %v1232
        %v3088 = vld.sshfl [vmem:[#allocation1] sm:$0xff pattern:$0x73625140]
        %3089 = vrot.lane.b32.xlu0 %v3088, 64
        %v3090 = vpop.permute.xlu0 %3089
        %v3092 = vsel %vm2509, %v2493, 0
        %v3094 = vsel %vm2513, %v3090, 0
        %3096 = vmatpush.msra.mxu0 0.0
        %3097 = vmatpush.msra.mxu0 0.0
        %3098 = vmatpush.msra.mxu0 0.0
        %3099 = vmatpush.msra.mxu0 0.0
        %3100 = vmatpush.msra.mxu0 0.0
        %3101 = vmatpush.msra.mxu0 0.0
        %3102 = vmatpush.msra.mxu0 0.0
        %3103 = vmatpush.msra.mxu0 0.0
        %3104 = vmatpush.msra.mxu0 0.0
        %3105 = vmatpush.msra.mxu0 0.0
        %3106 = vmatpush.msra.mxu0 0.0
        %3107 = vmatpush.msra.mxu0 0.0
        %3108 = vmatpush.msra.mxu0 0.0
        %3109 = vmatpush.msra.mxu0 0.0
        %3110 = vmatpush.msra.mxu0 0.0
        %3111 = vmatpush.msra.mxu0 %v3094
        %3112 = vmatmul.f32.gmra.mxu0 %v3092
        %v3113 = vpop.f32.mrf.mxu0
        %v3114 = vadd.f32 0.0, %v3113
        %3115 = vdwg.mxu0
        %3116 = vst [vmem:[#allocation1] ss:$4 sm:$0xff] %v1234
        %v3117 = vld.sshfl [vmem:[#allocation1] sm:$0xff pattern:$0x73625140]
        %3118 = vrot.lane.b32.xlu0 %v3117, 64
        %v3119 = vpop.permute.xlu0 %3118
        %v3121 = vsel %vm2509, %v2494, 0
        %v3123 = vsel %vm2513, %v3119, 0
        %3125 = vmatpush.msra.mxu0 0.0
        %3126 = vmatpush.msra.mxu0 0.0
        %3127 = vmatpush.msra.mxu0 0.0
        %3128 = vmatpush.msra.mxu0 0.0
        %3129 = vmatpush.msra.mxu0 0.0
        %3130 = vmatpush.msra.mxu0 0.0
        %3131 = vmatpush.msra.mxu0 0.0
        %3132 = vmatpush.msra.mxu0 0.0
        %3133 = vmatpush.msra.mxu0 0.0
        %3134 = vmatpush.msra.mxu0 0.0
        %3135 = vmatpush.msra.mxu0 0.0
        %3136 = vmatpush.msra.mxu0 0.0
        %3137 = vmatpush.msra.mxu0 0.0
        %3138 = vmatpush.msra.mxu0 0.0
        %3139 = vmatpush.msra.mxu0 0.0
        %3140 = vmatpush.msra.mxu0 %v3123
        %3141 = vmatmul.f32.gmra.mxu0 %v3121
        %v3142 = vpop.f32.mrf.mxu0
        %v3143 = vadd.f32 0.0, %v3142
        %3144 = vdwg.mxu0
        %3145 = vst [vmem:[#allocation1] ss:$4 sm:$0xff] %v1236
        %v3146 = vld.sshfl [vmem:[#allocation1] sm:$0xff pattern:$0x73625140]
        %3147 = vrot.lane.b32.xlu0 %v3146, 64
        %v3148 = vpop.permute.xlu0 %3147
        %v3150 = vsel %vm2509, %v2495, 0
        %v3152 = vsel %vm2513, %v3148, 0
        %3154 = vmatpush.msra.mxu0 0.0
        %3155 = vmatpush.msra.mxu0 0.0
        %3156 = vmatpush.msra.mxu0 0.0
        %3157 = vmatpush.msra.mxu0 0.0
        %3158 = vmatpush.msra.mxu0 0.0
        %3159 = vmatpush.msra.mxu0 0.0
        %3160 = vmatpush.msra.mxu0 0.0
        %3161 = vmatpush.msra.mxu0 0.0
        %3162 = vmatpush.msra.mxu0 0.0
        %3163 = vmatpush.msra.mxu0 0.0
        %3164 = vmatpush.msra.mxu0 0.0
        %3165 = vmatpush.msra.mxu0 0.0
        %3166 = vmatpush.msra.mxu0 0.0
        %3167 = vmatpush.msra.mxu0 0.0
        %3168 = vmatpush.msra.mxu0 0.0
        %3169 = vmatpush.msra.mxu0 %v3152
        %3170 = vmatmul.f32.gmra.mxu0 %v3150
        %v3171 = vpop.f32.mrf.mxu0
        %v3172 = vadd.f32 0.0, %v3171
        %3173 = vdwg.mxu0
        %3174 = vst [vmem:[#allocation1] ss:$4 sm:$0xff] %v1238
        %v3175 = vld.sshfl [vmem:[#allocation1] sm:$0xff pattern:$0x73625140]
        %3176 = vrot.lane.b32.xlu0 %v3175, 64
        %v3177 = vpop.permute.xlu0 %3176
        %v3179 = vsel %vm2509, %v2496, 0
        %v3181 = vsel %vm2513, %v3177, 0
        %3183 = vmatpush.msra.mxu0 0.0
        %3184 = vmatpush.msra.mxu0 0.0
        %3185 = vmatpush.msra.mxu0 0.0
        %3186 = vmatpush.msra.mxu0 0.0
        %3187 = vmatpush.msra.mxu0 0.0
        %3188 = vmatpush.msra.mxu0 0.0
        %3189 = vmatpush.msra.mxu0 0.0
        %3190 = vmatpush.msra.mxu0 0.0
        %3191 = vmatpush.msra.mxu0 0.0
        %3192 = vmatpush.msra.mxu0 0.0
        %3193 = vmatpush.msra.mxu0 0.0
        %3194 = vmatpush.msra.mxu0 0.0
        %3195 = vmatpush.msra.mxu0 0.0
        %3196 = vmatpush.msra.mxu0 0.0
        %3197 = vmatpush.msra.mxu0 0.0
        %3198 = vmatpush.msra.mxu0 %v3181
        %3199 = vmatmul.f32.gmra.mxu0 %v3179
        %v3200 = vpop.f32.mrf.mxu0
        %v3201 = vadd.f32 0.0, %v3200
        %3202 = vdwg.mxu0
        %3203 = vst [vmem:[#allocation1] ss:$4 sm:$0xff] %v1240
        %v3204 = vld.sshfl [vmem:[#allocation1] sm:$0xff pattern:$0x73625140]
        %3205 = vrot.lane.b32.xlu0 %v3204, 64
        %v3206 = vpop.permute.xlu0 %3205
        %v3208 = vsel %vm2509, %v2497, 0
        %v3210 = vsel %vm2513, %v3206, 0
        %3212 = vmatpush.msra.mxu0 0.0
        %3213 = vmatpush.msra.mxu0 0.0
        %3214 = vmatpush.msra.mxu0 0.0
        %3215 = vmatpush.msra.mxu0 0.0
        %3216 = vmatpush.msra.mxu0 0.0
        %3217 = vmatpush.msra.mxu0 0.0
        %3218 = vmatpush.msra.mxu0 0.0
        %3219 = vmatpush.msra.mxu0 0.0
        %3220 = vmatpush.msra.mxu0 0.0
        %3221 = vmatpush.msra.mxu0 0.0
        %3222 = vmatpush.msra.mxu0 0.0
        %3223 = vmatpush.msra.mxu0 0.0
        %3224 = vmatpush.msra.mxu0 0.0
        %3225 = vmatpush.msra.mxu0 0.0
        %3226 = vmatpush.msra.mxu0 0.0
        %3227 = vmatpush.msra.mxu0 %v3210
        %3228 = vmatmul.f32.gmra.mxu0 %v3208
        %v3229 = vpop.f32.mrf.mxu0
        %v3230 = vadd.f32 0.0, %v3229
        %3231 = vdwg.mxu0
        %3232 = vst [vmem:[#allocation1] ss:$4 sm:$0xff] %v1242
        %v3233 = vld.sshfl [vmem:[#allocation1] sm:$0xff pattern:$0x73625140]
        %3234 = vrot.lane.b32.xlu0 %v3233, 64
        %v3235 = vpop.permute.xlu0 %3234
        %v3237 = vsel %vm2509, %v2498, 0
        %v3239 = vsel %vm2513, %v3235, 0
        %3241 = vmatpush.msra.mxu0 0.0
        %3242 = vmatpush.msra.mxu0 0.0
        %3243 = vmatpush.msra.mxu0 0.0
        %3244 = vmatpush.msra.mxu0 0.0
        %3245 = vmatpush.msra.mxu0 0.0
        %3246 = vmatpush.msra.mxu0 0.0
        %3247 = vmatpush.msra.mxu0 0.0
        %3248 = vmatpush.msra.mxu0 0.0
        %3249 = vmatpush.msra.mxu0 0.0
        %3250 = vmatpush.msra.mxu0 0.0
        %3251 = vmatpush.msra.mxu0 0.0
        %3252 = vmatpush.msra.mxu0 0.0
        %3253 = vmatpush.msra.mxu0 0.0
        %3254 = vmatpush.msra.mxu0 0.0
        %3255 = vmatpush.msra.mxu0 0.0
        %3256 = vmatpush.msra.mxu0 %v3239
        %3257 = vmatmul.f32.gmra.mxu0 %v3237
        %v3258 = vpop.f32.mrf.mxu0
        %v3259 = vadd.f32 0.0, %v3258
        %3260 = vdwg.mxu0
        %3261 = vst [vmem:[#allocation1] ss:$4 sm:$0xff] %v1244
        %v3262 = vld.sshfl [vmem:[#allocation1] sm:$0xff pattern:$0x73625140]
        %3263 = vrot.lane.b32.xlu0 %v3262, 64
        %v3264 = vpop.permute.xlu0 %3263
        %v3266 = vsel %vm2509, %v2499, 0
        %v3268 = vsel %vm2513, %v3264, 0
        %3270 = vmatpush.msra.mxu0 0.0
        %3271 = vmatpush.msra.mxu0 0.0
        %3272 = vmatpush.msra.mxu0 0.0
        %3273 = vmatpush.msra.mxu0 0.0
        %3274 = vmatpush.msra.mxu0 0.0
        %3275 = vmatpush.msra.mxu0 0.0
        %3276 = vmatpush.msra.mxu0 0.0
        %3277 = vmatpush.msra.mxu0 0.0
        %3278 = vmatpush.msra.mxu0 0.0
        %3279 = vmatpush.msra.mxu0 0.0
        %3280 = vmatpush.msra.mxu0 0.0
        %3281 = vmatpush.msra.mxu0 0.0
        %3282 = vmatpush.msra.mxu0 0.0
        %3283 = vmatpush.msra.mxu0 0.0
        %3284 = vmatpush.msra.mxu0 0.0
        %3285 = vmatpush.msra.mxu0 %v3268
        %3286 = vmatmul.f32.gmra.mxu0 %v3266
        %v3287 = vpop.f32.mrf.mxu0
        %v3288 = vadd.f32 0.0, %v3287
        %3289 = vdwg.mxu0
        %3290 = vst [vmem:[#allocation1] ss:$4 sm:$0xff] %v1246
        %v3291 = vld.sshfl [vmem:[#allocation1] sm:$0xff pattern:$0x73625140]
        %3292 = vrot.lane.b32.xlu0 %v3291, 64
        %v3293 = vpop.permute.xlu0 %3292
        %v3295 = vsel %vm2509, %v2500, 0
        %v3297 = vsel %vm2513, %v3293, 0
        %3299 = vmatpush.msra.mxu0 0.0
        %3300 = vmatpush.msra.mxu0 0.0
        %3301 = vmatpush.msra.mxu0 0.0
        %3302 = vmatpush.msra.mxu0 0.0
        %3303 = vmatpush.msra.mxu0 0.0
        %3304 = vmatpush.msra.mxu0 0.0
        %3305 = vmatpush.msra.mxu0 0.0
        %3306 = vmatpush.msra.mxu0 0.0
        %3307 = vmatpush.msra.mxu0 0.0
        %3308 = vmatpush.msra.mxu0 0.0
        %3309 = vmatpush.msra.mxu0 0.0
        %3310 = vmatpush.msra.mxu0 0.0
        %3311 = vmatpush.msra.mxu0 0.0
        %3312 = vmatpush.msra.mxu0 0.0
        %3313 = vmatpush.msra.mxu0 0.0
        %3314 = vmatpush.msra.mxu0 %v3297
        %3315 = vmatmul.f32.gmra.mxu0 %v3295
        %v3316 = vpop.f32.mrf.mxu0
        %v3317 = vadd.f32 0.0, %v3316
        %3318 = vdwg.mxu0
        %3319 = vst [vmem:[#allocation1] ss:$4 sm:$0xff] %v1248
        %v3320 = vld.sshfl [vmem:[#allocation1] sm:$0xff pattern:$0x73625140]
        %3321 = vrot.lane.b32.xlu0 %v3320, 64
        %v3322 = vpop.permute.xlu0 %3321
        %v3324 = vsel %vm2509, %v2501, 0
        %v3326 = vsel %vm2513, %v3322, 0
        %3328 = vmatpush.msra.mxu0 0.0
        %3329 = vmatpush.msra.mxu0 0.0
        %3330 = vmatpush.msra.mxu0 0.0
        %3331 = vmatpush.msra.mxu0 0.0
        %3332 = vmatpush.msra.mxu0 0.0
        %3333 = vmatpush.msra.mxu0 0.0
        %3334 = vmatpush.msra.mxu0 0.0
        %3335 = vmatpush.msra.mxu0 0.0
        %3336 = vmatpush.msra.mxu0 0.0
        %3337 = vmatpush.msra.mxu0 0.0
        %3338 = vmatpush.msra.mxu0 0.0
        %3339 = vmatpush.msra.mxu0 0.0
        %3340 = vmatpush.msra.mxu0 0.0
        %3341 = vmatpush.msra.mxu0 0.0
        %3342 = vmatpush.msra.mxu0 0.0
        %3343 = vmatpush.msra.mxu0 %v3326
        %3344 = vmatmul.f32.gmra.mxu0 %v3324
        %v3345 = vpop.f32.mrf.mxu0
        %v3346 = vadd.f32 0.0, %v3345
        %3347 = vdwg.mxu0
        %3348 = vst [vmem:[#allocation1] ss:$4 sm:$0xff] %v1250
        %v3349 = vld.sshfl [vmem:[#allocation1] sm:$0xff pattern:$0x73625140]
        %3350 = vrot.lane.b32.xlu0 %v3349, 64
        %v3351 = vpop.permute.xlu0 %3350
        %v3353 = vsel %vm2509, %v2502, 0
        %v3355 = vsel %vm2513, %v3351, 0
        %3357 = vmatpush.msra.mxu0 0.0
        %3358 = vmatpush.msra.mxu0 0.0
        %3359 = vmatpush.msra.mxu0 0.0
        %3360 = vmatpush.msra.mxu0 0.0
        %3361 = vmatpush.msra.mxu0 0.0
        %3362 = vmatpush.msra.mxu0 0.0
        %3363 = vmatpush.msra.mxu0 0.0
        %3364 = vmatpush.msra.mxu0 0.0
        %3365 = vmatpush.msra.mxu0 0.0
        %3366 = vmatpush.msra.mxu0 0.0
        %3367 = vmatpush.msra.mxu0 0.0
        %3368 = vmatpush.msra.mxu0 0.0
        %3369 = vmatpush.msra.mxu0 0.0
        %3370 = vmatpush.msra.mxu0 0.0
        %3371 = vmatpush.msra.mxu0 0.0
        %3372 = vmatpush.msra.mxu0 %v3355
        %3373 = vmatmul.f32.gmra.mxu0 %v3353
        %v3374 = vpop.f32.mrf.mxu0
        %v3375 = vadd.f32 0.0, %v3374
        %3376 = vdwg.mxu0
        %3377 = vst [vmem:[#allocation1] ss:$4 sm:$0xff] %v1252
        %v3378 = vld.sshfl [vmem:[#allocation1] sm:$0xff pattern:$0x73625140]
        %3379 = vrot.lane.b32.xlu0 %v3378, 64
        %v3380 = vpop.permute.xlu0 %3379
        %v3382 = vsel %vm2509, %v2503, 0
        %v3384 = vsel %vm2513, %v3380, 0
        %3386 = vmatpush.msra.mxu0 0.0
        %3387 = vmatpush.msra.mxu0 0.0
        %3388 = vmatpush.msra.mxu0 0.0
        %3389 = vmatpush.msra.mxu0 0.0
        %3390 = vmatpush.msra.mxu0 0.0
        %3391 = vmatpush.msra.mxu0 0.0
        %3392 = vmatpush.msra.mxu0 0.0
        %3393 = vmatpush.msra.mxu0 0.0
        %3394 = vmatpush.msra.mxu0 0.0
        %3395 = vmatpush.msra.mxu0 0.0
        %3396 = vmatpush.msra.mxu0 0.0
        %3397 = vmatpush.msra.mxu0 0.0
        %3398 = vmatpush.msra.mxu0 0.0
        %3399 = vmatpush.msra.mxu0 0.0
        %3400 = vmatpush.msra.mxu0 0.0
        %3401 = vmatpush.msra.mxu0 %v3384
        %3402 = vmatmul.f32.gmra.mxu0 %v3382
        %v3403 = vpop.f32.mrf.mxu0
        %v3404 = vadd.f32 0.0, %v3403
        %3405 = vdwg.mxu0
        %3406 = vst [vmem:[#allocation1] ss:$4 sm:$0xff] %v1254
        %v3407 = vld.sshfl [vmem:[#allocation1] sm:$0xff pattern:$0x73625140]
        %3408 = vrot.lane.b32.xlu0 %v3407, 64
        %v3409 = vpop.permute.xlu0 %3408
        %v3411 = vsel %vm2509, %v2504, 0
        %v3413 = vsel %vm2513, %v3409, 0
        %3415 = vmatpush.msra.mxu0 0.0
        %3416 = vmatpush.msra.mxu0 0.0
        %3417 = vmatpush.msra.mxu0 0.0
        %3418 = vmatpush.msra.mxu0 0.0
        %3419 = vmatpush.msra.mxu0 0.0
        %3420 = vmatpush.msra.mxu0 0.0
        %3421 = vmatpush.msra.mxu0 0.0
        %3422 = vmatpush.msra.mxu0 0.0
        %3423 = vmatpush.msra.mxu0 0.0
        %3424 = vmatpush.msra.mxu0 0.0
        %3425 = vmatpush.msra.mxu0 0.0
        %3426 = vmatpush.msra.mxu0 0.0
        %3427 = vmatpush.msra.mxu0 0.0
        %3428 = vmatpush.msra.mxu0 0.0
        %3429 = vmatpush.msra.mxu0 0.0
        %3430 = vmatpush.msra.mxu0 %v3413
        %3431 = vmatmul.f32.gmra.mxu0 %v3411
        %v3432 = vpop.f32.mrf.mxu0
        %v3433 = vadd.f32 0.0, %v3432
        %3434 = vdwg.mxu0
        %3443 = vst [vmem:[#allocation1] ss:$4 sm:$0xff] %v2534
        %s3444 = scalar_lea.vmem [#allocation1], 1
        %3445 = vst [vmem:[%s3444] ss:$4 sm:$0xff] %v2563
        %s3446 = scalar_lea.vmem [#allocation1], 2
        %3447 = vst [vmem:[%s3446] ss:$4 sm:$0xff] %v2592
        %s3448 = scalar_lea.vmem [#allocation1], 3
        %3449 = vst [vmem:[%s3448] ss:$4 sm:$0xff] %v2621
        %s3450 = scalar_lea.vmem [#allocation1], 32
        %3451 = vst [vmem:[%s3450] ss:$4 sm:$0xff] %v2650
        %s3452 = scalar_lea.vmem [#allocation1], 33
        %3453 = vst [vmem:[%s3452] ss:$4 sm:$0xff] %v2679
        %s3454 = scalar_lea.vmem [#allocation1], 34
        %3455 = vst [vmem:[%s3454] ss:$4 sm:$0xff] %v2708
        %s3456 = scalar_lea.vmem [#allocation1], 35
        %3457 = vst [vmem:[%s3456] ss:$4 sm:$0xff] %v2737
        %v3458 = vld.sshfl [vmem:[#allocation1] sm:$0xff pattern:$0x73625140]
        %v3459 = vld.sshfl [vmem:[#allocation1 + $0x20] sm:$0xff pattern:$0x73625140]
        %3470 = vst [vmem:[#allocation1] ss:$4 sm:$0xff] %v2766
        %s3471 = scalar_lea.vmem [#allocation1], 1
        %3472 = vst [vmem:[%s3471] ss:$4 sm:$0xff] %v2795
        %s3473 = scalar_lea.vmem [#allocation1], 2
        %3474 = vst [vmem:[%s3473] ss:$4 sm:$0xff] %v2824
        %s3475 = scalar_lea.vmem [#allocation1], 3
        %3476 = vst [vmem:[%s3475] ss:$4 sm:$0xff] %v2853
        %s3477 = scalar_lea.vmem [#allocation1], 32
        %3478 = vst [vmem:[%s3477] ss:$4 sm:$0xff] %v2882
        %s3479 = scalar_lea.vmem [#allocation1], 33
        %3480 = vst [vmem:[%s3479] ss:$4 sm:$0xff] %v2911
        %s3481 = scalar_lea.vmem [#allocation1], 34
        %3482 = vst [vmem:[%s3481] ss:$4 sm:$0xff] %v2940
        %s3483 = scalar_lea.vmem [#allocation1], 35
        %3484 = vst [vmem:[%s3483] ss:$4 sm:$0xff] %v2969
        %v3485 = vld.sshfl [vmem:[#allocation1] sm:$0xff pattern:$0x73625140]
        %v3486 = vld.sshfl [vmem:[#allocation1 + $0x20] sm:$0xff pattern:$0x73625140]
        %3487 = vrot.lane.b32.xlu0 %v3485, 8
        %v3488 = vpop.permute.xlu0 %3487
        %3489 = vrot.lane.b32.xlu0 %v3486, 8
        %v3490 = vpop.permute.xlu0 %3489
        %3501 = vst [vmem:[#allocation1] ss:$4 sm:$0xff] %v2998
        %s3502 = scalar_lea.vmem [#allocation1], 1
        %3503 = vst [vmem:[%s3502] ss:$4 sm:$0xff] %v3027
        %s3504 = scalar_lea.vmem [#allocation1], 2
        %3505 = vst [vmem:[%s3504] ss:$4 sm:$0xff] %v3056
        %s3506 = scalar_lea.vmem [#allocation1], 3
        %3507 = vst [vmem:[%s3506] ss:$4 sm:$0xff] %v3085
        %s3508 = scalar_lea.vmem [#allocation1], 32
        %3509 = vst [vmem:[%s3508] ss:$4 sm:$0xff] %v3114
        %s3510 = scalar_lea.vmem [#allocation1], 33
        %3511 = vst [vmem:[%s3510] ss:$4 sm:$0xff] %v3143
        %s3512 = scalar_lea.vmem [#allocation1], 34
        %3513 = vst [vmem:[%s3512] ss:$4 sm:$0xff] %v3172
        %s3514 = scalar_lea.vmem [#allocation1], 35
        %3515 = vst [vmem:[%s3514] ss:$4 sm:$0xff] %v3201
        %v3516 = vld.sshfl [vmem:[#allocation1] sm:$0xff pattern:$0x73625140]
        %v3517 = vld.sshfl [vmem:[#allocation1 + $0x20] sm:$0xff pattern:$0x73625140]
        %3518 = vrot.lane.b32.xlu0 %v3516, 16
        %v3519 = vpop.permute.xlu0 %3518
        %3520 = vrot.lane.b32.xlu0 %v3517, 16
        %v3521 = vpop.permute.xlu0 %3520
        %3532 = vst [vmem:[#allocation1] ss:$4 sm:$0xff] %v3230
        %s3533 = scalar_lea.vmem [#allocation1], 1
        %3534 = vst [vmem:[%s3533] ss:$4 sm:$0xff] %v3259
        %s3535 = scalar_lea.vmem [#allocation1], 2
        %3536 = vst [vmem:[%s3535] ss:$4 sm:$0xff] %v3288
        %s3537 = scalar_lea.vmem [#allocation1], 3
        %3538 = vst [vmem:[%s3537] ss:$4 sm:$0xff] %v3317
        %s3539 = scalar_lea.vmem [#allocation1], 32
        %3540 = vst [vmem:[%s3539] ss:$4 sm:$0xff] %v3346
        %s3541 = scalar_lea.vmem [#allocation1], 33
        %3542 = vst [vmem:[%s3541] ss:$4 sm:$0xff] %v3375
        %s3543 = scalar_lea.vmem [#allocation1], 34
        %3544 = vst [vmem:[%s3543] ss:$4 sm:$0xff] %v3404
        %s3545 = scalar_lea.vmem [#allocation1], 35
        %3546 = vst [vmem:[%s3545] ss:$4 sm:$0xff] %v3433
        %v3547 = vld.sshfl [vmem:[#allocation1] sm:$0xff pattern:$0x73625140]
        %v3548 = vld.sshfl [vmem:[#allocation1 + $0x20] sm:$0xff pattern:$0x73625140]
        %3549 = vrot.lane.b32.xlu0 %v3547, 24
        %v3550 = vpop.permute.xlu0 %3549
        %3551 = vrot.lane.b32.xlu0 %v3548, 24
        %v3552 = vpop.permute.xlu0 %3551
        %v3555 = vsel %vm1259, %v3458, %v3488
        %v3556 = vsel %vm1259, %v3459, %v3490
        %vm3557 = vcmask 130048
        %v3558 = vsel %vm3557, %v3555, %v3519
        %v3559 = vsel %vm3557, %v3556, %v3521
        %vm3560 = vcmask 195584
        %v3561 = vsel %vm3560, %v3558, %v3550
        %v3562 = vsel %vm3560, %v3559, %v3552
        %v3563 = vld [vmem:[%s725] sm:$0xff]
        %v3564 = vld [vmem:[%s725 + $0x8] sm:$0xff]
        %v3565 = vld [vmem:[%s725 + $0x10] sm:$0xff]
        %v3566 = vld [vmem:[%s725 + $0x18] sm:$0xff]
        %v3567 = vld [vmem:[%s850] sm:$0x1]
        %v3569 = vperm.slane %v3567, 0
        %v3572 = vsel %vm1171, %v3561, 0
        %v3575 = vsel %vm1171, %v3562, 0
        %3577 = vmatpush.msra.mxu0 0.0
        %3578 = vmatpush.msra.mxu0 0.0
        %3579 = vmatpush.msra.mxu0 0.0
        %3580 = vmatpush.msra.mxu0 0.0
        %3581 = vmatpush.msra.mxu0 0.0
        %3582 = vmatpush.msra.mxu0 0.0
        %3583 = vmatpush.msra.mxu0 0.0
        %3584 = vmatpush.msra.mxu0 0.0
        %3585 = vmatpush.msra.mxu0 0.0
        %3586 = vmatpush.msra.mxu0 0.0
        %3587 = vmatpush.msra.mxu0 0.0
        %3588 = vmatpush.msra.mxu0 0.0
        %3589 = vmatpush.msra.mxu0 %v3566
        %3590 = vmatpush.msra.mxu0 %v3565
        %3591 = vmatpush.msra.mxu0 %v3564
        %3592 = vmatpush.msra.mxu0 %v3563
        %3593 = vmatmul.f32.gmra.mxu0 %v3572
        %v3594 = vpop.f32.mrf.mxu0
        %v3595 = vadd.f32 %v3569, %v3594
        %3596 = vmatmul.f32.gmra.mxu0 %v3575
        %v3597 = vpop.f32.mrf.mxu0
        %v3598 = vadd.f32 %v3569, %v3597
        %3599 = vdwg.mxu0
        %v3602 = vrot.slane %v3595, 2
        %v3603 = vrot.slane %v3595, 4
        %v3604 = vrot.slane %v3595, 6
        %v3605 = vrot.slane %v3598, 2
        %v3606 = vrot.slane %v3598, 4
        %v3607 = vrot.slane %v3598, 6
        %v3614 = vadd.f32 %v922, %v3595
        %v3615 = vadd.f32 %v923, %v3602
        %v3616 = vadd.f32 %v924, %v3603
        %v3617 = vadd.f32 %v925, %v3604
        %v3618 = vadd.f32 %v926, %v3598
        %v3619 = vadd.f32 %v927, %v3605
        %v3620 = vadd.f32 %v928, %v3606
        %v3621 = vadd.f32 %v929, %v3607
        %v3622 = vld [vmem:[%s734] sm:$0x1]
        %v3623 = vld [vmem:[%s853] sm:$0x1]
        %v3624 = vsel %vm932, %v3614, 0.0
        %3625 = vadd.xlane.f32.xlu0 %v3624
        %v3626 = vpop.xlane.xlu0 %3625
        %v3627 = vsel %vm932, %v3615, 0.0
        %3628 = vadd.xlane.f32.xlu0 %v3627
        %v3629 = vpop.xlane.xlu0 %3628
        %v3630 = vsel %vm932, %v3616, 0.0
        %3631 = vadd.xlane.f32.xlu0 %v3630
        %v3632 = vpop.xlane.xlu0 %3631
        %v3633 = vsel %vm932, %v3617, 0.0
        %3634 = vadd.xlane.f32.xlu0 %v3633
        %v3635 = vpop.xlane.xlu0 %3634
        %v3636 = vsel %vm932, %v3618, 0.0
        %3637 = vadd.xlane.f32.xlu0 %v3636
        %v3638 = vpop.xlane.xlu0 %3637
        %v3639 = vsel %vm932, %v3619, 0.0
        %3640 = vadd.xlane.f32.xlu0 %v3639
        %v3641 = vpop.xlane.xlu0 %3640
        %v3642 = vsel %vm932, %v3620, 0.0
        %3643 = vadd.xlane.f32.xlu0 %v3642
        %v3644 = vpop.xlane.xlu0 %3643
        %v3645 = vsel %vm932, %v3621, 0.0
        %3646 = vadd.xlane.f32.xlu0 %v3645
        %v3647 = vpop.xlane.xlu0 %3646
        %v3648 = vmul.f32 %v3626, %v963
        %v3649 = vmul.f32 %v3629, %v963
        %v3650 = vmul.f32 %v3632, %v963
        %v3651 = vmul.f32 %v3635, %v963
        %v3652 = vmul.f32 %v3638, %v963
        %v3653 = vmul.f32 %v3641, %v963
        %v3654 = vmul.f32 %v3644, %v963
        %v3655 = vmul.f32 %v3647, %v963
        %v3656 = vsub.f32 %v3614, %v3648
        %v3657 = vsub.f32 %v3615, %v3649
        %v3658 = vsub.f32 %v3616, %v3650
        %v3659 = vsub.f32 %v3617, %v3651
        %v3660 = vsub.f32 %v3618, %v3652
        %v3661 = vsub.f32 %v3619, %v3653
        %v3662 = vsub.f32 %v3620, %v3654
        %v3663 = vsub.f32 %v3621, %v3655
        %v3664 = vmul.f32 %v3656, %v3656
        %v3665 = vmul.f32 %v3657, %v3657
        %v3666 = vmul.f32 %v3658, %v3658
        %v3667 = vmul.f32 %v3659, %v3659
        %v3668 = vmul.f32 %v3660, %v3660
        %v3669 = vmul.f32 %v3661, %v3661
        %v3670 = vmul.f32 %v3662, %v3662
        %v3671 = vmul.f32 %v3663, %v3663
        %v3672 = vsel %vm932, %v3664, 0.0
        %3673 = vadd.xlane.f32.xlu0 %v3672
        %v3674 = vpop.xlane.xlu0 %3673
        %v3675 = vsel %vm932, %v3665, 0.0
        %3676 = vadd.xlane.f32.xlu0 %v3675
        %v3677 = vpop.xlane.xlu0 %3676
        %v3678 = vsel %vm932, %v3666, 0.0
        %3679 = vadd.xlane.f32.xlu0 %v3678
        %v3680 = vpop.xlane.xlu0 %3679
        %v3681 = vsel %vm932, %v3667, 0.0
        %3682 = vadd.xlane.f32.xlu0 %v3681
        %v3683 = vpop.xlane.xlu0 %3682
        %v3684 = vsel %vm932, %v3668, 0.0
        %3685 = vadd.xlane.f32.xlu0 %v3684
        %v3686 = vpop.xlane.xlu0 %3685
        %v3687 = vsel %vm932, %v3669, 0.0
        %3688 = vadd.xlane.f32.xlu0 %v3687
        %v3689 = vpop.xlane.xlu0 %3688
        %v3690 = vsel %vm932, %v3670, 0.0
        %3691 = vadd.xlane.f32.xlu0 %v3690
        %v3692 = vpop.xlane.xlu0 %3691
        %v3693 = vsel %vm932, %v3671, 0.0
        %3694 = vadd.xlane.f32.xlu0 %v3693
        %v3695 = vpop.xlane.xlu0 %3694
        %v3696 = vmul.f32 %v3674, %v963
        %v3697 = vmul.f32 %v3677, %v963
        %v3698 = vmul.f32 %v3680, %v963
        %v3699 = vmul.f32 %v3683, %v963
        %v3700 = vmul.f32 %v3686, %v963
        %v3701 = vmul.f32 %v3689, %v963
        %v3702 = vmul.f32 %v3692, %v963
        %v3703 = vmul.f32 %v3695, %v963
        %v3704 = vadd.f32 %v3696, 1e-05
        %v3705 = vadd.f32 %v3697, 1e-05
        %v3706 = vadd.f32 %v3698, 1e-05
        %v3707 = vadd.f32 %v3699, 1e-05
        %v3708 = vadd.f32 %v3700, 1e-05
        %v3709 = vadd.f32 %v3701, 1e-05
        %v3710 = vadd.f32 %v3702, 1e-05
        %v3711 = vadd.f32 %v3703, 1e-05
        %v3712 = vrsqrt.pop %v3704
        %v3713 = vmul.f32 %v3712, %v3704
        %v3714 = vmul.f32 %v3713, %v3712
        %v3715 = vmul.f32 0.5, %v3714
        %v3716 = vsub.f32 1.5, %v3715
        %v3717 = vmul.f32 %v3712, %v3716
        %vm3718 = vweird.f32 %v3704
        %vm3719 = vweird.f32 %v3712
        %vm3720 = vmor %vm3718, %vm3719
        %v3721 = vsel %vm3720, %v3712, %v3717
        %v3722 = vrsqrt.pop %v3705
        %v3723 = vmul.f32 %v3722, %v3705
        %v3724 = vmul.f32 %v3723, %v3722
        %v3725 = vmul.f32 0.5, %v3724
        %v3726 = vsub.f32 1.5, %v3725
        %v3727 = vmul.f32 %v3722, %v3726
        %vm3728 = vweird.f32 %v3705
        %vm3729 = vweird.f32 %v3722
        %vm3730 = vmor %vm3728, %vm3729
        %v3731 = vsel %vm3730, %v3722, %v3727
        %v3732 = vrsqrt.pop %v3706
        %v3733 = vmul.f32 %v3732, %v3706
        %v3734 = vmul.f32 %v3733, %v3732
        %v3735 = vmul.f32 0.5, %v3734
        %v3736 = vsub.f32 1.5, %v3735
        %v3737 = vmul.f32 %v3732, %v3736
        %vm3738 = vweird.f32 %v3706
        %vm3739 = vweird.f32 %v3732
        %vm3740 = vmor %vm3738, %vm3739
        %v3741 = vsel %vm3740, %v3732, %v3737
        %v3742 = vrsqrt.pop %v3707
        %v3743 = vmul.f32 %v3742, %v3707
        %v3744 = vmul.f32 %v3743, %v3742
        %v3745 = vmul.f32 0.5, %v3744
        %v3746 = vsub.f32 1.5, %v3745
        %v3747 = vmul.f32 %v3742, %v3746
        %vm3748 = vweird.f32 %v3707
        %vm3749 = vweird.f32 %v3742
        %vm3750 = vmor %vm3748, %vm3749
        %v3751 = vsel %vm3750, %v3742, %v3747
        %v3752 = vrsqrt.pop %v3708
        %v3753 = vmul.f32 %v3752, %v3708
        %v3754 = vmul.f32 %v3753, %v3752
        %v3755 = vmul.f32 0.5, %v3754
        %v3756 = vsub.f32 1.5, %v3755
        %v3757 = vmul.f32 %v3752, %v3756
        %vm3758 = vweird.f32 %v3708
        %vm3759 = vweird.f32 %v3752
        %vm3760 = vmor %vm3758, %vm3759
        %v3761 = vsel %vm3760, %v3752, %v3757
        %v3762 = vrsqrt.pop %v3709
        %v3763 = vmul.f32 %v3762, %v3709
        %v3764 = vmul.f32 %v3763, %v3762
        %v3765 = vmul.f32 0.5, %v3764
        %v3766 = vsub.f32 1.5, %v3765
        %v3767 = vmul.f32 %v3762, %v3766
        %vm3768 = vweird.f32 %v3709
        %vm3769 = vweird.f32 %v3762
        %vm3770 = vmor %vm3768, %vm3769
        %v3771 = vsel %vm3770, %v3762, %v3767
        %v3772 = vrsqrt.pop %v3710
        %v3773 = vmul.f32 %v3772, %v3710
        %v3774 = vmul.f32 %v3773, %v3772
        %v3775 = vmul.f32 0.5, %v3774
        %v3776 = vsub.f32 1.5, %v3775
        %v3777 = vmul.f32 %v3772, %v3776
        %vm3778 = vweird.f32 %v3710
        %vm3779 = vweird.f32 %v3772
        %vm3780 = vmor %vm3778, %vm3779
        %v3781 = vsel %vm3780, %v3772, %v3777
        %v3782 = vrsqrt.pop %v3711
        %v3783 = vmul.f32 %v3782, %v3711
        %v3784 = vmul.f32 %v3783, %v3782
        %v3785 = vmul.f32 0.5, %v3784
        %v3786 = vsub.f32 1.5, %v3785
        %v3787 = vmul.f32 %v3782, %v3786
        %vm3788 = vweird.f32 %v3711
        %vm3789 = vweird.f32 %v3782
        %vm3790 = vmor %vm3788, %vm3789
        %v3791 = vsel %vm3790, %v3782, %v3787
        %v3792 = vmul.f32 %v3656, %v3721
        %v3793 = vmul.f32 %v3657, %v3731
        %v3794 = vmul.f32 %v3658, %v3741
        %v3795 = vmul.f32 %v3659, %v3751
        %v3796 = vmul.f32 %v3660, %v3761
        %v3797 = vmul.f32 %v3661, %v3771
        %v3798 = vmul.f32 %v3662, %v3781
        %v3799 = vmul.f32 %v3663, %v3791
        %v3801 = vperm.slane %v3622, 0
        %v3803 = vmul.f32 %v3792, %v3801
        %v3804 = vmul.f32 %v3793, %v3801
        %v3805 = vmul.f32 %v3794, %v3801
        %v3806 = vmul.f32 %v3795, %v3801
        %v3807 = vmul.f32 %v3796, %v3801
        %v3808 = vmul.f32 %v3797, %v3801
        %v3809 = vmul.f32 %v3798, %v3801
        %v3810 = vmul.f32 %v3799, %v3801
        %v3812 = vperm.slane %v3623, 0
        %v3814 = vadd.f32 %v3803, %v3812
        %v3815 = vadd.f32 %v3804, %v3812
        %v3816 = vadd.f32 %v3805, %v3812
        %v3817 = vadd.f32 %v3806, %v3812
        %v3818 = vadd.f32 %v3807, %v3812
        %v3819 = vadd.f32 %v3808, %v3812
        %v3820 = vadd.f32 %v3809, %v3812
        %v3821 = vadd.f32 %v3810, %v3812
        %v3822 = vld [vmem:[%s744] sm:$0xff]
        %v3823 = vld [vmem:[%s744 + $0x8] sm:$0xff]
        %v3824 = vld [vmem:[%s744 + $0x10] sm:$0xff]
        %v3825 = vld [vmem:[%s744 + $0x18] sm:$0xff]
        %v3826 = vld [vmem:[%s856] sm:$0x1]
        %v3828 = vperm.slane %v3826, 0
        %3838 = vst [vmem:[#allocation1] ss:$4 sm:$0xff] %v3814
        %s3839 = scalar_lea.vmem [#allocation1], 1
        %3840 = vst [vmem:[%s3839] ss:$4 sm:$0xff] %v3815
        %s3841 = scalar_lea.vmem [#allocation1], 2
        %3842 = vst [vmem:[%s3841] ss:$4 sm:$0xff] %v3816
        %s3843 = scalar_lea.vmem [#allocation1], 3
        %3844 = vst [vmem:[%s3843] ss:$4 sm:$0xff] %v3817
        %s3845 = scalar_lea.vmem [#allocation1], 32
        %3846 = vst [vmem:[%s3845] ss:$4 sm:$0xff] %v3818
        %s3847 = scalar_lea.vmem [#allocation1], 33
        %3848 = vst [vmem:[%s3847] ss:$4 sm:$0xff] %v3819
        %s3849 = scalar_lea.vmem [#allocation1], 34
        %3850 = vst [vmem:[%s3849] ss:$4 sm:$0xff] %v3820
        %s3851 = scalar_lea.vmem [#allocation1], 35
        %3852 = vst [vmem:[%s3851] ss:$4 sm:$0xff] %v3821
        %v3853 = vld.sshfl [vmem:[#allocation1] sm:$0xff pattern:$0x73625140]
        %v3854 = vld.sshfl [vmem:[#allocation1 + $0x20] sm:$0xff pattern:$0x73625140]
        %v3855 = vsel %vm1171, %v3853, 0
        %v3857 = vsel %vm1171, %v3854, 0
        %3859 = vmatpush.msra.mxu0 0.0
        %3860 = vmatpush.msra.mxu0 0.0
        %3861 = vmatpush.msra.mxu0 0.0
        %3862 = vmatpush.msra.mxu0 0.0
        %3863 = vmatpush.msra.mxu0 0.0
        %3864 = vmatpush.msra.mxu0 0.0
        %3865 = vmatpush.msra.mxu0 0.0
        %3866 = vmatpush.msra.mxu0 0.0
        %3867 = vmatpush.msra.mxu0 0.0
        %3868 = vmatpush.msra.mxu0 0.0
        %3869 = vmatpush.msra.mxu0 0.0
        %3870 = vmatpush.msra.mxu0 0.0
        %3871 = vmatpush.msra.mxu0 %v3825
        %3872 = vmatpush.msra.mxu0 %v3824
        %3873 = vmatpush.msra.mxu0 %v3823
        %3874 = vmatpush.msra.mxu0 %v3822
        %3875 = vmatmul.f32.gmra.mxu0 %v3855
        %v3876 = vpop.f32.mrf.mxu0
        %v3877 = vadd.f32 %v3828, %v3876
        %3878 = vmatmul.f32.gmra.mxu0 %v3857
        %v3879 = vpop.f32.mrf.mxu0
        %v3880 = vadd.f32 %v3828, %v3879
        %3881 = vdwg.mxu0
        %v3882 = vmul.f32 %v3877, 0.5
        %v3883 = vmul.f32 %v3880, 0.5
        %v3884 = vmul.f32 %v3877, 0.044715
        %v3885 = vmul.f32 %v3880, 0.044715
        %v3886 = vmul.f32 %v3884, %v3877
        %v3887 = vmul.f32 %v3885, %v3880
        %v3888 = vmul.f32 %v3886, %v3877
        %v3889 = vmul.f32 %v3887, %v3880
        %v3890 = vadd.f32 %v3877, %v3888
        %v3891 = vadd.f32 %v3880, %v3889
        %v3892 = vmul.f32 %v3890, 0.7978846
        %v3893 = vmul.f32 %v3891, 0.7978846
        %v3894 = vtanh.pop %v3892
        %v3895 = vtanh.pop %v3893
        %v3896 = vadd.f32 %v3894, 1.0
        %v3897 = vadd.f32 %v3895, 1.0
        %v3898 = vmul.f32 %v3882, %v3896
        %v3899 = vmul.f32 %v3883, %v3897
        %v3900 = vld [vmem:[%s754] sm:$0xff]
        %v3901 = vld [vmem:[%s754 + $0x8] sm:$0xff]
        %v3902 = vld [vmem:[%s754 + $0x10] sm:$0xff]
        %v3903 = vld [vmem:[%s754 + $0x18] sm:$0xff]
        %v3904 = vld [vmem:[%s859] sm:$0x1]
        %v3906 = vperm.slane %v3904, 0
        %v3909 = vsel %vm1171, %v3898, 0
        %v3912 = vsel %vm1171, %v3899, 0
        %3914 = vmatpush.msra.mxu0 0.0
        %3915 = vmatpush.msra.mxu0 0.0
        %3916 = vmatpush.msra.mxu0 0.0
        %3917 = vmatpush.msra.mxu0 0.0
        %3918 = vmatpush.msra.mxu0 0.0
        %3919 = vmatpush.msra.mxu0 0.0
        %3920 = vmatpush.msra.mxu0 0.0
        %3921 = vmatpush.msra.mxu0 0.0
        %3922 = vmatpush.msra.mxu0 0.0
        %3923 = vmatpush.msra.mxu0 0.0
        %3924 = vmatpush.msra.mxu0 0.0
        %3925 = vmatpush.msra.mxu0 0.0
        %3926 = vmatpush.msra.mxu0 %v3903
        %3927 = vmatpush.msra.mxu0 %v3902
        %3928 = vmatpush.msra.mxu0 %v3901
        %3929 = vmatpush.msra.mxu0 %v3900
        %3930 = vmatmul.f32.gmra.mxu0 %v3909
        %v3931 = vpop.f32.mrf.mxu0
        %v3932 = vadd.f32 %v3906, %v3931
        %3933 = vmatmul.f32.gmra.mxu0 %v3912
        %v3934 = vpop.f32.mrf.mxu0
        %v3935 = vadd.f32 %v3906, %v3934
        %3936 = vdwg.mxu0
        %v3939 = vrot.slane %v3932, 2
        %v3940 = vrot.slane %v3932, 4
        %v3941 = vrot.slane %v3932, 6
        %v3942 = vrot.slane %v3935, 2
        %v3943 = vrot.slane %v3935, 4
        %v3944 = vrot.slane %v3935, 6
        %v3951 = vadd.f32 %v3614, %v3932
        %v3952 = vadd.f32 %v3615, %v3939
        %v3953 = vadd.f32 %v3616, %v3940
        %v3954 = vadd.f32 %v3617, %v3941
        %v3955 = vadd.f32 %v3618, %v3935
        %v3956 = vadd.f32 %v3619, %v3942
        %v3957 = vadd.f32 %v3620, %v3943
        %v3958 = vadd.f32 %v3621, %v3944
        %3959 = vst.msk [vmem:[#allocation13] sm:$0x3] %vm932, %v3951
        %3960 = vst.msk [vmem:[#allocation13 + $0x2] sm:$0x3] %vm932, %v3952
        %3961 = vst.msk [vmem:[#allocation13 + $0x4] sm:$0x3] %vm932, %v3953
        %3962 = vst.msk [vmem:[#allocation13 + $0x6] sm:$0x3] %vm932, %v3954
        %3963 = vst.msk [vmem:[#allocation13 + $0x8] sm:$0x3] %vm932, %v3955
        %3964 = vst.msk [vmem:[#allocation13 + $0xa] sm:$0x3] %vm932, %v3956
        %3965 = vst.msk [vmem:[#allocation13 + $0xc] sm:$0x3] %vm932, %v3957
        %3966 = vst.msk [vmem:[#allocation13 + $0xe] sm:$0x3] %vm932, %v3958
        %p3967 = scmp.eq.s32.totalorder %s35, 1
        // Predicated region
        $region121: #{tpu_custom_call.1} parent=83 // pred_check
          %p3968 = pneg %p3967
        $region122: #{tpu_custom_call.1} parent=83 // pred_check_branch
          %3970 = sbr.rel (%p3968) target = $region124
        $region123: #{tpu_custom_call.1} parent=83 // pred_region
          %v3971 = vld [vmem:[%s14] sm:$0x1]
          %v3972 = vld [vmem:[%s15] sm:$0x1]
          %v3973 = vsel %vm932, %v3951, 0.0
          %3974 = vadd.xlane.f32.xlu0 %v3973
          %v3975 = vpop.xlane.xlu0 %3974
          %v3976 = vsel %vm932, %v3952, 0.0
          %3977 = vadd.xlane.f32.xlu0 %v3976
          %v3978 = vpop.xlane.xlu0 %3977
          %v3979 = vsel %vm932, %v3953, 0.0
          %3980 = vadd.xlane.f32.xlu0 %v3979
          %v3981 = vpop.xlane.xlu0 %3980
          %v3982 = vsel %vm932, %v3954, 0.0
          %3983 = vadd.xlane.f32.xlu0 %v3982
          %v3984 = vpop.xlane.xlu0 %3983
          %v3985 = vsel %vm932, %v3955, 0.0
          %3986 = vadd.xlane.f32.xlu0 %v3985
          %v3987 = vpop.xlane.xlu0 %3986
          %v3988 = vsel %vm932, %v3956, 0.0
          %3989 = vadd.xlane.f32.xlu0 %v3988
          %v3990 = vpop.xlane.xlu0 %3989
          %v3991 = vsel %vm932, %v3957, 0.0
          %3992 = vadd.xlane.f32.xlu0 %v3991
          %v3993 = vpop.xlane.xlu0 %3992
          %v3994 = vsel %vm932, %v3958, 0.0
          %3995 = vadd.xlane.f32.xlu0 %v3994
          %v3996 = vpop.xlane.xlu0 %3995
          %v3997 = vmul.f32 %v3975, %v963
          %v3998 = vmul.f32 %v3978, %v963
          %v3999 = vmul.f32 %v3981, %v963
          %v4000 = vmul.f32 %v3984, %v963
          %v4001 = vmul.f32 %v3987, %v963
          %v4002 = vmul.f32 %v3990, %v963
          %v4003 = vmul.f32 %v3993, %v963
          %v4004 = vmul.f32 %v3996, %v963
          %v4005 = vsub.f32 %v3951, %v3997
          %v4006 = vsub.f32 %v3952, %v3998
          %v4007 = vsub.f32 %v3953, %v3999
          %v4008 = vsub.f32 %v3954, %v4000
          %v4009 = vsub.f32 %v3955, %v4001
          %v4010 = vsub.f32 %v3956, %v4002
          %v4011 = vsub.f32 %v3957, %v4003
          %v4012 = vsub.f32 %v3958, %v4004
          %v4013 = vmul.f32 %v4005, %v4005
          %v4014 = vmul.f32 %v4006, %v4006
          %v4015 = vmul.f32 %v4007, %v4007
          %v4016 = vmul.f32 %v4008, %v4008
          %v4017 = vmul.f32 %v4009, %v4009
          %v4018 = vmul.f32 %v4010, %v4010
          %v4019 = vmul.f32 %v4011, %v4011
          %v4020 = vmul.f32 %v4012, %v4012
          %v4021 = vsel %vm932, %v4013, 0.0
          %4022 = vadd.xlane.f32.xlu0 %v4021
          %v4023 = vpop.xlane.xlu0 %4022
          %v4024 = vsel %vm932, %v4014, 0.0
          %4025 = vadd.xlane.f32.xlu0 %v4024
          %v4026 = vpop.xlane.xlu0 %4025
          %v4027 = vsel %vm932, %v4015, 0.0
          %4028 = vadd.xlane.f32.xlu0 %v4027
          %v4029 = vpop.xlane.xlu0 %4028
          %v4030 = vsel %vm932, %v4016, 0.0
          %4031 = vadd.xlane.f32.xlu0 %v4030
          %v4032 = vpop.xlane.xlu0 %4031
          %v4033 = vsel %vm932, %v4017, 0.0
          %4034 = vadd.xlane.f32.xlu0 %v4033
          %v4035 = vpop.xlane.xlu0 %4034
          %v4036 = vsel %vm932, %v4018, 0.0
          %4037 = vadd.xlane.f32.xlu0 %v4036
          %v4038 = vpop.xlane.xlu0 %4037
          %v4039 = vsel %vm932, %v4019, 0.0
          %4040 = vadd.xlane.f32.xlu0 %v4039
          %v4041 = vpop.xlane.xlu0 %4040
          %v4042 = vsel %vm932, %v4020, 0.0
          %4043 = vadd.xlane.f32.xlu0 %v4042
          %v4044 = vpop.xlane.xlu0 %4043
          %v4045 = vmul.f32 %v4023, %v963
          %v4046 = vmul.f32 %v4026, %v963
          %v4047 = vmul.f32 %v4029, %v963
          %v4048 = vmul.f32 %v4032, %v963
          %v4049 = vmul.f32 %v4035, %v963
          %v4050 = vmul.f32 %v4038, %v963
          %v4051 = vmul.f32 %v4041, %v963
          %v4052 = vmul.f32 %v4044, %v963
          %v4053 = vadd.f32 %v4045, 1e-05
          %v4054 = vadd.f32 %v4046, 1e-05
          %v4055 = vadd.f32 %v4047, 1e-05
          %v4056 = vadd.f32 %v4048, 1e-05
          %v4057 = vadd.f32 %v4049, 1e-05
          %v4058 = vadd.f32 %v4050, 1e-05
          %v4059 = vadd.f32 %v4051, 1e-05
          %v4060 = vadd.f32 %v4052, 1e-05
          %v4061 = vrsqrt.pop %v4053
          %v4062 = vmul.f32 %v4061, %v4053
          %v4063 = vmul.f32 %v4062, %v4061
          %v4064 = vmul.f32 0.5, %v4063
          %v4065 = vsub.f32 1.5, %v4064
          %v4066 = vmul.f32 %v4061, %v4065
          %vm4067 = vweird.f32 %v4053
          %vm4068 = vweird.f32 %v4061
          %vm4069 = vmor %vm4067, %vm4068
          %v4070 = vsel %vm4069, %v4061, %v4066
          %v4071 = vrsqrt.pop %v4054
          %v4072 = vmul.f32 %v4071, %v4054
          %v4073 = vmul.f32 %v4072, %v4071
          %v4074 = vmul.f32 0.5, %v4073
          %v4075 = vsub.f32 1.5, %v4074
          %v4076 = vmul.f32 %v4071, %v4075
          %vm4077 = vweird.f32 %v4054
          %vm4078 = vweird.f32 %v4071
          %vm4079 = vmor %vm4077, %vm4078
          %v4080 = vsel %vm4079, %v4071, %v4076
          %v4081 = vrsqrt.pop %v4055
          %v4082 = vmul.f32 %v4081, %v4055
          %v4083 = vmul.f32 %v4082, %v4081
          %v4084 = vmul.f32 0.5, %v4083
          %v4085 = vsub.f32 1.5, %v4084
          %v4086 = vmul.f32 %v4081, %v4085
          %vm4087 = vweird.f32 %v4055
          %vm4088 = vweird.f32 %v4081
          %vm4089 = vmor %vm4087, %vm4088
          %v4090 = vsel %vm4089, %v4081, %v4086
          %v4091 = vrsqrt.pop %v4056
          %v4092 = vmul.f32 %v4091, %v4056
          %v4093 = vmul.f32 %v4092, %v4091
          %v4094 = vmul.f32 0.5, %v4093
          %v4095 = vsub.f32 1.5, %v4094
          %v4096 = vmul.f32 %v4091, %v4095
          %vm4097 = vweird.f32 %v4056
          %vm4098 = vweird.f32 %v4091
          %vm4099 = vmor %vm4097, %vm4098
          %v4100 = vsel %vm4099, %v4091, %v4096
          %v4101 = vrsqrt.pop %v4057
          %v4102 = vmul.f32 %v4101, %v4057
          %v4103 = vmul.f32 %v4102, %v4101
          %v4104 = vmul.f32 0.5, %v4103
          %v4105 = vsub.f32 1.5, %v4104
          %v4106 = vmul.f32 %v4101, %v4105
          %vm4107 = vweird.f32 %v4057
          %vm4108 = vweird.f32 %v4101
          %vm4109 = vmor %vm4107, %vm4108
          %v4110 = vsel %vm4109, %v4101, %v4106
          %v4111 = vrsqrt.pop %v4058
          %v4112 = vmul.f32 %v4111, %v4058
          %v4113 = vmul.f32 %v4112, %v4111
          %v4114 = vmul.f32 0.5, %v4113
          %v4115 = vsub.f32 1.5, %v4114
          %v4116 = vmul.f32 %v4111, %v4115
          %vm4117 = vweird.f32 %v4058
          %vm4118 = vweird.f32 %v4111
          %vm4119 = vmor %vm4117, %vm4118
          %v4120 = vsel %vm4119, %v4111, %v4116
          %v4121 = vrsqrt.pop %v4059
          %v4122 = vmul.f32 %v4121, %v4059
          %v4123 = vmul.f32 %v4122, %v4121
          %v4124 = vmul.f32 0.5, %v4123
          %v4125 = vsub.f32 1.5, %v4124
          %v4126 = vmul.f32 %v4121, %v4125
          %vm4127 = vweird.f32 %v4059
          %vm4128 = vweird.f32 %v4121
          %vm4129 = vmor %vm4127, %vm4128
          %v4130 = vsel %vm4129, %v4121, %v4126
          %v4131 = vrsqrt.pop %v4060
          %v4132 = vmul.f32 %v4131, %v4060
          %v4133 = vmul.f32 %v4132, %v4131
          %v4134 = vmul.f32 0.5, %v4133
          %v4135 = vsub.f32 1.5, %v4134
          %v4136 = vmul.f32 %v4131, %v4135
          %vm4137 = vweird.f32 %v4060
          %vm4138 = vweird.f32 %v4131
          %vm4139 = vmor %vm4137, %vm4138
          %v4140 = vsel %vm4139, %v4131, %v4136
          %v4141 = vmul.f32 %v4005, %v4070
          %v4142 = vmul.f32 %v4006, %v4080
          %v4143 = vmul.f32 %v4007, %v4090
          %v4144 = vmul.f32 %v4008, %v4100
          %v4145 = vmul.f32 %v4009, %v4110
          %v4146 = vmul.f32 %v4010, %v4120
          %v4147 = vmul.f32 %v4011, %v4130
          %v4148 = vmul.f32 %v4012, %v4140
          %v4150 = vperm.slane %v3971, 0
          %v4152 = vmul.f32 %v4141, %v4150
          %v4153 = vmul.f32 %v4142, %v4150
          %v4154 = vmul.f32 %v4143, %v4150
          %v4155 = vmul.f32 %v4144, %v4150
          %v4156 = vmul.f32 %v4145, %v4150
          %v4157 = vmul.f32 %v4146, %v4150
          %v4158 = vmul.f32 %v4147, %v4150
          %v4159 = vmul.f32 %v4148, %v4150
          %v4161 = vperm.slane %v3972, 0
          %v4163 = vadd.f32 %v4152, %v4161
          %v4164 = vadd.f32 %v4153, %v4161
          %v4165 = vadd.f32 %v4154, %v4161
          %v4166 = vadd.f32 %v4155, %v4161
          %v4167 = vadd.f32 %v4156, %v4161
          %v4168 = vadd.f32 %v4157, %v4161
          %v4169 = vadd.f32 %v4158, %v4161
          %v4170 = vadd.f32 %v4159, %v4161
          %4171 = vst.msk [vmem:[#allocation13] sm:$0x3] %vm932, %v4163
          %4172 = vst.msk [vmem:[#allocation13 + $0x2] sm:$0x3] %vm932, %v4164
          %4173 = vst.msk [vmem:[#allocation13 + $0x4] sm:$0x3] %vm932, %v4165
          %4174 = vst.msk [vmem:[#allocation13 + $0x6] sm:$0x3] %vm932, %v4166
          %4175 = vst.msk [vmem:[#allocation13 + $0x8] sm:$0x3] %vm932, %v4167
          %4176 = vst.msk [vmem:[#allocation13 + $0xa] sm:$0x3] %vm932, %v4168
          %4177 = vst.msk [vmem:[#allocation13 + $0xc] sm:$0x3] %vm932, %v4169
          %4178 = vst.msk [vmem:[#allocation13 + $0xe] sm:$0x3] %vm932, %v4170
        $region124: #{tpu_custom_call.1} parent=83 // pred_fallthru
          _
        // Predicated region
        $region125: #{tpu_custom_call.1} parent=83 // pred_check
          %p4179 = pneg %p466
        $region126: #{tpu_custom_call.1} parent=83 // pred_check_branch
          %4181 = sbr.rel (%p4179) target = $region128
        $region127: #{tpu_custom_call.1} parent=83 // pred_region
          %s4182 = smul.u32 8, %s34
          %4184 = vsyncadd [#allocation4], 0
          %s4185 = smul.addr %s4182, 2
          %s4186 = scalar_lea.hbm %s16, %s4185
          %s4187 = sshll.u32 [#allocation13], 4
          %s4188 = int_to_ptr.vmem [resolvable:$true] %s4187
          %s4189 = sshll.u32 %s4186, 4
          %s4190 = int_to_ptr.hbm [resolvable:$true] %s4189
          %4195 = dma.vmem_to_hbm [thread:$0]  %s4188, 256, %s4190, [#allocation4], 32, 32, 2
        $region128: #{tpu_custom_call.1} parent=83 // pred_fallthru
          _
        // Predicated region
        $region129: #{tpu_custom_call.1} parent=83 // pred_check
          %p4196 = pneg %p466
        $region130: #{tpu_custom_call.1} parent=83 // pred_check_branch
          %4198 = sbr.rel (%p4196) target = $region132
        $region131: #{tpu_custom_call.1} parent=83 // pred_region
          %4200 = dma.done [#allocation4], 256
        $region132: #{tpu_custom_call.1} parent=83 // pred_fallthru
          _
      $region84: #{tpu_custom_call.1} parent=5 // pred_fallthru
        _
      %p4201 = scmp.le.s32.totalorder 2, %s25
      // Predicated region
      $region133: #{tpu_custom_call.1} parent=5 // pred_check
        %p4202 = pneg %p4201
      $region134: #{tpu_custom_call.1} parent=5 // pred_check_branch
        %4204 = sbr.rel (%p4202) target = $region136
      $region135: #{tpu_custom_call.1} parent=5 // pred_region
        %s4205 = ssub.s32 %s25, 2
      $region136: #{tpu_custom_call.1} parent=5 // pred_fallthru
        _
    $region6: #{tpu_custom_call.1} parent=1 // loop_footer
      %s29 = sadd.s32 1, %s25
    $region7: #{tpu_custom_call.1} parent=1 // loop_footer_branch
      %24 = sbr.rel target = $region3
    $region8: #{tpu_custom_call.1} parent=1 // loop_exit
      _
    %4206 = vsyncpa [#allocation3], 1
    %s4207 = scalar_lea.sflag [#allocation3], 1
    %4208 = vsyncpa %s4207, 1
    %4209 = vsyncpa [#allocation6], 1
    %4210 = vsyncpa [#allocation4], 1
    %s4211 = scalar_lea.sflag [#allocation4], 1
    %4212 = vsyncpa %s4211, 1

</llo_original>
